<compile_context>
chip_gen: v7x
topology: tpu7x:2x2x1
jax: 0.10.0
libtpu: 0.0.40
codegen_flags: <defaults>
</compile_context>

<pallas_src>
import jax
import jax.numpy as jnp
from jax.experimental import pallas as pl
from jax.experimental.pallas import tpu as pltpu

# ---------------- model hyper-params ----------------
B = 2            # batch
T = 8            # seq_len
HID = 32         # hidden_dim == middle_layer_dims[-1] (growth factor 1.0)
N_FC = 2         # middle_layer
GRU_DEPTH = 2    # gru_depth
RDIM = 32        # recurrent_dim (== HID so all GRU layers share input width)
NCHARS = 16


def decoder_kernel(z_ref, fcw_ref, fcb_ref, wi_ref, bi_ref, wh_ref, bhn_ref,
                   ow_ref, ob_ref, out_ref):
    G = RDIM

    # ---- fully-connected middle layers (Linear + tanh) ----
    x = z_ref[...]                                            # (B, HID)
    for i in range(N_FC):
        x = jnp.tanh(
            jnp.dot(x, fcw_ref[i], preferred_element_type=jnp.float32)
            + fcb_ref[i])

    # ---- layer 0 input projection: the GRU input is x repeated along time,
    #      so x @ [W_ir|W_iz|W_in] + (b_i + b_h presummed for r,z) is constant.
    ix0 = jnp.dot(x, wi_ref[0], preferred_element_type=jnp.float32) + bi_ref[0]
    ix = [ix0] * T                                            # per-step (B, 3G)

    # ---- stacked GRU; layer l consumes the sequence produced by layer l-1 ----
    for l in range(GRU_DEPTH):
        wh_l = wh_ref[l]                                       # (G, 3G)
        bhn_l = jnp.broadcast_to(bhn_ref[l], (B, G))           # hoisted broadcast
        last = (l == GRU_DEPTH - 1)
        if not last:
            wi_next = wi_ref[l + 1]                            # (G, 3G)
            bi_next = jnp.broadcast_to(bi_ref[l + 1], (B, 3 * G))
        else:
            ow = ow_ref[...]                                   # (G, NCHARS)
            ob = jnp.broadcast_to(ob_ref[...], (B, NCHARS))

        h = jnp.zeros((B, G), jnp.float32)
        nxt = []
        for t in range(T):
            ixt = ix[t]
            # single fused MXU push on the recurrence critical path
            hh = jnp.dot(h, wh_l, preferred_element_type=jnp.float32)  # (B, 3G)
            r = jax.nn.sigmoid(ixt[:, 0:G] + hh[:, 0:G])
            zg = jax.nn.sigmoid(ixt[:, G:2 * G] + hh[:, G:2 * G])
            n = jnp.tanh(ixt[:, 2 * G:3 * G] + r * (hh[:, 2 * G:3 * G] + bhn_l))
            h = (1.0 - zg) * n + zg * h
            if not last:
                # next layer's input projection: off the h_t->h_{t+1} chain
                nxt.append(jnp.dot(h, wi_next,
                                   preferred_element_type=jnp.float32) + bi_next)
            else:
                # output projection per step: off the chain
                nxt.append(jnp.dot(h, ow,
                                   preferred_element_type=jnp.float32) + ob)
        ix = nxt

    # ---- lane-dense output slab: (B, T*NCHARS) = (2, 128) ----
    out_ref[...] = jnp.concatenate(ix, axis=1)


def _full_spec(shape):
    nd = len(shape)
    return pl.BlockSpec(shape, lambda i, _nd=nd: (0,) * _nd)


@jax.jit
def decoder_forward(z, fc_w, fc_b, w_ih, b_ih, w_hh, b_hh, out_w, out_b):
    # Fuse the three GRU gates (r, z, n) into wide matrices in the wrapper.
    wi_pk = jnp.concatenate([w_ih[:, 0], w_ih[:, 1], w_ih[:, 2]], axis=-1)   # (L, R, 3R)
    wh_pk = jnp.concatenate([w_hh[:, 0], w_hh[:, 1], w_hh[:, 2]], axis=-1)   # (L, R, 3R)
    # Pre-sum b_ir+b_hr and b_iz+b_hz; b_in stays alone, b_hn kept separate
    # (it is multiplied by r inside the cell).
    bi_pk = jnp.concatenate([b_ih[:, 0] + b_hh[:, 0],
                             b_ih[:, 1] + b_hh[:, 1],
                             b_ih[:, 2]], axis=-1)                            # (L, 1, 3R)
    bhn = b_hh[:, 2]                                                          # (L, 1, R)

    in_shapes = (
        (B, HID),
        (N_FC, HID, HID), (N_FC, 1, HID),
        (GRU_DEPTH, RDIM, 3 * RDIM), (GRU_DEPTH, 1, 3 * RDIM),
        (GRU_DEPTH, RDIM, 3 * RDIM), (GRU_DEPTH, 1, RDIM),
        (RDIM, NCHARS), (1, NCHARS),
    )

    out_flat = pl.pallas_call(
        decoder_kernel,
        out_shape=jax.ShapeDtypeStruct((B, T * NCHARS), jnp.float32),
        grid=(1,),
        in_specs=[_full_spec(s) for s in in_shapes],
        out_specs=_full_spec((B, T * NCHARS)),
        compiler_params=pltpu.CompilerParams(
            dimension_semantics=("arbitrary",)),
    )(z, fc_w, fc_b, wi_pk, bi_pk, wh_pk, bhn, out_w, out_b)

    # Row-major flatten of (T, NCHARS) per batch element -> just a reshape,
    # no transpose needed to recover PyTorch's batch_first layout.
    return out_flat.reshape(B, T, NCHARS)


def reference_forward(z, fc_w, fc_b, w_ih, b_ih, w_hh, b_hh, out_w, out_b):
    """Pure-JAX reference mirroring the PyTorch forward."""
    x = z
    for i in range(N_FC):
        x = jnp.tanh(x @ fc_w[i] + fc_b[i, 0])
    seq = jnp.broadcast_to(x[:, None, :], (B, T, RDIM))
    for l in range(GRU_DEPTH):
        h = jnp.zeros((B, RDIM), jnp.float32)
        outs = []
        for t in range(T):
            xt = seq[:, t, :]
            r = jax.nn.sigmoid(xt @ w_ih[l, 0] + b_ih[l, 0, 0]
                               + h @ w_hh[l, 0] + b_hh[l, 0, 0])
            zg = jax.nn.sigmoid(xt @ w_ih[l, 1] + b_ih[l, 1, 0]
                                + h @ w_hh[l, 1] + b_hh[l, 1, 0])
            n = jnp.tanh(xt @ w_ih[l, 2] + b_ih[l, 2, 0]
                         + r * (h @ w_hh[l, 2] + b_hh[l, 2, 0]))
            h = (1.0 - zg) * n + zg * h
            outs.append(h)
        seq = jnp.stack(outs, axis=1)
    return seq @ out_w + out_b[0]


if __name__ == "__main__":
    key = jax.random.PRNGKey(0)
    ks = jax.random.split(key, 10)
    scale = 0.2

    z = jax.random.normal(ks[0], (B, HID), jnp.float32)

    # FC stack (weights stored as (in, out); torch Linear computes x @ W.T,
    # here we generate W already in (in, out) orientation — same semantics).
    fc_w = jax.random.uniform(ks[1], (N_FC, HID, HID), jnp.float32, -scale, scale)
    fc_b = jax.random.uniform(ks[2], (N_FC, 1, HID), jnp.float32, -scale, scale)

    # GRU weights, gate order (r, z, n) as in torch.nn.GRU.
    w_ih = jax.random.uniform(ks[3], (GRU_DEPTH, 3, RDIM, RDIM), jnp.float32, -scale, scale)
    b_ih = jax.random.uniform(ks[4], (GRU_DEPTH, 3, 1, RDIM), jnp.float32, -scale, scale)
    w_hh = jax.random.uniform(ks[5], (GRU_DEPTH, 3, RDIM, RDIM), jnp.float32, -scale, scale)
    b_hh = jax.random.uniform(ks[6], (GRU_DEPTH, 3, 1, RDIM), jnp.float32, -scale, scale)

    # Output projection.
    out_w = jax.random.uniform(ks[7], (RDIM, NCHARS), jnp.float32, -scale, scale)
    out_b = jax.random.uniform(ks[8], (1, NCHARS), jnp.float32, -scale, scale)

    out = decoder_forward(z, fc_w, fc_b, w_ih, b_ih, w_hh, b_hh, out_w, out_b)
    out = jax.block_until_ready(out)

    ref = reference_forward(z, fc_w, fc_b, w_ih, b_ih, w_hh, b_hh, out_w, out_b)
    assert out.shape == (B, T, NCHARS), out.shape
    assert jnp.allclose(out, ref, atol=2e-5, rtol=2e-5), "mismatch vs reference"

    print("KERNEL_OK")
</pallas_src>

<mosaic_0001>
module attributes {stable_mosaic.version = 11 : i64} {
  func.func @decoder_kernel(%arg0: i32, %arg1: memref<2x32xf32, #tpu.memory_space<vmem>>, %arg2: memref<2x32x32xf32, #tpu.memory_space<vmem>>, %arg3: memref<2x1x32xf32, #tpu.memory_space<vmem>>, %arg4: memref<2x32x96xf32, #tpu.memory_space<vmem>>, %arg5: memref<2x1x96xf32, #tpu.memory_space<vmem>>, %arg6: memref<2x32x96xf32, #tpu.memory_space<vmem>>, %arg7: memref<2x1x32xf32, #tpu.memory_space<vmem>>, %arg8: memref<32x16xf32, #tpu.memory_space<vmem>>, %arg9: memref<1x16xf32, #tpu.memory_space<vmem>>, %arg10: memref<2x128xf32, #tpu.memory_space<vmem>>) attributes {dimension_semantics = [#tpu.dimension_semantics<arbitrary>], iteration_bounds = array<i64: 1>, scalar_prefetch = 0 : i64, scratch_operands = 0 : i64, tpu.core_type = #tpu.core_type<tc>, window_params = [{pipeline_mode = #tpu.pipeline_mode<synchronous>, transform_indices = @transform_0, window_bounds = array<i64: 2, 32>}, {pipeline_mode = #tpu.pipeline_mode<synchronous>, transform_indices = @transform_1, window_bounds = array<i64: 2, 32, 32>}, {pipeline_mode = #tpu.pipeline_mode<synchronous>, transform_indices = @transform_2, window_bounds = array<i64: 2, 1, 32>}, {pipeline_mode = #tpu.pipeline_mode<synchronous>, transform_indices = @transform_3, window_bounds = array<i64: 2, 32, 96>}, {pipeline_mode = #tpu.pipeline_mode<synchronous>, transform_indices = @transform_4, window_bounds = array<i64: 2, 1, 96>}, {pipeline_mode = #tpu.pipeline_mode<synchronous>, transform_indices = @transform_5, window_bounds = array<i64: 2, 32, 96>}, {pipeline_mode = #tpu.pipeline_mode<synchronous>, transform_indices = @transform_6, window_bounds = array<i64: 2, 1, 32>}, {pipeline_mode = #tpu.pipeline_mode<synchronous>, transform_indices = @transform_7, window_bounds = array<i64: 32, 16>}, {pipeline_mode = #tpu.pipeline_mode<synchronous>, transform_indices = @transform_8, window_bounds = array<i64: 1, 16>}, {pipeline_mode = #tpu.pipeline_mode<synchronous>, transform_indices = @transform_9, window_bounds = array<i64: 2, 128>}]} {
    %c0 = arith.constant 0 : index
    %c0_0 = arith.constant 0 : index
    %0 = vector.load %arg1[%c0, %c0_0] : memref<2x32xf32, #tpu.memory_space<vmem>>, vector<2x32xf32>
    %c0_1 = arith.constant 0 : index
    %c0_2 = arith.constant 0 : index
    %c0_3 = arith.constant 0 : index
    %1 = vector.load %arg2[%c0_1, %c0_2, %c0_3] : memref<2x32x32xf32, #tpu.memory_space<vmem>>, vector<1x32x32xf32>
    %2 = vector.shape_cast %1 : vector<1x32x32xf32> to vector<32x32xf32>
    %cst = arith.constant dense<0.000000e+00> : vector<2x32xf32>
    %3 = tpu.matmul %0, %2, %cst {dimension_numbers = #tpu.dot_dimension_numbers<[1], [0], [0], [1], [0, 0, 1, 1], [], []>} : vector<2x32xf32>, vector<32x32xf32>, vector<2x32xf32> -> vector<2x32xf32>
    %c0_4 = arith.constant 0 : index
    %c0_5 = arith.constant 0 : index
    %c0_6 = arith.constant 0 : index
    %4 = vector.load %arg3[%c0_4, %c0_5, %c0_6] : memref<2x1x32xf32, #tpu.memory_space<vmem>>, vector<1x1x32xf32>
    %5 = vector.shape_cast %4 : vector<1x1x32xf32> to vector<1x32xf32>
    %6 = vector.broadcast %5 : vector<1x32xf32> to vector<2x32xf32>
    %7 = arith.addf %3, %6 : vector<2x32xf32>
    %8 = math.tanh %7 : vector<2x32xf32>
    %c1 = arith.constant 1 : index
    %c0_7 = arith.constant 0 : index
    %c0_8 = arith.constant 0 : index
    %9 = vector.load %arg2[%c1, %c0_7, %c0_8] : memref<2x32x32xf32, #tpu.memory_space<vmem>>, vector<1x32x32xf32>
    %10 = vector.shape_cast %9 : vector<1x32x32xf32> to vector<32x32xf32>
    %cst_9 = arith.constant dense<0.000000e+00> : vector<2x32xf32>
    %11 = tpu.matmul %8, %10, %cst_9 {dimension_numbers = #tpu.dot_dimension_numbers<[1], [0], [0], [1], [0, 0, 1, 1], [], []>} : vector<2x32xf32>, vector<32x32xf32>, vector<2x32xf32> -> vector<2x32xf32>
    %c1_10 = arith.constant 1 : index
    %c0_11 = arith.constant 0 : index
    %c0_12 = arith.constant 0 : index
    %12 = vector.load %arg3[%c1_10, %c0_11, %c0_12] : memref<2x1x32xf32, #tpu.memory_space<vmem>>, vector<1x1x32xf32>
    %13 = vector.shape_cast %12 : vector<1x1x32xf32> to vector<1x32xf32>
    %14 = vector.broadcast %13 : vector<1x32xf32> to vector<2x32xf32>
    %15 = arith.addf %11, %14 : vector<2x32xf32>
    %16 = math.tanh %15 : vector<2x32xf32>
    %c0_13 = arith.constant 0 : index
    %c0_14 = arith.constant 0 : index
    %c0_15 = arith.constant 0 : index
    %17 = vector.load %arg4[%c0_13, %c0_14, %c0_15] : memref<2x32x96xf32, #tpu.memory_space<vmem>>, vector<1x32x96xf32>
    %18 = vector.shape_cast %17 : vector<1x32x96xf32> to vector<32x96xf32>
    %cst_16 = arith.constant dense<0.000000e+00> : vector<2x96xf32>
    %19 = tpu.matmul %16, %18, %cst_16 {dimension_numbers = #tpu.dot_dimension_numbers<[1], [0], [0], [1], [0, 0, 1, 1], [], []>} : vector<2x32xf32>, vector<32x96xf32>, vector<2x96xf32> -> vector<2x96xf32>
    %c0_17 = arith.constant 0 : index
    %c0_18 = arith.constant 0 : index
    %c0_19 = arith.constant 0 : index
    %20 = vector.load %arg5[%c0_17, %c0_18, %c0_19] : memref<2x1x96xf32, #tpu.memory_space<vmem>>, vector<1x1x96xf32>
    %21 = vector.shape_cast %20 : vector<1x1x96xf32> to vector<1x96xf32>
    %22 = vector.broadcast %21 : vector<1x96xf32> to vector<2x96xf32>
    %23 = arith.addf %19, %22 : vector<2x96xf32>
    %c0_20 = arith.constant 0 : index
    %c0_21 = arith.constant 0 : index
    %c0_22 = arith.constant 0 : index
    %24 = vector.load %arg6[%c0_20, %c0_21, %c0_22] : memref<2x32x96xf32, #tpu.memory_space<vmem>>, vector<1x32x96xf32>
    %25 = vector.shape_cast %24 : vector<1x32x96xf32> to vector<32x96xf32>
    %c0_23 = arith.constant 0 : index
    %c0_24 = arith.constant 0 : index
    %c0_25 = arith.constant 0 : index
    %26 = vector.load %arg7[%c0_23, %c0_24, %c0_25] : memref<2x1x32xf32, #tpu.memory_space<vmem>>, vector<1x1x32xf32>
    %27 = vector.shape_cast %26 : vector<1x1x32xf32> to vector<1x32xf32>
    %28 = vector.shape_cast %27 : vector<1x32xf32> to vector<1x32xf32>
    %29 = vector.broadcast %28 : vector<1x32xf32> to vector<2x32xf32>
    %c1_26 = arith.constant 1 : index
    %c0_27 = arith.constant 0 : index
    %c0_28 = arith.constant 0 : index
    %30 = vector.load %arg4[%c1_26, %c0_27, %c0_28] : memref<2x32x96xf32, #tpu.memory_space<vmem>>, vector<1x32x96xf32>
    %31 = vector.shape_cast %30 : vector<1x32x96xf32> to vector<32x96xf32>
    %c1_29 = arith.constant 1 : index
    %c0_30 = arith.constant 0 : index
    %c0_31 = arith.constant 0 : index
    %32 = vector.load %arg5[%c1_29, %c0_30, %c0_31] : memref<2x1x96xf32, #tpu.memory_space<vmem>>, vector<1x1x96xf32>
    %33 = vector.shape_cast %32 : vector<1x1x96xf32> to vector<1x96xf32>
    %34 = vector.shape_cast %33 : vector<1x96xf32> to vector<1x96xf32>
    %35 = vector.broadcast %34 : vector<1x96xf32> to vector<2x96xf32>
    %cst_32 = arith.constant 0.000000e+00 : f32
    %36 = vector.broadcast %cst_32 : f32 to vector<2x32xf32>
    %cst_33 = arith.constant dense<0.000000e+00> : vector<2x96xf32>
    %37 = tpu.matmul %36, %25, %cst_33 {dimension_numbers = #tpu.dot_dimension_numbers<[1], [0], [0], [1], [0, 0, 1, 1], [], []>} : vector<2x32xf32>, vector<32x96xf32>, vector<2x96xf32> -> vector<2x96xf32>
    %38 = vector.extract_strided_slice %23 {offsets = [0, 0], sizes = [2, 32], strides = [1, 1]} : vector<2x96xf32> to vector<2x32xf32>
    %39 = vector.extract_strided_slice %37 {offsets = [0, 0], sizes = [2, 32], strides = [1, 1]} : vector<2x96xf32> to vector<2x32xf32>
    %40 = arith.addf %38, %39 : vector<2x32xf32>
    %41 = arith.negf %40 : vector<2x32xf32>
    %42 = math.exp %41 : vector<2x32xf32>
    %cst_34 = arith.constant 1.000000e+00 : f32
    %43 = vector.broadcast %cst_34 : f32 to vector<2x32xf32>
    %44 = arith.addf %43, %42 : vector<2x32xf32>
    %45 = arith.divf %43, %44 : vector<2x32xf32>
    %46 = vector.extract_strided_slice %23 {offsets = [0, 32], sizes = [2, 32], strides = [1, 1]} : vector<2x96xf32> to vector<2x32xf32>
    %47 = vector.extract_strided_slice %37 {offsets = [0, 32], sizes = [2, 32], strides = [1, 1]} : vector<2x96xf32> to vector<2x32xf32>
    %48 = arith.addf %46, %47 : vector<2x32xf32>
    %49 = arith.negf %48 : vector<2x32xf32>
    %50 = math.exp %49 : vector<2x32xf32>
    %cst_35 = arith.constant 1.000000e+00 : f32
    %51 = vector.broadcast %cst_35 : f32 to vector<2x32xf32>
    %52 = arith.addf %51, %50 : vector<2x32xf32>
    %53 = arith.divf %51, %52 : vector<2x32xf32>
    %54 = vector.extract_strided_slice %23 {offsets = [0, 64], sizes = [2, 32], strides = [1, 1]} : vector<2x96xf32> to vector<2x32xf32>
    %55 = vector.extract_strided_slice %37 {offsets = [0, 64], sizes = [2, 32], strides = [1, 1]} : vector<2x96xf32> to vector<2x32xf32>
    %56 = arith.addf %55, %29 : vector<2x32xf32>
    %57 = arith.mulf %45, %56 : vector<2x32xf32>
    %58 = arith.addf %54, %57 : vector<2x32xf32>
    %59 = math.tanh %58 : vector<2x32xf32>
    %cst_36 = arith.constant 1.000000e+00 : f32
    %60 = vector.broadcast %cst_36 : f32 to vector<2x32xf32>
    %61 = arith.subf %60, %53 : vector<2x32xf32>
    %62 = arith.mulf %61, %59 : vector<2x32xf32>
    %63 = arith.mulf %53, %36 : vector<2x32xf32>
    %64 = arith.addf %62, %63 : vector<2x32xf32>
    %cst_37 = arith.constant dense<0.000000e+00> : vector<2x96xf32>
    %65 = tpu.matmul %64, %31, %cst_37 {dimension_numbers = #tpu.dot_dimension_numbers<[1], [0], [0], [1], [0, 0, 1, 1], [], []>} : vector<2x32xf32>, vector<32x96xf32>, vector<2x96xf32> -> vector<2x96xf32>
    %66 = arith.addf %65, %35 : vector<2x96xf32>
    %cst_38 = arith.constant dense<0.000000e+00> : vector<2x96xf32>
    %67 = tpu.matmul %64, %25, %cst_38 {dimension_numbers = #tpu.dot_dimension_numbers<[1], [0], [0], [1], [0, 0, 1, 1], [], []>} : vector<2x32xf32>, vector<32x96xf32>, vector<2x96xf32> -> vector<2x96xf32>
    %68 = vector.extract_strided_slice %23 {offsets = [0, 0], sizes = [2, 32], strides = [1, 1]} : vector<2x96xf32> to vector<2x32xf32>
    %69 = vector.extract_strided_slice %67 {offsets = [0, 0], sizes = [2, 32], strides = [1, 1]} : vector<2x96xf32> to vector<2x32xf32>
    %70 = arith.addf %68, %69 : vector<2x32xf32>
    %71 = arith.negf %70 : vector<2x32xf32>
    %72 = math.exp %71 : vector<2x32xf32>
    %cst_39 = arith.constant 1.000000e+00 : f32
    %73 = vector.broadcast %cst_39 : f32 to vector<2x32xf32>
    %74 = arith.addf %73, %72 : vector<2x32xf32>
    %75 = arith.divf %73, %74 : vector<2x32xf32>
    %76 = vector.extract_strided_slice %23 {offsets = [0, 32], sizes = [2, 32], strides = [1, 1]} : vector<2x96xf32> to vector<2x32xf32>
    %77 = vector.extract_strided_slice %67 {offsets = [0, 32], sizes = [2, 32], strides = [1, 1]} : vector<2x96xf32> to vector<2x32xf32>
    %78 = arith.addf %76, %77 : vector<2x32xf32>
    %79 = arith.negf %78 : vector<2x32xf32>
    %80 = math.exp %79 : vector<2x32xf32>
    %cst_40 = arith.constant 1.000000e+00 : f32
    %81 = vector.broadcast %cst_40 : f32 to vector<2x32xf32>
    %82 = arith.addf %81, %80 : vector<2x32xf32>
    %83 = arith.divf %81, %82 : vector<2x32xf32>
    %84 = vector.extract_strided_slice %23 {offsets = [0, 64], sizes = [2, 32], strides = [1, 1]} : vector<2x96xf32> to vector<2x32xf32>
    %85 = vector.extract_strided_slice %67 {offsets = [0, 64], sizes = [2, 32], strides = [1, 1]} : vector<2x96xf32> to vector<2x32xf32>
    %86 = arith.addf %85, %29 : vector<2x32xf32>
    %87 = arith.mulf %75, %86 : vector<2x32xf32>
    %88 = arith.addf %84, %87 : vector<2x32xf32>
    %89 = math.tanh %88 : vector<2x32xf32>
    %cst_41 = arith.constant 1.000000e+00 : f32
    %90 = vector.broadcast %cst_41 : f32 to vector<2x32xf32>
    %91 = arith.subf %90, %83 : vector<2x32xf32>
    %92 = arith.mulf %91, %89 : vector<2x32xf32>
    %93 = arith.mulf %83, %64 : vector<2x32xf32>
    %94 = arith.addf %92, %93 : vector<2x32xf32>
    %cst_42 = arith.constant dense<0.000000e+00> : vector<2x96xf32>
    %95 = tpu.matmul %94, %31, %cst_42 {dimension_numbers = #tpu.dot_dimension_numbers<[1], [0], [0], [1], [0, 0, 1, 1], [], []>} : vector<2x32xf32>, vector<32x96xf32>, vector<2x96xf32> -> vector<2x96xf32>
    %96 = arith.addf %95, %35 : vector<2x96xf32>
    %cst_43 = arith.constant dense<0.000000e+00> : vector<2x96xf32>
    %97 = tpu.matmul %94, %25, %cst_43 {dimension_numbers = #tpu.dot_dimension_numbers<[1], [0], [0], [1], [0, 0, 1, 1], [], []>} : vector<2x32xf32>, vector<32x96xf32>, vector<2x96xf32> -> vector<2x96xf32>
    %98 = vector.extract_strided_slice %23 {offsets = [0, 0], sizes = [2, 32], strides = [1, 1]} : vector<2x96xf32> to vector<2x32xf32>
    %99 = vector.extract_strided_slice %97 {offsets = [0, 0], sizes = [2, 32], strides = [1, 1]} : vector<2x96xf32> to vector<2x32xf32>
    %100 = arith.addf %98, %99 : vector<2x32xf32>
    %101 = arith.negf %100 : vector<2x32xf32>
    %102 = math.exp %101 : vector<2x32xf32>
    %cst_44 = arith.constant 1.000000e+00 : f32
    %103 = vector.broadcast %cst_44 : f32 to vector<2x32xf32>
    %104 = arith.addf %103, %102 : vector<2x32xf32>
    %105 = arith.divf %103, %104 : vector<2x32xf32>
    %106 = vector.extract_strided_slice %23 {offsets = [0, 32], sizes = [2, 32], strides = [1, 1]} : vector<2x96xf32> to vector<2x32xf32>
    %107 = vector.extract_strided_slice %97 {offsets = [0, 32], sizes = [2, 32], strides = [1, 1]} : vector<2x96xf32> to vector<2x32xf32>
    %108 = arith.addf %106, %107 : vector<2x32xf32>
    %109 = arith.negf %108 : vector<2x32xf32>
    %110 = math.exp %109 : vector<2x32xf32>
    %cst_45 = arith.constant 1.000000e+00 : f32
    %111 = vector.broadcast %cst_45 : f32 to vector<2x32xf32>
    %112 = arith.addf %111, %110 : vector<2x32xf32>
    %113 = arith.divf %111, %112 : vector<2x32xf32>
    %114 = vector.extract_strided_slice %23 {offsets = [0, 64], sizes = [2, 32], strides = [1, 1]} : vector<2x96xf32> to vector<2x32xf32>
    %115 = vector.extract_strided_slice %97 {offsets = [0, 64], sizes = [2, 32], strides = [1, 1]} : vector<2x96xf32> to vector<2x32xf32>
    %116 = arith.addf %115, %29 : vector<2x32xf32>
    %117 = arith.mulf %105, %116 : vector<2x32xf32>
    %118 = arith.addf %114, %117 : vector<2x32xf32>
    %119 = math.tanh %118 : vector<2x32xf32>
    %cst_46 = arith.constant 1.000000e+00 : f32
    %120 = vector.broadcast %cst_46 : f32 to vector<2x32xf32>
    %121 = arith.subf %120, %113 : vector<2x32xf32>
    %122 = arith.mulf %121, %119 : vector<2x32xf32>
    %123 = arith.mulf %113, %94 : vector<2x32xf32>
    %124 = arith.addf %122, %123 : vector<2x32xf32>
    %cst_47 = arith.constant dense<0.000000e+00> : vector<2x96xf32>
    %125 = tpu.matmul %124, %31, %cst_47 {dimension_numbers = #tpu.dot_dimension_numbers<[1], [0], [0], [1], [0, 0, 1, 1], [], []>} : vector<2x32xf32>, vector<32x96xf32>, vector<2x96xf32> -> vector<2x96xf32>
    %126 = arith.addf %125, %35 : vector<2x96xf32>
    %cst_48 = arith.constant dense<0.000000e+00> : vector<2x96xf32>
    %127 = tpu.matmul %124, %25, %cst_48 {dimension_numbers = #tpu.dot_dimension_numbers<[1], [0], [0], [1], [0, 0, 1, 1], [], []>} : vector<2x32xf32>, vector<32x96xf32>, vector<2x96xf32> -> vector<2x96xf32>
    %128 = vector.extract_strided_slice %23 {offsets = [0, 0], sizes = [2, 32], strides = [1, 1]} : vector<2x96xf32> to vector<2x32xf32>
    %129 = vector.extract_strided_slice %127 {offsets = [0, 0], sizes = [2, 32], strides = [1, 1]} : vector<2x96xf32> to vector<2x32xf32>
    %130 = arith.addf %128, %129 : vector<2x32xf32>
    %131 = arith.negf %130 : vector<2x32xf32>
    %132 = math.exp %131 : vector<2x32xf32>
    %cst_49 = arith.constant 1.000000e+00 : f32
    %133 = vector.broadcast %cst_49 : f32 to vector<2x32xf32>
    %134 = arith.addf %133, %132 : vector<2x32xf32>
    %135 = arith.divf %133, %134 : vector<2x32xf32>
    %136 = vector.extract_strided_slice %23 {offsets = [0, 32], sizes = [2, 32], strides = [1, 1]} : vector<2x96xf32> to vector<2x32xf32>
    %137 = vector.extract_strided_slice %127 {offsets = [0, 32], sizes = [2, 32], strides = [1, 1]} : vector<2x96xf32> to vector<2x32xf32>
    %138 = arith.addf %136, %137 : vector<2x32xf32>
    %139 = arith.negf %138 : vector<2x32xf32>
    %140 = math.exp %139 : vector<2x32xf32>
    %cst_50 = arith.constant 1.000000e+00 : f32
    %141 = vector.broadcast %cst_50 : f32 to vector<2x32xf32>
    %142 = arith.addf %141, %140 : vector<2x32xf32>
    %143 = arith.divf %141, %142 : vector<2x32xf32>
    %144 = vector.extract_strided_slice %23 {offsets = [0, 64], sizes = [2, 32], strides = [1, 1]} : vector<2x96xf32> to vector<2x32xf32>
    %145 = vector.extract_strided_slice %127 {offsets = [0, 64], sizes = [2, 32], strides = [1, 1]} : vector<2x96xf32> to vector<2x32xf32>
    %146 = arith.addf %145, %29 : vector<2x32xf32>
    %147 = arith.mulf %135, %146 : vector<2x32xf32>
    %148 = arith.addf %144, %147 : vector<2x32xf32>
    %149 = math.tanh %148 : vector<2x32xf32>
    %cst_51 = arith.constant 1.000000e+00 : f32
    %150 = vector.broadcast %cst_51 : f32 to vector<2x32xf32>
    %151 = arith.subf %150, %143 : vector<2x32xf32>
    %152 = arith.mulf %151, %149 : vector<2x32xf32>
    %153 = arith.mulf %143, %124 : vector<2x32xf32>
    %154 = arith.addf %152, %153 : vector<2x32xf32>
    %cst_52 = arith.constant dense<0.000000e+00> : vector<2x96xf32>
    %155 = tpu.matmul %154, %31, %cst_52 {dimension_numbers = #tpu.dot_dimension_numbers<[1], [0], [0], [1], [0, 0, 1, 1], [], []>} : vector<2x32xf32>, vector<32x96xf32>, vector<2x96xf32> -> vector<2x96xf32>
    %156 = arith.addf %155, %35 : vector<2x96xf32>
    %cst_53 = arith.constant dense<0.000000e+00> : vector<2x96xf32>
    %157 = tpu.matmul %154, %25, %cst_53 {dimension_numbers = #tpu.dot_dimension_numbers<[1], [0], [0], [1], [0, 0, 1, 1], [], []>} : vector<2x32xf32>, vector<32x96xf32>, vector<2x96xf32> -> vector<2x96xf32>
    %158 = vector.extract_strided_slice %23 {offsets = [0, 0], sizes = [2, 32], strides = [1, 1]} : vector<2x96xf32> to vector<2x32xf32>
    %159 = vector.extract_strided_slice %157 {offsets = [0, 0], sizes = [2, 32], strides = [1, 1]} : vector<2x96xf32> to vector<2x32xf32>
    %160 = arith.addf %158, %159 : vector<2x32xf32>
    %161 = arith.negf %160 : vector<2x32xf32>
    %162 = math.exp %161 : vector<2x32xf32>
    %cst_54 = arith.constant 1.000000e+00 : f32
    %163 = vector.broadcast %cst_54 : f32 to vector<2x32xf32>
    %164 = arith.addf %163, %162 : vector<2x32xf32>
    %165 = arith.divf %163, %164 : vector<2x32xf32>
    %166 = vector.extract_strided_slice %23 {offsets = [0, 32], sizes = [2, 32], strides = [1, 1]} : vector<2x96xf32> to vector<2x32xf32>
    %167 = vector.extract_strided_slice %157 {offsets = [0, 32], sizes = [2, 32], strides = [1, 1]} : vector<2x96xf32> to vector<2x32xf32>
    %168 = arith.addf %166, %167 : vector<2x32xf32>
    %169 = arith.negf %168 : vector<2x32xf32>
    %170 = math.exp %169 : vector<2x32xf32>
    %cst_55 = arith.constant 1.000000e+00 : f32
    %171 = vector.broadcast %cst_55 : f32 to vector<2x32xf32>
    %172 = arith.addf %171, %170 : vector<2x32xf32>
    %173 = arith.divf %171, %172 : vector<2x32xf32>
    %174 = vector.extract_strided_slice %23 {offsets = [0, 64], sizes = [2, 32], strides = [1, 1]} : vector<2x96xf32> to vector<2x32xf32>
    %175 = vector.extract_strided_slice %157 {offsets = [0, 64], sizes = [2, 32], strides = [1, 1]} : vector<2x96xf32> to vector<2x32xf32>
    %176 = arith.addf %175, %29 : vector<2x32xf32>
    %177 = arith.mulf %165, %176 : vector<2x32xf32>
    %178 = arith.addf %174, %177 : vector<2x32xf32>
    %179 = math.tanh %178 : vector<2x32xf32>
    %cst_56 = arith.constant 1.000000e+00 : f32
    %180 = vector.broadcast %cst_56 : f32 to vector<2x32xf32>
    %181 = arith.subf %180, %173 : vector<2x32xf32>
    %182 = arith.mulf %181, %179 : vector<2x32xf32>
    %183 = arith.mulf %173, %154 : vector<2x32xf32>
    %184 = arith.addf %182, %183 : vector<2x32xf32>
    %cst_57 = arith.constant dense<0.000000e+00> : vector<2x96xf32>
    %185 = tpu.matmul %184, %31, %cst_57 {dimension_numbers = #tpu.dot_dimension_numbers<[1], [0], [0], [1], [0, 0, 1, 1], [], []>} : vector<2x32xf32>, vector<32x96xf32>, vector<2x96xf32> -> vector<2x96xf32>
    %186 = arith.addf %185, %35 : vector<2x96xf32>
    %cst_58 = arith.constant dense<0.000000e+00> : vector<2x96xf32>
    %187 = tpu.matmul %184, %25, %cst_58 {dimension_numbers = #tpu.dot_dimension_numbers<[1], [0], [0], [1], [0, 0, 1, 1], [], []>} : vector<2x32xf32>, vector<32x96xf32>, vector<2x96xf32> -> vector<2x96xf32>
    %188 = vector.extract_strided_slice %23 {offsets = [0, 0], sizes = [2, 32], strides = [1, 1]} : vector<2x96xf32> to vector<2x32xf32>
    %189 = vector.extract_strided_slice %187 {offsets = [0, 0], sizes = [2, 32], strides = [1, 1]} : vector<2x96xf32> to vector<2x32xf32>
    %190 = arith.addf %188, %189 : vector<2x32xf32>
    %191 = arith.negf %190 : vector<2x32xf32>
    %192 = math.exp %191 : vector<2x32xf32>
    %cst_59 = arith.constant 1.000000e+00 : f32
    %193 = vector.broadcast %cst_59 : f32 to vector<2x32xf32>
    %194 = arith.addf %193, %192 : vector<2x32xf32>
    %195 = arith.divf %193, %194 : vector<2x32xf32>
    %196 = vector.extract_strided_slice %23 {offsets = [0, 32], sizes = [2, 32], strides = [1, 1]} : vector<2x96xf32> to vector<2x32xf32>
    %197 = vector.extract_strided_slice %187 {offsets = [0, 32], sizes = [2, 32], strides = [1, 1]} : vector<2x96xf32> to vector<2x32xf32>
    %198 = arith.addf %196, %197 : vector<2x32xf32>
    %199 = arith.negf %198 : vector<2x32xf32>
    %200 = math.exp %199 : vector<2x32xf32>
    %cst_60 = arith.constant 1.000000e+00 : f32
    %201 = vector.broadcast %cst_60 : f32 to vector<2x32xf32>
    %202 = arith.addf %201, %200 : vector<2x32xf32>
    %203 = arith.divf %201, %202 : vector<2x32xf32>
    %204 = vector.extract_strided_slice %23 {offsets = [0, 64], sizes = [2, 32], strides = [1, 1]} : vector<2x96xf32> to vector<2x32xf32>
    %205 = vector.extract_strided_slice %187 {offsets = [0, 64], sizes = [2, 32], strides = [1, 1]} : vector<2x96xf32> to vector<2x32xf32>
    %206 = arith.addf %205, %29 : vector<2x32xf32>
    %207 = arith.mulf %195, %206 : vector<2x32xf32>
    %208 = arith.addf %204, %207 : vector<2x32xf32>
    %209 = math.tanh %208 : vector<2x32xf32>
    %cst_61 = arith.constant 1.000000e+00 : f32
    %210 = vector.broadcast %cst_61 : f32 to vector<2x32xf32>
    %211 = arith.subf %210, %203 : vector<2x32xf32>
    %212 = arith.mulf %211, %209 : vector<2x32xf32>
    %213 = arith.mulf %203, %184 : vector<2x32xf32>
    %214 = arith.addf %212, %213 : vector<2x32xf32>
    %cst_62 = arith.constant dense<0.000000e+00> : vector<2x96xf32>
    %215 = tpu.matmul %214, %31, %cst_62 {dimension_numbers = #tpu.dot_dimension_numbers<[1], [0], [0], [1], [0, 0, 1, 1], [], []>} : vector<2x32xf32>, vector<32x96xf32>, vector<2x96xf32> -> vector<2x96xf32>
    %216 = arith.addf %215, %35 : vector<2x96xf32>
    %cst_63 = arith.constant dense<0.000000e+00> : vector<2x96xf32>
    %217 = tpu.matmul %214, %25, %cst_63 {dimension_numbers = #tpu.dot_dimension_numbers<[1], [0], [0], [1], [0, 0, 1, 1], [], []>} : vector<2x32xf32>, vector<32x96xf32>, vector<2x96xf32> -> vector<2x96xf32>
    %218 = vector.extract_strided_slice %23 {offsets = [0, 0], sizes = [2, 32], strides = [1, 1]} : vector<2x96xf32> to vector<2x32xf32>
    %219 = vector.extract_strided_slice %217 {offsets = [0, 0], sizes = [2, 32], strides = [1, 1]} : vector<2x96xf32> to vector<2x32xf32>
    %220 = arith.addf %218, %219 : vector<2x32xf32>
    %221 = arith.negf %220 : vector<2x32xf32>
    %222 = math.exp %221 : vector<2x32xf32>
    %cst_64 = arith.constant 1.000000e+00 : f32
    %223 = vector.broadcast %cst_64 : f32 to vector<2x32xf32>
    %224 = arith.addf %223, %222 : vector<2x32xf32>
    %225 = arith.divf %223, %224 : vector<2x32xf32>
    %226 = vector.extract_strided_slice %23 {offsets = [0, 32], sizes = [2, 32], strides = [1, 1]} : vector<2x96xf32> to vector<2x32xf32>
    %227 = vector.extract_strided_slice %217 {offsets = [0, 32], sizes = [2, 32], strides = [1, 1]} : vector<2x96xf32> to vector<2x32xf32>
    %228 = arith.addf %226, %227 : vector<2x32xf32>
    %229 = arith.negf %228 : vector<2x32xf32>
    %230 = math.exp %229 : vector<2x32xf32>
    %cst_65 = arith.constant 1.000000e+00 : f32
    %231 = vector.broadcast %cst_65 : f32 to vector<2x32xf32>
    %232 = arith.addf %231, %230 : vector<2x32xf32>
    %233 = arith.divf %231, %232 : vector<2x32xf32>
    %234 = vector.extract_strided_slice %23 {offsets = [0, 64], sizes = [2, 32], strides = [1, 1]} : vector<2x96xf32> to vector<2x32xf32>
    %235 = vector.extract_strided_slice %217 {offsets = [0, 64], sizes = [2, 32], strides = [1, 1]} : vector<2x96xf32> to vector<2x32xf32>
    %236 = arith.addf %235, %29 : vector<2x32xf32>
    %237 = arith.mulf %225, %236 : vector<2x32xf32>
    %238 = arith.addf %234, %237 : vector<2x32xf32>
    %239 = math.tanh %238 : vector<2x32xf32>
    %cst_66 = arith.constant 1.000000e+00 : f32
    %240 = vector.broadcast %cst_66 : f32 to vector<2x32xf32>
    %241 = arith.subf %240, %233 : vector<2x32xf32>
    %242 = arith.mulf %241, %239 : vector<2x32xf32>
    %243 = arith.mulf %233, %214 : vector<2x32xf32>
    %244 = arith.addf %242, %243 : vector<2x32xf32>
    %cst_67 = arith.constant dense<0.000000e+00> : vector<2x96xf32>
    %245 = tpu.matmul %244, %31, %cst_67 {dimension_numbers = #tpu.dot_dimension_numbers<[1], [0], [0], [1], [0, 0, 1, 1], [], []>} : vector<2x32xf32>, vector<32x96xf32>, vector<2x96xf32> -> vector<2x96xf32>
    %246 = arith.addf %245, %35 : vector<2x96xf32>
    %cst_68 = arith.constant dense<0.000000e+00> : vector<2x96xf32>
    %247 = tpu.matmul %244, %25, %cst_68 {dimension_numbers = #tpu.dot_dimension_numbers<[1], [0], [0], [1], [0, 0, 1, 1], [], []>} : vector<2x32xf32>, vector<32x96xf32>, vector<2x96xf32> -> vector<2x96xf32>
    %248 = vector.extract_strided_slice %23 {offsets = [0, 0], sizes = [2, 32], strides = [1, 1]} : vector<2x96xf32> to vector<2x32xf32>
    %249 = vector.extract_strided_slice %247 {offsets = [0, 0], sizes = [2, 32], strides = [1, 1]} : vector<2x96xf32> to vector<2x32xf32>
    %250 = arith.addf %248, %249 : vector<2x32xf32>
    %251 = arith.negf %250 : vector<2x32xf32>
    %252 = math.exp %251 : vector<2x32xf32>
    %cst_69 = arith.constant 1.000000e+00 : f32
    %253 = vector.broadcast %cst_69 : f32 to vector<2x32xf32>
    %254 = arith.addf %253, %252 : vector<2x32xf32>
    %255 = arith.divf %253, %254 : vector<2x32xf32>
    %256 = vector.extract_strided_slice %23 {offsets = [0, 32], sizes = [2, 32], strides = [1, 1]} : vector<2x96xf32> to vector<2x32xf32>
    %257 = vector.extract_strided_slice %247 {offsets = [0, 32], sizes = [2, 32], strides = [1, 1]} : vector<2x96xf32> to vector<2x32xf32>
    %258 = arith.addf %256, %257 : vector<2x32xf32>
    %259 = arith.negf %258 : vector<2x32xf32>
    %260 = math.exp %259 : vector<2x32xf32>
    %cst_70 = arith.constant 1.000000e+00 : f32
    %261 = vector.broadcast %cst_70 : f32 to vector<2x32xf32>
    %262 = arith.addf %261, %260 : vector<2x32xf32>
    %263 = arith.divf %261, %262 : vector<2x32xf32>
    %264 = vector.extract_strided_slice %23 {offsets = [0, 64], sizes = [2, 32], strides = [1, 1]} : vector<2x96xf32> to vector<2x32xf32>
    %265 = vector.extract_strided_slice %247 {offsets = [0, 64], sizes = [2, 32], strides = [1, 1]} : vector<2x96xf32> to vector<2x32xf32>
    %266 = arith.addf %265, %29 : vector<2x32xf32>
    %267 = arith.mulf %255, %266 : vector<2x32xf32>
    %268 = arith.addf %264, %267 : vector<2x32xf32>
    %269 = math.tanh %268 : vector<2x32xf32>
    %cst_71 = arith.constant 1.000000e+00 : f32
    %270 = vector.broadcast %cst_71 : f32 to vector<2x32xf32>
    %271 = arith.subf %270, %263 : vector<2x32xf32>
    %272 = arith.mulf %271, %269 : vector<2x32xf32>
    %273 = arith.mulf %263, %244 : vector<2x32xf32>
    %274 = arith.addf %272, %273 : vector<2x32xf32>
    %cst_72 = arith.constant dense<0.000000e+00> : vector<2x96xf32>
    %275 = tpu.matmul %274, %31, %cst_72 {dimension_numbers = #tpu.dot_dimension_numbers<[1], [0], [0], [1], [0, 0, 1, 1], [], []>} : vector<2x32xf32>, vector<32x96xf32>, vector<2x96xf32> -> vector<2x96xf32>
    %276 = arith.addf %275, %35 : vector<2x96xf32>
    %c1_73 = arith.constant 1 : index
    %c0_74 = arith.constant 0 : index
    %c0_75 = arith.constant 0 : index
    %277 = vector.load %arg6[%c1_73, %c0_74, %c0_75] : memref<2x32x96xf32, #tpu.memory_space<vmem>>, vector<1x32x96xf32>
    %278 = vector.shape_cast %277 : vector<1x32x96xf32> to vector<32x96xf32>
    %c1_76 = arith.constant 1 : index
    %c0_77 = arith.constant 0 : index
    %c0_78 = arith.constant 0 : index
    %279 = vector.load %arg7[%c1_76, %c0_77, %c0_78] : memref<2x1x32xf32, #tpu.memory_space<vmem>>, vector<1x1x32xf32>
    %280 = vector.shape_cast %279 : vector<1x1x32xf32> to vector<1x32xf32>
    %281 = vector.shape_cast %280 : vector<1x32xf32> to vector<1x32xf32>
    %282 = vector.broadcast %281 : vector<1x32xf32> to vector<2x32xf32>
    %c0_79 = arith.constant 0 : index
    %c0_80 = arith.constant 0 : index
    %283 = vector.load %arg8[%c0_79, %c0_80] : memref<32x16xf32, #tpu.memory_space<vmem>>, vector<32x16xf32>
    %c0_81 = arith.constant 0 : index
    %c0_82 = arith.constant 0 : index
    %284 = vector.load %arg9[%c0_81, %c0_82] : memref<1x16xf32, #tpu.memory_space<vmem>>, vector<1x16xf32>
    %285 = vector.shape_cast %284 : vector<1x16xf32> to vector<1x16xf32>
    %286 = vector.broadcast %285 : vector<1x16xf32> to vector<2x16xf32>
    %cst_83 = arith.constant 0.000000e+00 : f32
    %287 = vector.broadcast %cst_83 : f32 to vector<2x32xf32>
    %cst_84 = arith.constant dense<0.000000e+00> : vector<2x96xf32>
    %288 = tpu.matmul %287, %278, %cst_84 {dimension_numbers = #tpu.dot_dimension_numbers<[1], [0], [0], [1], [0, 0, 1, 1], [], []>} : vector<2x32xf32>, vector<32x96xf32>, vector<2x96xf32> -> vector<2x96xf32>
    %289 = vector.extract_strided_slice %66 {offsets = [0, 0], sizes = [2, 32], strides = [1, 1]} : vector<2x96xf32> to vector<2x32xf32>
    %290 = vector.extract_strided_slice %288 {offsets = [0, 0], sizes = [2, 32], strides = [1, 1]} : vector<2x96xf32> to vector<2x32xf32>
    %291 = arith.addf %289, %290 : vector<2x32xf32>
    %292 = arith.negf %291 : vector<2x32xf32>
    %293 = math.exp %292 : vector<2x32xf32>
    %cst_85 = arith.constant 1.000000e+00 : f32
    %294 = vector.broadcast %cst_85 : f32 to vector<2x32xf32>
    %295 = arith.addf %294, %293 : vector<2x32xf32>
    %296 = arith.divf %294, %295 : vector<2x32xf32>
    %297 = vector.extract_strided_slice %66 {offsets = [0, 32], sizes = [2, 32], strides = [1, 1]} : vector<2x96xf32> to vector<2x32xf32>
    %298 = vector.extract_strided_slice %288 {offsets = [0, 32], sizes = [2, 32], strides = [1, 1]} : vector<2x96xf32> to vector<2x32xf32>
    %299 = arith.addf %297, %298 : vector<2x32xf32>
    %300 = arith.negf %299 : vector<2x32xf32>
    %301 = math.exp %300 : vector<2x32xf32>
    %cst_86 = arith.constant 1.000000e+00 : f32
    %302 = vector.broadcast %cst_86 : f32 to vector<2x32xf32>
    %303 = arith.addf %302, %301 : vector<2x32xf32>
    %304 = arith.divf %302, %303 : vector<2x32xf32>
    %305 = vector.extract_strided_slice %66 {offsets = [0, 64], sizes = [2, 32], strides = [1, 1]} : vector<2x96xf32> to vector<2x32xf32>
    %306 = vector.extract_strided_slice %288 {offsets = [0, 64], sizes = [2, 32], strides = [1, 1]} : vector<2x96xf32> to vector<2x32xf32>
    %307 = arith.addf %306, %282 : vector<2x32xf32>
    %308 = arith.mulf %296, %307 : vector<2x32xf32>
    %309 = arith.addf %305, %308 : vector<2x32xf32>
    %310 = math.tanh %309 : vector<2x32xf32>
    %cst_87 = arith.constant 1.000000e+00 : f32
    %311 = vector.broadcast %cst_87 : f32 to vector<2x32xf32>
    %312 = arith.subf %311, %304 : vector<2x32xf32>
    %313 = arith.mulf %312, %310 : vector<2x32xf32>
    %314 = arith.mulf %304, %287 : vector<2x32xf32>
    %315 = arith.addf %313, %314 : vector<2x32xf32>
    %cst_88 = arith.constant dense<0.000000e+00> : vector<2x16xf32>
    %316 = tpu.matmul %315, %283, %cst_88 {dimension_numbers = #tpu.dot_dimension_numbers<[1], [0], [0], [1], [0, 0, 1, 1], [], []>} : vector<2x32xf32>, vector<32x16xf32>, vector<2x16xf32> -> vector<2x16xf32>
    %317 = arith.addf %316, %286 : vector<2x16xf32>
    %cst_89 = arith.constant dense<0.000000e+00> : vector<2x96xf32>
    %318 = tpu.matmul %315, %278, %cst_89 {dimension_numbers = #tpu.dot_dimension_numbers<[1], [0], [0], [1], [0, 0, 1, 1], [], []>} : vector<2x32xf32>, vector<32x96xf32>, vector<2x96xf32> -> vector<2x96xf32>
    %319 = vector.extract_strided_slice %96 {offsets = [0, 0], sizes = [2, 32], strides = [1, 1]} : vector<2x96xf32> to vector<2x32xf32>
    %320 = vector.extract_strided_slice %318 {offsets = [0, 0], sizes = [2, 32], strides = [1, 1]} : vector<2x96xf32> to vector<2x32xf32>
    %321 = arith.addf %319, %320 : vector<2x32xf32>
    %322 = arith.negf %321 : vector<2x32xf32>
    %323 = math.exp %322 : vector<2x32xf32>
    %cst_90 = arith.constant 1.000000e+00 : f32
    %324 = vector.broadcast %cst_90 : f32 to vector<2x32xf32>
    %325 = arith.addf %324, %323 : vector<2x32xf32>
    %326 = arith.divf %324, %325 : vector<2x32xf32>
    %327 = vector.extract_strided_slice %96 {offsets = [0, 32], sizes = [2, 32], strides = [1, 1]} : vector<2x96xf32> to vector<2x32xf32>
    %328 = vector.extract_strided_slice %318 {offsets = [0, 32], sizes = [2, 32], strides = [1, 1]} : vector<2x96xf32> to vector<2x32xf32>
    %329 = arith.addf %327, %328 : vector<2x32xf32>
    %330 = arith.negf %329 : vector<2x32xf32>
    %331 = math.exp %330 : vector<2x32xf32>
    %cst_91 = arith.constant 1.000000e+00 : f32
    %332 = vector.broadcast %cst_91 : f32 to vector<2x32xf32>
    %333 = arith.addf %332, %331 : vector<2x32xf32>
    %334 = arith.divf %332, %333 : vector<2x32xf32>
    %335 = vector.extract_strided_slice %96 {offsets = [0, 64], sizes = [2, 32], strides = [1, 1]} : vector<2x96xf32> to vector<2x32xf32>
    %336 = vector.extract_strided_slice %318 {offsets = [0, 64], sizes = [2, 32], strides = [1, 1]} : vector<2x96xf32> to vector<2x32xf32>
    %337 = arith.addf %336, %282 : vector<2x32xf32>
    %338 = arith.mulf %326, %337 : vector<2x32xf32>
    %339 = arith.addf %335, %338 : vector<2x32xf32>
    %340 = math.tanh %339 : vector<2x32xf32>
    %cst_92 = arith.constant 1.000000e+00 : f32
    %341 = vector.broadcast %cst_92 : f32 to vector<2x32xf32>
    %342 = arith.subf %341, %334 : vector<2x32xf32>
    %343 = arith.mulf %342, %340 : vector<2x32xf32>
    %344 = arith.mulf %334, %315 : vector<2x32xf32>
    %345 = arith.addf %343, %344 : vector<2x32xf32>
    %cst_93 = arith.constant dense<0.000000e+00> : vector<2x16xf32>
    %346 = tpu.matmul %345, %283, %cst_93 {dimension_numbers = #tpu.dot_dimension_numbers<[1], [0], [0], [1], [0, 0, 1, 1], [], []>} : vector<2x32xf32>, vector<32x16xf32>, vector<2x16xf32> -> vector<2x16xf32>
    %347 = arith.addf %346, %286 : vector<2x16xf32>
    %cst_94 = arith.constant dense<0.000000e+00> : vector<2x96xf32>
    %348 = tpu.matmul %345, %278, %cst_94 {dimension_numbers = #tpu.dot_dimension_numbers<[1], [0], [0], [1], [0, 0, 1, 1], [], []>} : vector<2x32xf32>, vector<32x96xf32>, vector<2x96xf32> -> vector<2x96xf32>
    %349 = vector.extract_strided_slice %126 {offsets = [0, 0], sizes = [2, 32], strides = [1, 1]} : vector<2x96xf32> to vector<2x32xf32>
    %350 = vector.extract_strided_slice %348 {offsets = [0, 0], sizes = [2, 32], strides = [1, 1]} : vector<2x96xf32> to vector<2x32xf32>
    %351 = arith.addf %349, %350 : vector<2x32xf32>
    %352 = arith.negf %351 : vector<2x32xf32>
    %353 = math.exp %352 : vector<2x32xf32>
    %cst_95 = arith.constant 1.000000e+00 : f32
    %354 = vector.broadcast %cst_95 : f32 to vector<2x32xf32>
    %355 = arith.addf %354, %353 : vector<2x32xf32>
    %356 = arith.divf %354, %355 : vector<2x32xf32>
    %357 = vector.extract_strided_slice %126 {offsets = [0, 32], sizes = [2, 32], strides = [1, 1]} : vector<2x96xf32> to vector<2x32xf32>
    %358 = vector.extract_strided_slice %348 {offsets = [0, 32], sizes = [2, 32], strides = [1, 1]} : vector<2x96xf32> to vector<2x32xf32>
    %359 = arith.addf %357, %358 : vector<2x32xf32>
    %360 = arith.negf %359 : vector<2x32xf32>
    %361 = math.exp %360 : vector<2x32xf32>
    %cst_96 = arith.constant 1.000000e+00 : f32
    %362 = vector.broadcast %cst_96 : f32 to vector<2x32xf32>
    %363 = arith.addf %362, %361 : vector<2x32xf32>
    %364 = arith.divf %362, %363 : vector<2x32xf32>
    %365 = vector.extract_strided_slice %126 {offsets = [0, 64], sizes = [2, 32], strides = [1, 1]} : vector<2x96xf32> to vector<2x32xf32>
    %366 = vector.extract_strided_slice %348 {offsets = [0, 64], sizes = [2, 32], strides = [1, 1]} : vector<2x96xf32> to vector<2x32xf32>
    %367 = arith.addf %366, %282 : vector<2x32xf32>
    %368 = arith.mulf %356, %367 : vector<2x32xf32>
    %369 = arith.addf %365, %368 : vector<2x32xf32>
    %370 = math.tanh %369 : vector<2x32xf32>
    %cst_97 = arith.constant 1.000000e+00 : f32
    %371 = vector.broadcast %cst_97 : f32 to vector<2x32xf32>
    %372 = arith.subf %371, %364 : vector<2x32xf32>
    %373 = arith.mulf %372, %370 : vector<2x32xf32>
    %374 = arith.mulf %364, %345 : vector<2x32xf32>
    %375 = arith.addf %373, %374 : vector<2x32xf32>
    %cst_98 = arith.constant dense<0.000000e+00> : vector<2x16xf32>
    %376 = tpu.matmul %375, %283, %cst_98 {dimension_numbers = #tpu.dot_dimension_numbers<[1], [0], [0], [1], [0, 0, 1, 1], [], []>} : vector<2x32xf32>, vector<32x16xf32>, vector<2x16xf32> -> vector<2x16xf32>
    %377 = arith.addf %376, %286 : vector<2x16xf32>
    %cst_99 = arith.constant dense<0.000000e+00> : vector<2x96xf32>
    %378 = tpu.matmul %375, %278, %cst_99 {dimension_numbers = #tpu.dot_dimension_numbers<[1], [0], [0], [1], [0, 0, 1, 1], [], []>} : vector<2x32xf32>, vector<32x96xf32>, vector<2x96xf32> -> vector<2x96xf32>
    %379 = vector.extract_strided_slice %156 {offsets = [0, 0], sizes = [2, 32], strides = [1, 1]} : vector<2x96xf32> to vector<2x32xf32>
    %380 = vector.extract_strided_slice %378 {offsets = [0, 0], sizes = [2, 32], strides = [1, 1]} : vector<2x96xf32> to vector<2x32xf32>
    %381 = arith.addf %379, %380 : vector<2x32xf32>
    %382 = arith.negf %381 : vector<2x32xf32>
    %383 = math.exp %382 : vector<2x32xf32>
    %cst_100 = arith.constant 1.000000e+00 : f32
    %384 = vector.broadcast %cst_100 : f32 to vector<2x32xf32>
    %385 = arith.addf %384, %383 : vector<2x32xf32>
    %386 = arith.divf %384, %385 : vector<2x32xf32>
    %387 = vector.extract_strided_slice %156 {offsets = [0, 32], sizes = [2, 32], strides = [1, 1]} : vector<2x96xf32> to vector<2x32xf32>
    %388 = vector.extract_strided_slice %378 {offsets = [0, 32], sizes = [2, 32], strides = [1, 1]} : vector<2x96xf32> to vector<2x32xf32>
    %389 = arith.addf %387, %388 : vector<2x32xf32>
    %390 = arith.negf %389 : vector<2x32xf32>
    %391 = math.exp %390 : vector<2x32xf32>
    %cst_101 = arith.constant 1.000000e+00 : f32
    %392 = vector.broadcast %cst_101 : f32 to vector<2x32xf32>
    %393 = arith.addf %392, %391 : vector<2x32xf32>
    %394 = arith.divf %392, %393 : vector<2x32xf32>
    %395 = vector.extract_strided_slice %156 {offsets = [0, 64], sizes = [2, 32], strides = [1, 1]} : vector<2x96xf32> to vector<2x32xf32>
    %396 = vector.extract_strided_slice %378 {offsets = [0, 64], sizes = [2, 32], strides = [1, 1]} : vector<2x96xf32> to vector<2x32xf32>
    %397 = arith.addf %396, %282 : vector<2x32xf32>
    %398 = arith.mulf %386, %397 : vector<2x32xf32>
    %399 = arith.addf %395, %398 : vector<2x32xf32>
    %400 = math.tanh %399 : vector<2x32xf32>
    %cst_102 = arith.constant 1.000000e+00 : f32
    %401 = vector.broadcast %cst_102 : f32 to vector<2x32xf32>
    %402 = arith.subf %401, %394 : vector<2x32xf32>
    %403 = arith.mulf %402, %400 : vector<2x32xf32>
    %404 = arith.mulf %394, %375 : vector<2x32xf32>
    %405 = arith.addf %403, %404 : vector<2x32xf32>
    %cst_103 = arith.constant dense<0.000000e+00> : vector<2x16xf32>
    %406 = tpu.matmul %405, %283, %cst_103 {dimension_numbers = #tpu.dot_dimension_numbers<[1], [0], [0], [1], [0, 0, 1, 1], [], []>} : vector<2x32xf32>, vector<32x16xf32>, vector<2x16xf32> -> vector<2x16xf32>
    %407 = arith.addf %406, %286 : vector<2x16xf32>
    %cst_104 = arith.constant dense<0.000000e+00> : vector<2x96xf32>
    %408 = tpu.matmul %405, %278, %cst_104 {dimension_numbers = #tpu.dot_dimension_numbers<[1], [0], [0], [1], [0, 0, 1, 1], [], []>} : vector<2x32xf32>, vector<32x96xf32>, vector<2x96xf32> -> vector<2x96xf32>
    %409 = vector.extract_strided_slice %186 {offsets = [0, 0], sizes = [2, 32], strides = [1, 1]} : vector<2x96xf32> to vector<2x32xf32>
    %410 = vector.extract_strided_slice %408 {offsets = [0, 0], sizes = [2, 32], strides = [1, 1]} : vector<2x96xf32> to vector<2x32xf32>
    %411 = arith.addf %409, %410 : vector<2x32xf32>
    %412 = arith.negf %411 : vector<2x32xf32>
    %413 = math.exp %412 : vector<2x32xf32>
    %cst_105 = arith.constant 1.000000e+00 : f32
    %414 = vector.broadcast %cst_105 : f32 to vector<2x32xf32>
    %415 = arith.addf %414, %413 : vector<2x32xf32>
    %416 = arith.divf %414, %415 : vector<2x32xf32>
    %417 = vector.extract_strided_slice %186 {offsets = [0, 32], sizes = [2, 32], strides = [1, 1]} : vector<2x96xf32> to vector<2x32xf32>
    %418 = vector.extract_strided_slice %408 {offsets = [0, 32], sizes = [2, 32], strides = [1, 1]} : vector<2x96xf32> to vector<2x32xf32>
    %419 = arith.addf %417, %418 : vector<2x32xf32>
    %420 = arith.negf %419 : vector<2x32xf32>
    %421 = math.exp %420 : vector<2x32xf32>
    %cst_106 = arith.constant 1.000000e+00 : f32
    %422 = vector.broadcast %cst_106 : f32 to vector<2x32xf32>
    %423 = arith.addf %422, %421 : vector<2x32xf32>
    %424 = arith.divf %422, %423 : vector<2x32xf32>
    %425 = vector.extract_strided_slice %186 {offsets = [0, 64], sizes = [2, 32], strides = [1, 1]} : vector<2x96xf32> to vector<2x32xf32>
    %426 = vector.extract_strided_slice %408 {offsets = [0, 64], sizes = [2, 32], strides = [1, 1]} : vector<2x96xf32> to vector<2x32xf32>
    %427 = arith.addf %426, %282 : vector<2x32xf32>
    %428 = arith.mulf %416, %427 : vector<2x32xf32>
    %429 = arith.addf %425, %428 : vector<2x32xf32>
    %430 = math.tanh %429 : vector<2x32xf32>
    %cst_107 = arith.constant 1.000000e+00 : f32
    %431 = vector.broadcast %cst_107 : f32 to vector<2x32xf32>
    %432 = arith.subf %431, %424 : vector<2x32xf32>
    %433 = arith.mulf %432, %430 : vector<2x32xf32>
    %434 = arith.mulf %424, %405 : vector<2x32xf32>
    %435 = arith.addf %433, %434 : vector<2x32xf32>
    %cst_108 = arith.constant dense<0.000000e+00> : vector<2x16xf32>
    %436 = tpu.matmul %435, %283, %cst_108 {dimension_numbers = #tpu.dot_dimension_numbers<[1], [0], [0], [1], [0, 0, 1, 1], [], []>} : vector<2x32xf32>, vector<32x16xf32>, vector<2x16xf32> -> vector<2x16xf32>
    %437 = arith.addf %436, %286 : vector<2x16xf32>
    %cst_109 = arith.constant dense<0.000000e+00> : vector<2x96xf32>
    %438 = tpu.matmul %435, %278, %cst_109 {dimension_numbers = #tpu.dot_dimension_numbers<[1], [0], [0], [1], [0, 0, 1, 1], [], []>} : vector<2x32xf32>, vector<32x96xf32>, vector<2x96xf32> -> vector<2x96xf32>
    %439 = vector.extract_strided_slice %216 {offsets = [0, 0], sizes = [2, 32], strides = [1, 1]} : vector<2x96xf32> to vector<2x32xf32>
    %440 = vector.extract_strided_slice %438 {offsets = [0, 0], sizes = [2, 32], strides = [1, 1]} : vector<2x96xf32> to vector<2x32xf32>
    %441 = arith.addf %439, %440 : vector<2x32xf32>
    %442 = arith.negf %441 : vector<2x32xf32>
    %443 = math.exp %442 : vector<2x32xf32>
    %cst_110 = arith.constant 1.000000e+00 : f32
    %444 = vector.broadcast %cst_110 : f32 to vector<2x32xf32>
    %445 = arith.addf %444, %443 : vector<2x32xf32>
    %446 = arith.divf %444, %445 : vector<2x32xf32>
    %447 = vector.extract_strided_slice %216 {offsets = [0, 32], sizes = [2, 32], strides = [1, 1]} : vector<2x96xf32> to vector<2x32xf32>
    %448 = vector.extract_strided_slice %438 {offsets = [0, 32], sizes = [2, 32], strides = [1, 1]} : vector<2x96xf32> to vector<2x32xf32>
    %449 = arith.addf %447, %448 : vector<2x32xf32>
    %450 = arith.negf %449 : vector<2x32xf32>
    %451 = math.exp %450 : vector<2x32xf32>
    %cst_111 = arith.constant 1.000000e+00 : f32
    %452 = vector.broadcast %cst_111 : f32 to vector<2x32xf32>
    %453 = arith.addf %452, %451 : vector<2x32xf32>
    %454 = arith.divf %452, %453 : vector<2x32xf32>
    %455 = vector.extract_strided_slice %216 {offsets = [0, 64], sizes = [2, 32], strides = [1, 1]} : vector<2x96xf32> to vector<2x32xf32>
    %456 = vector.extract_strided_slice %438 {offsets = [0, 64], sizes = [2, 32], strides = [1, 1]} : vector<2x96xf32> to vector<2x32xf32>
    %457 = arith.addf %456, %282 : vector<2x32xf32>
    %458 = arith.mulf %446, %457 : vector<2x32xf32>
    %459 = arith.addf %455, %458 : vector<2x32xf32>
    %460 = math.tanh %459 : vector<2x32xf32>
    %cst_112 = arith.constant 1.000000e+00 : f32
    %461 = vector.broadcast %cst_112 : f32 to vector<2x32xf32>
    %462 = arith.subf %461, %454 : vector<2x32xf32>
    %463 = arith.mulf %462, %460 : vector<2x32xf32>
    %464 = arith.mulf %454, %435 : vector<2x32xf32>
    %465 = arith.addf %463, %464 : vector<2x32xf32>
    %cst_113 = arith.constant dense<0.000000e+00> : vector<2x16xf32>
    %466 = tpu.matmul %465, %283, %cst_113 {dimension_numbers = #tpu.dot_dimension_numbers<[1], [0], [0], [1], [0, 0, 1, 1], [], []>} : vector<2x32xf32>, vector<32x16xf32>, vector<2x16xf32> -> vector<2x16xf32>
    %467 = arith.addf %466, %286 : vector<2x16xf32>
    %cst_114 = arith.constant dense<0.000000e+00> : vector<2x96xf32>
    %468 = tpu.matmul %465, %278, %cst_114 {dimension_numbers = #tpu.dot_dimension_numbers<[1], [0], [0], [1], [0, 0, 1, 1], [], []>} : vector<2x32xf32>, vector<32x96xf32>, vector<2x96xf32> -> vector<2x96xf32>
    %469 = vector.extract_strided_slice %246 {offsets = [0, 0], sizes = [2, 32], strides = [1, 1]} : vector<2x96xf32> to vector<2x32xf32>
    %470 = vector.extract_strided_slice %468 {offsets = [0, 0], sizes = [2, 32], strides = [1, 1]} : vector<2x96xf32> to vector<2x32xf32>
    %471 = arith.addf %469, %470 : vector<2x32xf32>
    %472 = arith.negf %471 : vector<2x32xf32>
    %473 = math.exp %472 : vector<2x32xf32>
    %cst_115 = arith.constant 1.000000e+00 : f32
    %474 = vector.broadcast %cst_115 : f32 to vector<2x32xf32>
    %475 = arith.addf %474, %473 : vector<2x32xf32>
    %476 = arith.divf %474, %475 : vector<2x32xf32>
    %477 = vector.extract_strided_slice %246 {offsets = [0, 32], sizes = [2, 32], strides = [1, 1]} : vector<2x96xf32> to vector<2x32xf32>
    %478 = vector.extract_strided_slice %468 {offsets = [0, 32], sizes = [2, 32], strides = [1, 1]} : vector<2x96xf32> to vector<2x32xf32>
    %479 = arith.addf %477, %478 : vector<2x32xf32>
    %480 = arith.negf %479 : vector<2x32xf32>
    %481 = math.exp %480 : vector<2x32xf32>
    %cst_116 = arith.constant 1.000000e+00 : f32
    %482 = vector.broadcast %cst_116 : f32 to vector<2x32xf32>
    %483 = arith.addf %482, %481 : vector<2x32xf32>
    %484 = arith.divf %482, %483 : vector<2x32xf32>
    %485 = vector.extract_strided_slice %246 {offsets = [0, 64], sizes = [2, 32], strides = [1, 1]} : vector<2x96xf32> to vector<2x32xf32>
    %486 = vector.extract_strided_slice %468 {offsets = [0, 64], sizes = [2, 32], strides = [1, 1]} : vector<2x96xf32> to vector<2x32xf32>
    %487 = arith.addf %486, %282 : vector<2x32xf32>
    %488 = arith.mulf %476, %487 : vector<2x32xf32>
    %489 = arith.addf %485, %488 : vector<2x32xf32>
    %490 = math.tanh %489 : vector<2x32xf32>
    %cst_117 = arith.constant 1.000000e+00 : f32
    %491 = vector.broadcast %cst_117 : f32 to vector<2x32xf32>
    %492 = arith.subf %491, %484 : vector<2x32xf32>
    %493 = arith.mulf %492, %490 : vector<2x32xf32>
    %494 = arith.mulf %484, %465 : vector<2x32xf32>
    %495 = arith.addf %493, %494 : vector<2x32xf32>
    %cst_118 = arith.constant dense<0.000000e+00> : vector<2x16xf32>
    %496 = tpu.matmul %495, %283, %cst_118 {dimension_numbers = #tpu.dot_dimension_numbers<[1], [0], [0], [1], [0, 0, 1, 1], [], []>} : vector<2x32xf32>, vector<32x16xf32>, vector<2x16xf32> -> vector<2x16xf32>
    %497 = arith.addf %496, %286 : vector<2x16xf32>
    %cst_119 = arith.constant dense<0.000000e+00> : vector<2x96xf32>
    %498 = tpu.matmul %495, %278, %cst_119 {dimension_numbers = #tpu.dot_dimension_numbers<[1], [0], [0], [1], [0, 0, 1, 1], [], []>} : vector<2x32xf32>, vector<32x96xf32>, vector<2x96xf32> -> vector<2x96xf32>
    %499 = vector.extract_strided_slice %276 {offsets = [0, 0], sizes = [2, 32], strides = [1, 1]} : vector<2x96xf32> to vector<2x32xf32>
    %500 = vector.extract_strided_slice %498 {offsets = [0, 0], sizes = [2, 32], strides = [1, 1]} : vector<2x96xf32> to vector<2x32xf32>
    %501 = arith.addf %499, %500 : vector<2x32xf32>
    %502 = arith.negf %501 : vector<2x32xf32>
    %503 = math.exp %502 : vector<2x32xf32>
    %cst_120 = arith.constant 1.000000e+00 : f32
    %504 = vector.broadcast %cst_120 : f32 to vector<2x32xf32>
    %505 = arith.addf %504, %503 : vector<2x32xf32>
    %506 = arith.divf %504, %505 : vector<2x32xf32>
    %507 = vector.extract_strided_slice %276 {offsets = [0, 32], sizes = [2, 32], strides = [1, 1]} : vector<2x96xf32> to vector<2x32xf32>
    %508 = vector.extract_strided_slice %498 {offsets = [0, 32], sizes = [2, 32], strides = [1, 1]} : vector<2x96xf32> to vector<2x32xf32>
    %509 = arith.addf %507, %508 : vector<2x32xf32>
    %510 = arith.negf %509 : vector<2x32xf32>
    %511 = math.exp %510 : vector<2x32xf32>
    %cst_121 = arith.constant 1.000000e+00 : f32
    %512 = vector.broadcast %cst_121 : f32 to vector<2x32xf32>
    %513 = arith.addf %512, %511 : vector<2x32xf32>
    %514 = arith.divf %512, %513 : vector<2x32xf32>
    %515 = vector.extract_strided_slice %276 {offsets = [0, 64], sizes = [2, 32], strides = [1, 1]} : vector<2x96xf32> to vector<2x32xf32>
    %516 = vector.extract_strided_slice %498 {offsets = [0, 64], sizes = [2, 32], strides = [1, 1]} : vector<2x96xf32> to vector<2x32xf32>
    %517 = arith.addf %516, %282 : vector<2x32xf32>
    %518 = arith.mulf %506, %517 : vector<2x32xf32>
    %519 = arith.addf %515, %518 : vector<2x32xf32>
    %520 = math.tanh %519 : vector<2x32xf32>
    %cst_122 = arith.constant 1.000000e+00 : f32
    %521 = vector.broadcast %cst_122 : f32 to vector<2x32xf32>
    %522 = arith.subf %521, %514 : vector<2x32xf32>
    %523 = arith.mulf %522, %520 : vector<2x32xf32>
    %524 = arith.mulf %514, %495 : vector<2x32xf32>
    %525 = arith.addf %523, %524 : vector<2x32xf32>
    %cst_123 = arith.constant dense<0.000000e+00> : vector<2x16xf32>
    %526 = tpu.matmul %525, %283, %cst_123 {dimension_numbers = #tpu.dot_dimension_numbers<[1], [0], [0], [1], [0, 0, 1, 1], [], []>} : vector<2x32xf32>, vector<32x16xf32>, vector<2x16xf32> -> vector<2x16xf32>
    %527 = arith.addf %526, %286 : vector<2x16xf32>
    %528 = tpu.concatenate %317, %347, %377, %407, %437, %467, %497, %527 in 1 : vector<2x16xf32>, vector<2x16xf32>, vector<2x16xf32>, vector<2x16xf32>, vector<2x16xf32>, vector<2x16xf32>, vector<2x16xf32>, vector<2x16xf32> -> vector<2x128xf32>
    %c0_124 = arith.constant 0 : index
    %c0_125 = arith.constant 0 : index
    %529 = vector.load %arg10[%c0_124, %c0_125] : memref<2x128xf32, #tpu.memory_space<vmem>>, vector<2x128xf32>
    tpu.vector_store %arg10[%c0_124, %c0_125], %528 {strides = array<i32>} : memref<2x128xf32, #tpu.memory_space<vmem>>, vector<2x128xf32>,
    return
  }
  func.func @transform_0(%arg0: i32) -> (i32, i32) {
    %c0_i32 = arith.constant 0 : i32
    %c0_i32_0 = arith.constant 0 : i32
    %c0_i32_1 = arith.constant 0 : i32
    return %c0_i32, %c0_i32_0 : i32, i32
  }
  func.func @transform_1(%arg0: i32) -> (i32, i32, i32) {
    %c0_i32 = arith.constant 0 : i32
    %c0_i32_0 = arith.constant 0 : i32
    %c0_i32_1 = arith.constant 0 : i32
    %c0_i32_2 = arith.constant 0 : i32
    return %c0_i32, %c0_i32_0, %c0_i32_1 : i32, i32, i32
  }
  func.func @transform_2(%arg0: i32) -> (i32, i32, i32) {
    %c0_i32 = arith.constant 0 : i32
    %c0_i32_0 = arith.constant 0 : i32
    %c0_i32_1 = arith.constant 0 : i32
    %c0_i32_2 = arith.constant 0 : i32
    return %c0_i32, %c0_i32_0, %c0_i32_1 : i32, i32, i32
  }
  func.func @transform_3(%arg0: i32) -> (i32, i32, i32) {
    %c0_i32 = arith.constant 0 : i32
    %c0_i32_0 = arith.constant 0 : i32
    %c0_i32_1 = arith.constant 0 : i32
    %c0_i32_2 = arith.constant 0 : i32
    return %c0_i32, %c0_i32_0, %c0_i32_1 : i32, i32, i32
  }
  func.func @transform_4(%arg0: i32) -> (i32, i32, i32) {
    %c0_i32 = arith.constant 0 : i32
    %c0_i32_0 = arith.constant 0 : i32
    %c0_i32_1 = arith.constant 0 : i32
    %c0_i32_2 = arith.constant 0 : i32
    return %c0_i32, %c0_i32_0, %c0_i32_1 : i32, i32, i32
  }
  func.func @transform_5(%arg0: i32) -> (i32, i32, i32) {
    %c0_i32 = arith.constant 0 : i32
    %c0_i32_0 = arith.constant 0 : i32
    %c0_i32_1 = arith.constant 0 : i32
    %c0_i32_2 = arith.constant 0 : i32
    return %c0_i32, %c0_i32_0, %c0_i32_1 : i32, i32, i32
  }
  func.func @transform_6(%arg0: i32) -> (i32, i32, i32) {
    %c0_i32 = arith.constant 0 : i32
    %c0_i32_0 = arith.constant 0 : i32
    %c0_i32_1 = arith.constant 0 : i32
    %c0_i32_2 = arith.constant 0 : i32
    return %c0_i32, %c0_i32_0, %c0_i32_1 : i32, i32, i32
  }
  func.func @transform_7(%arg0: i32) -> (i32, i32) {
    %c0_i32 = arith.constant 0 : i32
    %c0_i32_0 = arith.constant 0 : i32
    %c0_i32_1 = arith.constant 0 : i32
    return %c0_i32, %c0_i32_0 : i32, i32
  }
  func.func @transform_8(%arg0: i32) -> (i32, i32) {
    %c0_i32 = arith.constant 0 : i32
    %c0_i32_0 = arith.constant 0 : i32
    %c0_i32_1 = arith.constant 0 : i32
    return %c0_i32, %c0_i32_0 : i32, i32
  }
  func.func @transform_9(%arg0: i32) -> (i32, i32) {
    %c0_i32 = arith.constant 0 : i32
    %c0_i32_0 = arith.constant 0 : i32
    %c0_i32_1 = arith.constant 0 : i32
    return %c0_i32, %c0_i32_0 : i32, i32
  }
}

</mosaic_0001>

<llo_original>
// kernel: decoder_forward.1
$region0: #{decoder_forward.1}
  #allocation0 [shape = 'u32[]', space=smem, size = 0x4, offset = 0x4, fixed_abs, tag = 'smem constant byte address 0x4 - core index']
  #allocation1 [shape = 'u32[144,128]{1,0:T(1,128)}', space=vmem, size = 0x12000, scoped, tag = 'internal scratch']
  %s0 = inlined_call_operand.vmem [shape: f32[2,32], index: 0, kind: input, shape index: {}]
  %s1 = inlined_call_operand.vmem [shape: f32[2,32,32], index: 1, kind: input, shape index: {}]
  %s2 = inlined_call_operand.vmem [shape: f32[2,1,32], index: 2, kind: input, shape index: {}]
  %s3 = inlined_call_operand.vmem [shape: f32[2,32,96], index: 3, kind: input, shape index: {}]
  %s4 = inlined_call_operand.vmem [shape: f32[2,1,96], index: 4, kind: input, shape index: {}]
  %s5 = inlined_call_operand.vmem [shape: f32[2,32,96], index: 5, kind: input, shape index: {}]
  %s6 = inlined_call_operand.vmem [shape: f32[2,1,32], index: 6, kind: input, shape index: {}]
  %s7 = inlined_call_operand.vmem [shape: f32[32,16], index: 7, kind: input, shape index: {}]
  %s8 = inlined_call_operand.vmem [shape: f32[1,16], index: 8, kind: input, shape index: {}]
  %s9 = inlined_call_operand.vmem [shape: f32[2,128], index: 9, kind: output, shape index: {}]
  %s10 = sld [smem:[#allocation0]]
  $region46: #{decoder_forward.1} parent=0
    _
  %s12 = ssub.s32 1, %s10
  %s13 = scalar_select 0, %s12, %s10
  // Predicated region
  $region2: #{decoder_forward.1} parent=0 // pred_check
    _
  $region3: #{decoder_forward.1} parent=0 // pred_check_branch
    %15 = sbr.rel (0) target = $region5
  $region4: #{decoder_forward.1} parent=0 // pred_region
    _
  $region5: #{decoder_forward.1} parent=0 // pred_fallthru
    _
  // Predicated region
  $region6: #{decoder_forward.1} parent=0 // pred_check
    _
  $region7: #{decoder_forward.1} parent=0 // pred_check_branch
    %17 = sbr.rel (0) target = $region9
  $region8: #{decoder_forward.1} parent=0 // pred_region
    _
  $region9: #{decoder_forward.1} parent=0 // pred_fallthru
    _
  // Predicated region
  $region10: #{decoder_forward.1} parent=0 // pred_check
    _
  $region11: #{decoder_forward.1} parent=0 // pred_check_branch
    %19 = sbr.rel (0) target = $region13
  $region12: #{decoder_forward.1} parent=0 // pred_region
    _
  $region13: #{decoder_forward.1} parent=0 // pred_fallthru
    _
  // Predicated region
  $region14: #{decoder_forward.1} parent=0 // pred_check
    _
  $region15: #{decoder_forward.1} parent=0 // pred_check_branch
    %21 = sbr.rel (0) target = $region17
  $region16: #{decoder_forward.1} parent=0 // pred_region
    _
  $region17: #{decoder_forward.1} parent=0 // pred_fallthru
    _
  // Predicated region
  $region18: #{decoder_forward.1} parent=0 // pred_check
    _
  $region19: #{decoder_forward.1} parent=0 // pred_check_branch
    %23 = sbr.rel (0) target = $region21
  $region20: #{decoder_forward.1} parent=0 // pred_region
    _
  $region21: #{decoder_forward.1} parent=0 // pred_fallthru
    _
  // Predicated region
  $region22: #{decoder_forward.1} parent=0 // pred_check
    _
  $region23: #{decoder_forward.1} parent=0 // pred_check_branch
    %25 = sbr.rel (0) target = $region25
  $region24: #{decoder_forward.1} parent=0 // pred_region
    _
  $region25: #{decoder_forward.1} parent=0 // pred_fallthru
    _
  // Predicated region
  $region26: #{decoder_forward.1} parent=0 // pred_check
    _
  $region27: #{decoder_forward.1} parent=0 // pred_check_branch
    %27 = sbr.rel (0) target = $region29
  $region28: #{decoder_forward.1} parent=0 // pred_region
    _
  $region29: #{decoder_forward.1} parent=0 // pred_fallthru
    _
  // Predicated region
  $region30: #{decoder_forward.1} parent=0 // pred_check
    _
  $region31: #{decoder_forward.1} parent=0 // pred_check_branch
    %29 = sbr.rel (0) target = $region33
  $region32: #{decoder_forward.1} parent=0 // pred_region
    _
  $region33: #{decoder_forward.1} parent=0 // pred_fallthru
    _
  // Predicated region
  $region34: #{decoder_forward.1} parent=0 // pred_check
    _
  $region35: #{decoder_forward.1} parent=0 // pred_check_branch
    %31 = sbr.rel (0) target = $region37
  $region36: #{decoder_forward.1} parent=0 // pred_region
    _
  $region37: #{decoder_forward.1} parent=0 // pred_fallthru
    _
  %v32 = vld [vmem:[%s0] sm:$0x3]
  %v33 = vld [vmem:[%s1] sm:$0xff]
  %v34 = vld [vmem:[%s1 + $0x8] sm:$0xff]
  %v35 = vld [vmem:[%s1 + $0x10] sm:$0xff]
  %v36 = vld [vmem:[%s1 + $0x18] sm:$0xff]
  %v37 = vld [vmem:[%s2] sm:$0x1]
  %v39 = vlaneseq
  %v40 = vshrl.u32 %v39, 7
  %v41 = vsub.s32 0, %v40
  %v42 = vrot.slane %v37, %v41
  %vm44 = vcmask 261120
  %v46 = vsel %vm44, %v32, 0
  %48 = vmatprep.subr.mxu0 0.0
  %49 = vmatpush1.msra.mxu0 %v33
  %50 = vmatprep.subr.mxu0 0.0
  %51 = vmatpush1.msra.mxu0 %v34
  %52 = vmatprep.subr.mxu0 0.0
  %53 = vmatpush1.msra.mxu0 %v35
  %54 = vmatprep.subr.mxu0 0.0
  %55 = vmatpush1.msra.mxu0 %v36
  %56 = vmatprep.subr.mxu0 0.0
  %57 = vmatpush1.msra.mxu0 0.0
  %58 = vmatprep.subr.mxu0 0.0
  %59 = vmatpush1.msra.mxu0 0.0
  %60 = vmatprep.subr.mxu0 0.0
  %61 = vmatpush1.msra.mxu0 0.0
  %62 = vmatprep.subr.mxu0 0.0
  %63 = vmatpush1.msra.mxu0 0.0
  %64 = vmatprep.subr.mxu0 0.0
  %65 = vmatpush1.msra.mxu0 0.0
  %66 = vmatprep.subr.mxu0 0.0
  %67 = vmatpush1.msra.mxu0 0.0
  %68 = vmatprep.subr.mxu0 0.0
  %69 = vmatpush1.msra.mxu0 0.0
  %70 = vmatprep.subr.mxu0 0.0
  %71 = vmatpush1.msra.mxu0 0.0
  %72 = vmatprep.subr.mxu0 0.0
  %73 = vmatpush1.msra.mxu0 0.0
  %74 = vmatprep.subr.mxu0 0.0
  %75 = vmatpush1.msra.mxu0 0.0
  %76 = vmatprep.subr.mxu0 0.0
  %77 = vmatpush1.msra.mxu0 0.0
  %78 = vmatprep.subr.mxu0 0.0
  %79 = vmatpush1.msra.mxu0 0.0
  %80 = vmatprep.subr.mxu0 0.0
  %81 = vmatpush1.msra.mxu0 0.0
  %82 = vmatprep.subr.mxu0 0.0
  %83 = vmatpush1.msra.mxu0 0.0
  %84 = vmatprep.subr.mxu0 0.0
  %85 = vmatpush1.msra.mxu0 0.0
  %86 = vmatprep.subr.mxu0 0.0
  %87 = vmatpush1.msra.mxu0 0.0
  %88 = vmatprep.subr.mxu0 0.0
  %89 = vmatpush1.msra.mxu0 0.0
  %90 = vmatprep.subr.mxu0 0.0
  %91 = vmatpush1.msra.mxu0 0.0
  %92 = vmatprep.subr.mxu0 0.0
  %93 = vmatpush1.msra.mxu0 0.0
  %94 = vmatprep.subr.mxu0 0.0
  %95 = vmatpush1.msra.mxu0 0.0
  %96 = vmatprep.subr.mxu0 0.0
  %97 = vmatpush1.msra.mxu0 0.0
  %98 = vmatprep.subr.mxu0 0.0
  %99 = vmatpush1.msra.mxu0 0.0
  %100 = vmatprep.subr.mxu0 0.0
  %101 = vmatpush1.msra.mxu0 0.0
  %102 = vmatprep.subr.mxu0 0.0
  %103 = vmatpush1.msra.mxu0 0.0
  %104 = vmatprep.subr.mxu0 0.0
  %105 = vmatpush1.msra.mxu0 0.0
  %106 = vmatprep.subr.mxu0 0.0
  %107 = vmatpush1.msra.mxu0 0.0
  %108 = vmatprep.subr.mxu0 0.0
  %109 = vmatpush1.msra.mxu0 0.0
  %110 = vmatprep.subr.mxu0 0.0
  %111 = vmatpush1.msra.mxu0 0.0
  %112 = vmatprep.mubr.f32.mxu0 0.0
  %113 = vmatmul.mubr.f32.gmra.mrb[0].mxu0 %v46
  %v114 = vpop.f32.mrb[0].mxu0
  %v115 = vadd.f32 %v42, %v114
  %v116 = vpop.f32.mrb[0].mxu0
  %117 = vdwg.mxu0
  %v118 = vtanh.pop %v115
  %s119 = scalar_lea.vmem %s1, 32
  %v120 = vld [vmem:[%s119] sm:$0xff]
  %v121 = vld [vmem:[%s119 + $0x8] sm:$0xff]
  %v122 = vld [vmem:[%s119 + $0x10] sm:$0xff]
  %v123 = vld [vmem:[%s119 + $0x18] sm:$0xff]
  %s124 = scalar_lea.vmem %s2, 1
  %v125 = vld [vmem:[%s124] sm:$0x1]
  %v127 = vlaneseq
  %v128 = vshrl.u32 %v127, 7
  %v129 = vsub.s32 0, %v128
  %v130 = vrot.slane %v125, %v129
  %v133 = vsel %vm44, %v118, 0
  %135 = vmatprep.subr.mxu0 0.0
  %136 = vmatpush1.msra.mxu0 %v120
  %137 = vmatprep.subr.mxu0 0.0
  %138 = vmatpush1.msra.mxu0 %v121
  %139 = vmatprep.subr.mxu0 0.0
  %140 = vmatpush1.msra.mxu0 %v122
  %141 = vmatprep.subr.mxu0 0.0
  %142 = vmatpush1.msra.mxu0 %v123
  %143 = vmatprep.subr.mxu0 0.0
  %144 = vmatpush1.msra.mxu0 0.0
  %145 = vmatprep.subr.mxu0 0.0
  %146 = vmatpush1.msra.mxu0 0.0
  %147 = vmatprep.subr.mxu0 0.0
  %148 = vmatpush1.msra.mxu0 0.0
  %149 = vmatprep.subr.mxu0 0.0
  %150 = vmatpush1.msra.mxu0 0.0
  %151 = vmatprep.subr.mxu0 0.0
  %152 = vmatpush1.msra.mxu0 0.0
  %153 = vmatprep.subr.mxu0 0.0
  %154 = vmatpush1.msra.mxu0 0.0
  %155 = vmatprep.subr.mxu0 0.0
  %156 = vmatpush1.msra.mxu0 0.0
  %157 = vmatprep.subr.mxu0 0.0
  %158 = vmatpush1.msra.mxu0 0.0
  %159 = vmatprep.subr.mxu0 0.0
  %160 = vmatpush1.msra.mxu0 0.0
  %161 = vmatprep.subr.mxu0 0.0
  %162 = vmatpush1.msra.mxu0 0.0
  %163 = vmatprep.subr.mxu0 0.0
  %164 = vmatpush1.msra.mxu0 0.0
  %165 = vmatprep.subr.mxu0 0.0
  %166 = vmatpush1.msra.mxu0 0.0
  %167 = vmatprep.subr.mxu0 0.0
  %168 = vmatpush1.msra.mxu0 0.0
  %169 = vmatprep.subr.mxu0 0.0
  %170 = vmatpush1.msra.mxu0 0.0
  %171 = vmatprep.subr.mxu0 0.0
  %172 = vmatpush1.msra.mxu0 0.0
  %173 = vmatprep.subr.mxu0 0.0
  %174 = vmatpush1.msra.mxu0 0.0
  %175 = vmatprep.subr.mxu0 0.0
  %176 = vmatpush1.msra.mxu0 0.0
  %177 = vmatprep.subr.mxu0 0.0
  %178 = vmatpush1.msra.mxu0 0.0
  %179 = vmatprep.subr.mxu0 0.0
  %180 = vmatpush1.msra.mxu0 0.0
  %181 = vmatprep.subr.mxu0 0.0
  %182 = vmatpush1.msra.mxu0 0.0
  %183 = vmatprep.subr.mxu0 0.0
  %184 = vmatpush1.msra.mxu0 0.0
  %185 = vmatprep.subr.mxu0 0.0
  %186 = vmatpush1.msra.mxu0 0.0
  %187 = vmatprep.subr.mxu0 0.0
  %188 = vmatpush1.msra.mxu0 0.0
  %189 = vmatprep.subr.mxu0 0.0
  %190 = vmatpush1.msra.mxu0 0.0
  %191 = vmatprep.subr.mxu0 0.0
  %192 = vmatpush1.msra.mxu0 0.0
  %193 = vmatprep.subr.mxu0 0.0
  %194 = vmatpush1.msra.mxu0 0.0
  %195 = vmatprep.subr.mxu0 0.0
  %196 = vmatpush1.msra.mxu0 0.0
  %197 = vmatprep.subr.mxu0 0.0
  %198 = vmatpush1.msra.mxu0 0.0
  %199 = vmatprep.mubr.f32.mxu0 0.0
  %200 = vmatmul.mubr.f32.gmra.mrb[0].mxu0 %v133
  %v201 = vpop.f32.mrb[0].mxu0
  %v202 = vadd.f32 %v130, %v201
  %v203 = vpop.f32.mrb[0].mxu0
  %204 = vdwg.mxu0
  %v205 = vtanh.pop %v202
  %v206 = vld [vmem:[%s3] sm:$0xff]
  %v207 = vld [vmem:[%s3 + $0x8] sm:$0xff]
  %v208 = vld [vmem:[%s3 + $0x10] sm:$0xff]
  %v209 = vld [vmem:[%s3 + $0x18] sm:$0xff]
  %v210 = vld [vmem:[%s4] sm:$0x1]
  %v212 = vlaneseq
  %v213 = vshrl.u32 %v212, 7
  %v214 = vsub.s32 0, %v213
  %v215 = vrot.slane %v210, %v214
  %v218 = vsel %vm44, %v205, 0
  %220 = vmatprep.subr.mxu0 0.0
  %221 = vmatpush1.msra.mxu0 %v206
  %222 = vmatprep.subr.mxu0 0.0
  %223 = vmatpush1.msra.mxu0 %v207
  %224 = vmatprep.subr.mxu0 0.0
  %225 = vmatpush1.msra.mxu0 %v208
  %226 = vmatprep.subr.mxu0 0.0
  %227 = vmatpush1.msra.mxu0 %v209
  %228 = vmatprep.subr.mxu0 0.0
  %229 = vmatpush1.msra.mxu0 0.0
  %230 = vmatprep.subr.mxu0 0.0
  %231 = vmatpush1.msra.mxu0 0.0
  %232 = vmatprep.subr.mxu0 0.0
  %233 = vmatpush1.msra.mxu0 0.0
  %234 = vmatprep.subr.mxu0 0.0
  %235 = vmatpush1.msra.mxu0 0.0
  %236 = vmatprep.subr.mxu0 0.0
  %237 = vmatpush1.msra.mxu0 0.0
  %238 = vmatprep.subr.mxu0 0.0
  %239 = vmatpush1.msra.mxu0 0.0
  %240 = vmatprep.subr.mxu0 0.0
  %241 = vmatpush1.msra.mxu0 0.0
  %242 = vmatprep.subr.mxu0 0.0
  %243 = vmatpush1.msra.mxu0 0.0
  %244 = vmatprep.subr.mxu0 0.0
  %245 = vmatpush1.msra.mxu0 0.0
  %246 = vmatprep.subr.mxu0 0.0
  %247 = vmatpush1.msra.mxu0 0.0
  %248 = vmatprep.subr.mxu0 0.0
  %249 = vmatpush1.msra.mxu0 0.0
  %250 = vmatprep.subr.mxu0 0.0
  %251 = vmatpush1.msra.mxu0 0.0
  %252 = vmatprep.subr.mxu0 0.0
  %253 = vmatpush1.msra.mxu0 0.0
  %254 = vmatprep.subr.mxu0 0.0
  %255 = vmatpush1.msra.mxu0 0.0
  %256 = vmatprep.subr.mxu0 0.0
  %257 = vmatpush1.msra.mxu0 0.0
  %258 = vmatprep.subr.mxu0 0.0
  %259 = vmatpush1.msra.mxu0 0.0
  %260 = vmatprep.subr.mxu0 0.0
  %261 = vmatpush1.msra.mxu0 0.0
  %262 = vmatprep.subr.mxu0 0.0
  %263 = vmatpush1.msra.mxu0 0.0
  %264 = vmatprep.subr.mxu0 0.0
  %265 = vmatpush1.msra.mxu0 0.0
  %266 = vmatprep.subr.mxu0 0.0
  %267 = vmatpush1.msra.mxu0 0.0
  %268 = vmatprep.subr.mxu0 0.0
  %269 = vmatpush1.msra.mxu0 0.0
  %270 = vmatprep.subr.mxu0 0.0
  %271 = vmatpush1.msra.mxu0 0.0
  %272 = vmatprep.subr.mxu0 0.0
  %273 = vmatpush1.msra.mxu0 0.0
  %274 = vmatprep.subr.mxu0 0.0
  %275 = vmatpush1.msra.mxu0 0.0
  %276 = vmatprep.subr.mxu0 0.0
  %277 = vmatpush1.msra.mxu0 0.0
  %278 = vmatprep.subr.mxu0 0.0
  %279 = vmatpush1.msra.mxu0 0.0
  %280 = vmatprep.subr.mxu0 0.0
  %281 = vmatpush1.msra.mxu0 0.0
  %282 = vmatprep.subr.mxu0 0.0
  %283 = vmatpush1.msra.mxu0 0.0
  %284 = vmatprep.mubr.f32.mxu0 0.0
  %285 = vmatmul.mubr.f32.gmra.mrb[0].mxu0 %v218
  %v286 = vpop.f32.mrb[0].mxu0
  %v287 = vadd.f32 %v215, %v286
  %v288 = vpop.f32.mrb[0].mxu0
  %289 = vdwg.mxu0
  %v290 = vld [vmem:[%s5] sm:$0xff]
  %v291 = vld [vmem:[%s5 + $0x8] sm:$0xff]
  %v292 = vld [vmem:[%s5 + $0x10] sm:$0xff]
  %v293 = vld [vmem:[%s5 + $0x18] sm:$0xff]
  %v294 = vld [vmem:[%s6] sm:$0x1]
  %v296 = vlaneseq
  %v297 = vshrl.u32 %v296, 7
  %v298 = vsub.s32 0, %v297
  %v299 = vrot.slane %v294, %v298
  %s300 = scalar_lea.vmem %s3, 32
  %v301 = vld [vmem:[%s300] sm:$0xff]
  %v302 = vld [vmem:[%s300 + $0x8] sm:$0xff]
  %v303 = vld [vmem:[%s300 + $0x10] sm:$0xff]
  %v304 = vld [vmem:[%s300 + $0x18] sm:$0xff]
  %s305 = scalar_lea.vmem %s4, 1
  %v306 = vld [vmem:[%s305] sm:$0x1]
  %v308 = vlaneseq
  %v309 = vshrl.u32 %v308, 7
  %v310 = vsub.s32 0, %v309
  %v311 = vrot.slane %v306, %v310
  %v314 = vsel %vm44, 0.0, 0
  %316 = vmatprep.subr.mxu0 0.0
  %317 = vmatpush1.msra.mxu0 %v290
  %318 = vmatprep.subr.mxu0 0.0
  %319 = vmatpush1.msra.mxu0 %v291
  %320 = vmatprep.subr.mxu0 0.0
  %321 = vmatpush1.msra.mxu0 %v292
  %322 = vmatprep.subr.mxu0 0.0
  %323 = vmatpush1.msra.mxu0 %v293
  %324 = vmatprep.subr.mxu0 0.0
  %325 = vmatpush1.msra.mxu0 0.0
  %326 = vmatprep.subr.mxu0 0.0
  %327 = vmatpush1.msra.mxu0 0.0
  %328 = vmatprep.subr.mxu0 0.0
  %329 = vmatpush1.msra.mxu0 0.0
  %330 = vmatprep.subr.mxu0 0.0
  %331 = vmatpush1.msra.mxu0 0.0
  %332 = vmatprep.subr.mxu0 0.0
  %333 = vmatpush1.msra.mxu0 0.0
  %334 = vmatprep.subr.mxu0 0.0
  %335 = vmatpush1.msra.mxu0 0.0
  %336 = vmatprep.subr.mxu0 0.0
  %337 = vmatpush1.msra.mxu0 0.0
  %338 = vmatprep.subr.mxu0 0.0
  %339 = vmatpush1.msra.mxu0 0.0
  %340 = vmatprep.subr.mxu0 0.0
  %341 = vmatpush1.msra.mxu0 0.0
  %342 = vmatprep.subr.mxu0 0.0
  %343 = vmatpush1.msra.mxu0 0.0
  %344 = vmatprep.subr.mxu0 0.0
  %345 = vmatpush1.msra.mxu0 0.0
  %346 = vmatprep.subr.mxu0 0.0
  %347 = vmatpush1.msra.mxu0 0.0
  %348 = vmatprep.subr.mxu0 0.0
  %349 = vmatpush1.msra.mxu0 0.0
  %350 = vmatprep.subr.mxu0 0.0
  %351 = vmatpush1.msra.mxu0 0.0
  %352 = vmatprep.subr.mxu0 0.0
  %353 = vmatpush1.msra.mxu0 0.0
  %354 = vmatprep.subr.mxu0 0.0
  %355 = vmatpush1.msra.mxu0 0.0
  %356 = vmatprep.subr.mxu0 0.0
  %357 = vmatpush1.msra.mxu0 0.0
  %358 = vmatprep.subr.mxu0 0.0
  %359 = vmatpush1.msra.mxu0 0.0
  %360 = vmatprep.subr.mxu0 0.0
  %361 = vmatpush1.msra.mxu0 0.0
  %362 = vmatprep.subr.mxu0 0.0
  %363 = vmatpush1.msra.mxu0 0.0
  %364 = vmatprep.subr.mxu0 0.0
  %365 = vmatpush1.msra.mxu0 0.0
  %366 = vmatprep.subr.mxu0 0.0
  %367 = vmatpush1.msra.mxu0 0.0
  %368 = vmatprep.subr.mxu0 0.0
  %369 = vmatpush1.msra.mxu0 0.0
  %370 = vmatprep.subr.mxu0 0.0
  %371 = vmatpush1.msra.mxu0 0.0
  %372 = vmatprep.subr.mxu0 0.0
  %373 = vmatpush1.msra.mxu0 0.0
  %374 = vmatprep.subr.mxu0 0.0
  %375 = vmatpush1.msra.mxu0 0.0
  %376 = vmatprep.subr.mxu0 0.0
  %377 = vmatpush1.msra.mxu0 0.0
  %378 = vmatprep.subr.mxu0 0.0
  %379 = vmatpush1.msra.mxu0 0.0
  %380 = vmatprep.mubr.f32.mxu0 0.0
  %381 = vmatmul.mubr.f32.gmra.mrb[0].mxu0 %v314
  %v382 = vpop.f32.mrb[0].mxu0
  %v383 = vadd.f32 0.0, %v382
  %v384 = vpop.f32.mrb[0].mxu0
  %385 = vdwg.mxu0
  %v386 = vadd.f32 %v287, %v383
  %v387 = vxor.u32 %v386, 2147483648
  %v388 = vmul.f32 %v387, 1.442695
  %v389 = vpow.pop %v388
  %v390 = vadd.f32 %v389, 1.0
  %v391 = vrcp.pop %v390
  %v392 = vmul.f32 1.0, %v391
  %393 = vrot.lane.b32.xlu0 %v299, 64
  %v394 = vpop.permute.xlu0 %393
  %v396 = vadd.f32 %v383, %v394
  %398 = vrot.lane.b32.xlu0 %v396, 64
  %v399 = vpop.permute.xlu0 %398
  %v401 = vmul.f32 %v392, %v399
  %403 = vrot.lane.b32.xlu0 %v401, 64
  %v404 = vpop.permute.xlu0 %403
  %v406 = vadd.f32 %v287, %v404
  %v407 = vtanh.pop %v406
  %v408 = vsub.f32 1.0, %v392
  %410 = vrot.lane.b32.xlu0 %v407, 96
  %v411 = vpop.permute.xlu0 %410
  %v413 = vmul.f32 %v408, %v411
  %v414 = vmul.f32 %v392, 0.0
  %v415 = vadd.f32 %v413, %v414
  %417 = vrot.lane.b32.xlu0 %v415, 96
  %v418 = vpop.permute.xlu0 %417
  %v419 = vsel %vm44, %v418, 0
  %421 = vmatprep.subr.mxu0 0.0
  %422 = vmatpush1.msra.mxu0 %v301
  %423 = vmatprep.subr.mxu0 0.0
  %424 = vmatpush1.msra.mxu0 %v302
  %425 = vmatprep.subr.mxu0 0.0
  %426 = vmatpush1.msra.mxu0 %v303
  %427 = vmatprep.subr.mxu0 0.0
  %428 = vmatpush1.msra.mxu0 %v304
  %429 = vmatprep.subr.mxu0 0.0
  %430 = vmatpush1.msra.mxu0 0.0
  %431 = vmatprep.subr.mxu0 0.0
  %432 = vmatpush1.msra.mxu0 0.0
  %433 = vmatprep.subr.mxu0 0.0
  %434 = vmatpush1.msra.mxu0 0.0
  %435 = vmatprep.subr.mxu0 0.0
  %436 = vmatpush1.msra.mxu0 0.0
  %437 = vmatprep.subr.mxu0 0.0
  %438 = vmatpush1.msra.mxu0 0.0
  %439 = vmatprep.subr.mxu0 0.0
  %440 = vmatpush1.msra.mxu0 0.0
  %441 = vmatprep.subr.mxu0 0.0
  %442 = vmatpush1.msra.mxu0 0.0
  %443 = vmatprep.subr.mxu0 0.0
  %444 = vmatpush1.msra.mxu0 0.0
  %445 = vmatprep.subr.mxu0 0.0
  %446 = vmatpush1.msra.mxu0 0.0
  %447 = vmatprep.subr.mxu0 0.0
  %448 = vmatpush1.msra.mxu0 0.0
  %449 = vmatprep.subr.mxu0 0.0
  %450 = vmatpush1.msra.mxu0 0.0
  %451 = vmatprep.subr.mxu0 0.0
  %452 = vmatpush1.msra.mxu0 0.0
  %453 = vmatprep.subr.mxu0 0.0
  %454 = vmatpush1.msra.mxu0 0.0
  %455 = vmatprep.subr.mxu0 0.0
  %456 = vmatpush1.msra.mxu0 0.0
  %457 = vmatprep.subr.mxu0 0.0
  %458 = vmatpush1.msra.mxu0 0.0
  %459 = vmatprep.subr.mxu0 0.0
  %460 = vmatpush1.msra.mxu0 0.0
  %461 = vmatprep.subr.mxu0 0.0
  %462 = vmatpush1.msra.mxu0 0.0
  %463 = vmatprep.subr.mxu0 0.0
  %464 = vmatpush1.msra.mxu0 0.0
  %465 = vmatprep.subr.mxu0 0.0
  %466 = vmatpush1.msra.mxu0 0.0
  %467 = vmatprep.subr.mxu0 0.0
  %468 = vmatpush1.msra.mxu0 0.0
  %469 = vmatprep.subr.mxu0 0.0
  %470 = vmatpush1.msra.mxu0 0.0
  %471 = vmatprep.subr.mxu0 0.0
  %472 = vmatpush1.msra.mxu0 0.0
  %473 = vmatprep.subr.mxu0 0.0
  %474 = vmatpush1.msra.mxu0 0.0
  %475 = vmatprep.subr.mxu0 0.0
  %476 = vmatpush1.msra.mxu0 0.0
  %477 = vmatprep.subr.mxu0 0.0
  %478 = vmatpush1.msra.mxu0 0.0
  %479 = vmatprep.subr.mxu0 0.0
  %480 = vmatpush1.msra.mxu0 0.0
  %481 = vmatprep.subr.mxu0 0.0
  %482 = vmatpush1.msra.mxu0 0.0
  %483 = vmatprep.subr.mxu0 0.0
  %484 = vmatpush1.msra.mxu0 0.0
  %485 = vmatprep.mubr.f32.mxu0 0.0
  %486 = vmatmul.mubr.f32.gmra.mrb[0].mxu0 %v419
  %v487 = vpop.f32.mrb[0].mxu0
  %v488 = vadd.f32 %v311, %v487
  %v489 = vpop.f32.mrb[0].mxu0
  %490 = vdwg.mxu0
  %491 = vmatprep.subr.mxu0 0.0
  %492 = vmatpush1.msra.mxu0 %v290
  %493 = vmatprep.subr.mxu0 0.0
  %494 = vmatpush1.msra.mxu0 %v291
  %495 = vmatprep.subr.mxu0 0.0
  %496 = vmatpush1.msra.mxu0 %v292
  %497 = vmatprep.subr.mxu0 0.0
  %498 = vmatpush1.msra.mxu0 %v293
  %499 = vmatprep.subr.mxu0 0.0
  %500 = vmatpush1.msra.mxu0 0.0
  %501 = vmatprep.subr.mxu0 0.0
  %502 = vmatpush1.msra.mxu0 0.0
  %503 = vmatprep.subr.mxu0 0.0
  %504 = vmatpush1.msra.mxu0 0.0
  %505 = vmatprep.subr.mxu0 0.0
  %506 = vmatpush1.msra.mxu0 0.0
  %507 = vmatprep.subr.mxu0 0.0
  %508 = vmatpush1.msra.mxu0 0.0
  %509 = vmatprep.subr.mxu0 0.0
  %510 = vmatpush1.msra.mxu0 0.0
  %511 = vmatprep.subr.mxu0 0.0
  %512 = vmatpush1.msra.mxu0 0.0
  %513 = vmatprep.subr.mxu0 0.0
  %514 = vmatpush1.msra.mxu0 0.0
  %515 = vmatprep.subr.mxu0 0.0
  %516 = vmatpush1.msra.mxu0 0.0
  %517 = vmatprep.subr.mxu0 0.0
  %518 = vmatpush1.msra.mxu0 0.0
  %519 = vmatprep.subr.mxu0 0.0
  %520 = vmatpush1.msra.mxu0 0.0
  %521 = vmatprep.subr.mxu0 0.0
  %522 = vmatpush1.msra.mxu0 0.0
  %523 = vmatprep.subr.mxu0 0.0
  %524 = vmatpush1.msra.mxu0 0.0
  %525 = vmatprep.subr.mxu0 0.0
  %526 = vmatpush1.msra.mxu0 0.0
  %527 = vmatprep.subr.mxu0 0.0
  %528 = vmatpush1.msra.mxu0 0.0
  %529 = vmatprep.subr.mxu0 0.0
  %530 = vmatpush1.msra.mxu0 0.0
  %531 = vmatprep.subr.mxu0 0.0
  %532 = vmatpush1.msra.mxu0 0.0
  %533 = vmatprep.subr.mxu0 0.0
  %534 = vmatpush1.msra.mxu0 0.0
  %535 = vmatprep.subr.mxu0 0.0
  %536 = vmatpush1.msra.mxu0 0.0
  %537 = vmatprep.subr.mxu0 0.0
  %538 = vmatpush1.msra.mxu0 0.0
  %539 = vmatprep.subr.mxu0 0.0
  %540 = vmatpush1.msra.mxu0 0.0
  %541 = vmatprep.subr.mxu0 0.0
  %542 = vmatpush1.msra.mxu0 0.0
  %543 = vmatprep.subr.mxu0 0.0
  %544 = vmatpush1.msra.mxu0 0.0
  %545 = vmatprep.subr.mxu0 0.0
  %546 = vmatpush1.msra.mxu0 0.0
  %547 = vmatprep.subr.mxu0 0.0
  %548 = vmatpush1.msra.mxu0 0.0
  %549 = vmatprep.subr.mxu0 0.0
  %550 = vmatpush1.msra.mxu0 0.0
  %551 = vmatprep.subr.mxu0 0.0
  %552 = vmatpush1.msra.mxu0 0.0
  %553 = vmatprep.subr.mxu0 0.0
  %554 = vmatpush1.msra.mxu0 0.0
  %555 = vmatprep.mubr.f32.mxu0 0.0
  %556 = vmatmul.mubr.f32.gmra.mrb[0].mxu0 %v419
  %v557 = vpop.f32.mrb[0].mxu0
  %v558 = vadd.f32 0.0, %v557
  %v559 = vpop.f32.mrb[0].mxu0
  %560 = vdwg.mxu0
  %v561 = vadd.f32 %v287, %v558
  %v562 = vxor.u32 %v561, 2147483648
  %v563 = vmul.f32 %v562, 1.442695
  %v564 = vpow.pop %v563
  %v565 = vadd.f32 %v564, 1.0
  %v566 = vrcp.pop %v565
  %v567 = vmul.f32 1.0, %v566
  %v568 = vadd.f32 %v558, %v394
  %570 = vrot.lane.b32.xlu0 %v568, 64
  %v571 = vpop.permute.xlu0 %570
  %v573 = vmul.f32 %v567, %v571
  %575 = vrot.lane.b32.xlu0 %v573, 64
  %v576 = vpop.permute.xlu0 %575
  %v578 = vadd.f32 %v287, %v576
  %v579 = vtanh.pop %v578
  %v580 = vsub.f32 1.0, %v567
  %582 = vrot.lane.b32.xlu0 %v579, 96
  %v583 = vpop.permute.xlu0 %582
  %v585 = vmul.f32 %v580, %v583
  %v586 = vmul.f32 %v567, %v415
  %v587 = vadd.f32 %v585, %v586
  %589 = vrot.lane.b32.xlu0 %v587, 96
  %v590 = vpop.permute.xlu0 %589
  %v591 = vsel %vm44, %v590, 0
  %593 = vmatprep.subr.mxu0 0.0
  %594 = vmatpush1.msra.mxu0 %v301
  %595 = vmatprep.subr.mxu0 0.0
  %596 = vmatpush1.msra.mxu0 %v302
  %597 = vmatprep.subr.mxu0 0.0
  %598 = vmatpush1.msra.mxu0 %v303
  %599 = vmatprep.subr.mxu0 0.0
  %600 = vmatpush1.msra.mxu0 %v304
  %601 = vmatprep.subr.mxu0 0.0
  %602 = vmatpush1.msra.mxu0 0.0
  %603 = vmatprep.subr.mxu0 0.0
  %604 = vmatpush1.msra.mxu0 0.0
  %605 = vmatprep.subr.mxu0 0.0
  %606 = vmatpush1.msra.mxu0 0.0
  %607 = vmatprep.subr.mxu0 0.0
  %608 = vmatpush1.msra.mxu0 0.0
  %609 = vmatprep.subr.mxu0 0.0
  %610 = vmatpush1.msra.mxu0 0.0
  %611 = vmatprep.subr.mxu0 0.0
  %612 = vmatpush1.msra.mxu0 0.0
  %613 = vmatprep.subr.mxu0 0.0
  %614 = vmatpush1.msra.mxu0 0.0
  %615 = vmatprep.subr.mxu0 0.0
  %616 = vmatpush1.msra.mxu0 0.0
  %617 = vmatprep.subr.mxu0 0.0
  %618 = vmatpush1.msra.mxu0 0.0
  %619 = vmatprep.subr.mxu0 0.0
  %620 = vmatpush1.msra.mxu0 0.0
  %621 = vmatprep.subr.mxu0 0.0
  %622 = vmatpush1.msra.mxu0 0.0
  %623 = vmatprep.subr.mxu0 0.0
  %624 = vmatpush1.msra.mxu0 0.0
  %625 = vmatprep.subr.mxu0 0.0
  %626 = vmatpush1.msra.mxu0 0.0
  %627 = vmatprep.subr.mxu0 0.0
  %628 = vmatpush1.msra.mxu0 0.0
  %629 = vmatprep.subr.mxu0 0.0
  %630 = vmatpush1.msra.mxu0 0.0
  %631 = vmatprep.subr.mxu0 0.0
  %632 = vmatpush1.msra.mxu0 0.0
  %633 = vmatprep.subr.mxu0 0.0
  %634 = vmatpush1.msra.mxu0 0.0
  %635 = vmatprep.subr.mxu0 0.0
  %636 = vmatpush1.msra.mxu0 0.0
  %637 = vmatprep.subr.mxu0 0.0
  %638 = vmatpush1.msra.mxu0 0.0
  %639 = vmatprep.subr.mxu0 0.0
  %640 = vmatpush1.msra.mxu0 0.0
  %641 = vmatprep.subr.mxu0 0.0
  %642 = vmatpush1.msra.mxu0 0.0
  %643 = vmatprep.subr.mxu0 0.0
  %644 = vmatpush1.msra.mxu0 0.0
  %645 = vmatprep.subr.mxu0 0.0
  %646 = vmatpush1.msra.mxu0 0.0
  %647 = vmatprep.subr.mxu0 0.0
  %648 = vmatpush1.msra.mxu0 0.0
  %649 = vmatprep.subr.mxu0 0.0
  %650 = vmatpush1.msra.mxu0 0.0
  %651 = vmatprep.subr.mxu0 0.0
  %652 = vmatpush1.msra.mxu0 0.0
  %653 = vmatprep.subr.mxu0 0.0
  %654 = vmatpush1.msra.mxu0 0.0
  %655 = vmatprep.subr.mxu0 0.0
  %656 = vmatpush1.msra.mxu0 0.0
  %657 = vmatprep.mubr.f32.mxu0 0.0
  %658 = vmatmul.mubr.f32.gmra.mrb[0].mxu0 %v591
  %v659 = vpop.f32.mrb[0].mxu0
  %v660 = vadd.f32 %v311, %v659
  %v661 = vpop.f32.mrb[0].mxu0
  %662 = vdwg.mxu0
  %663 = vmatprep.subr.mxu0 0.0
  %664 = vmatpush1.msra.mxu0 %v290
  %665 = vmatprep.subr.mxu0 0.0
  %666 = vmatpush1.msra.mxu0 %v291
  %667 = vmatprep.subr.mxu0 0.0
  %668 = vmatpush1.msra.mxu0 %v292
  %669 = vmatprep.subr.mxu0 0.0
  %670 = vmatpush1.msra.mxu0 %v293
  %671 = vmatprep.subr.mxu0 0.0
  %672 = vmatpush1.msra.mxu0 0.0
  %673 = vmatprep.subr.mxu0 0.0
  %674 = vmatpush1.msra.mxu0 0.0
  %675 = vmatprep.subr.mxu0 0.0
  %676 = vmatpush1.msra.mxu0 0.0
  %677 = vmatprep.subr.mxu0 0.0
  %678 = vmatpush1.msra.mxu0 0.0
  %679 = vmatprep.subr.mxu0 0.0
  %680 = vmatpush1.msra.mxu0 0.0
  %681 = vmatprep.subr.mxu0 0.0
  %682 = vmatpush1.msra.mxu0 0.0
  %683 = vmatprep.subr.mxu0 0.0
  %684 = vmatpush1.msra.mxu0 0.0
  %685 = vmatprep.subr.mxu0 0.0
  %686 = vmatpush1.msra.mxu0 0.0
  %687 = vmatprep.subr.mxu0 0.0
  %688 = vmatpush1.msra.mxu0 0.0
  %689 = vmatprep.subr.mxu0 0.0
  %690 = vmatpush1.msra.mxu0 0.0
  %691 = vmatprep.subr.mxu0 0.0
  %692 = vmatpush1.msra.mxu0 0.0
  %693 = vmatprep.subr.mxu0 0.0
  %694 = vmatpush1.msra.mxu0 0.0
  %695 = vmatprep.subr.mxu0 0.0
  %696 = vmatpush1.msra.mxu0 0.0
  %697 = vmatprep.subr.mxu0 0.0
  %698 = vmatpush1.msra.mxu0 0.0
  %699 = vmatprep.subr.mxu0 0.0
  %700 = vmatpush1.msra.mxu0 0.0
  %701 = vmatprep.subr.mxu0 0.0
  %702 = vmatpush1.msra.mxu0 0.0
  %703 = vmatprep.subr.mxu0 0.0
  %704 = vmatpush1.msra.mxu0 0.0
  %705 = vmatprep.subr.mxu0 0.0
  %706 = vmatpush1.msra.mxu0 0.0
  %707 = vmatprep.subr.mxu0 0.0
  %708 = vmatpush1.msra.mxu0 0.0
  %709 = vmatprep.subr.mxu0 0.0
  %710 = vmatpush1.msra.mxu0 0.0
  %711 = vmatprep.subr.mxu0 0.0
  %712 = vmatpush1.msra.mxu0 0.0
  %713 = vmatprep.subr.mxu0 0.0
  %714 = vmatpush1.msra.mxu0 0.0
  %715 = vmatprep.subr.mxu0 0.0
  %716 = vmatpush1.msra.mxu0 0.0
  %717 = vmatprep.subr.mxu0 0.0
  %718 = vmatpush1.msra.mxu0 0.0
  %719 = vmatprep.subr.mxu0 0.0
  %720 = vmatpush1.msra.mxu0 0.0
  %721 = vmatprep.subr.mxu0 0.0
  %722 = vmatpush1.msra.mxu0 0.0
  %723 = vmatprep.subr.mxu0 0.0
  %724 = vmatpush1.msra.mxu0 0.0
  %725 = vmatprep.subr.mxu0 0.0
  %726 = vmatpush1.msra.mxu0 0.0
  %727 = vmatprep.mubr.f32.mxu0 0.0
  %728 = vmatmul.mubr.f32.gmra.mrb[0].mxu0 %v591
  %v729 = vpop.f32.mrb[0].mxu0
  %v730 = vadd.f32 0.0, %v729
  %v731 = vpop.f32.mrb[0].mxu0
  %732 = vdwg.mxu0
  %v733 = vadd.f32 %v287, %v730
  %v734 = vxor.u32 %v733, 2147483648
  %v735 = vmul.f32 %v734, 1.442695
  %v736 = vpow.pop %v735
  %v737 = vadd.f32 %v736, 1.0
  %v738 = vrcp.pop %v737
  %v739 = vmul.f32 1.0, %v738
  %v740 = vadd.f32 %v730, %v394
  %742 = vrot.lane.b32.xlu0 %v740, 64
  %v743 = vpop.permute.xlu0 %742
  %v745 = vmul.f32 %v739, %v743
  %747 = vrot.lane.b32.xlu0 %v745, 64
  %v748 = vpop.permute.xlu0 %747
  %v750 = vadd.f32 %v287, %v748
  %v751 = vtanh.pop %v750
  %v752 = vsub.f32 1.0, %v739
  %754 = vrot.lane.b32.xlu0 %v751, 96
  %v755 = vpop.permute.xlu0 %754
  %v757 = vmul.f32 %v752, %v755
  %v758 = vmul.f32 %v739, %v587
  %v759 = vadd.f32 %v757, %v758
  %761 = vrot.lane.b32.xlu0 %v759, 96
  %v762 = vpop.permute.xlu0 %761
  %v763 = vsel %vm44, %v762, 0
  %765 = vmatprep.subr.mxu0 0.0
  %766 = vmatpush1.msra.mxu0 %v301
  %767 = vmatprep.subr.mxu0 0.0
  %768 = vmatpush1.msra.mxu0 %v302
  %769 = vmatprep.subr.mxu0 0.0
  %770 = vmatpush1.msra.mxu0 %v303
  %771 = vmatprep.subr.mxu0 0.0
  %772 = vmatpush1.msra.mxu0 %v304
  %773 = vmatprep.subr.mxu0 0.0
  %774 = vmatpush1.msra.mxu0 0.0
  %775 = vmatprep.subr.mxu0 0.0
  %776 = vmatpush1.msra.mxu0 0.0
  %777 = vmatprep.subr.mxu0 0.0
  %778 = vmatpush1.msra.mxu0 0.0
  %779 = vmatprep.subr.mxu0 0.0
  %780 = vmatpush1.msra.mxu0 0.0
  %781 = vmatprep.subr.mxu0 0.0
  %782 = vmatpush1.msra.mxu0 0.0
  %783 = vmatprep.subr.mxu0 0.0
  %784 = vmatpush1.msra.mxu0 0.0
  %785 = vmatprep.subr.mxu0 0.0
  %786 = vmatpush1.msra.mxu0 0.0
  %787 = vmatprep.subr.mxu0 0.0
  %788 = vmatpush1.msra.mxu0 0.0
  %789 = vmatprep.subr.mxu0 0.0
  %790 = vmatpush1.msra.mxu0 0.0
  %791 = vmatprep.subr.mxu0 0.0
  %792 = vmatpush1.msra.mxu0 0.0
  %793 = vmatprep.subr.mxu0 0.0
  %794 = vmatpush1.msra.mxu0 0.0
  %795 = vmatprep.subr.mxu0 0.0
  %796 = vmatpush1.msra.mxu0 0.0
  %797 = vmatprep.subr.mxu0 0.0
  %798 = vmatpush1.msra.mxu0 0.0
  %799 = vmatprep.subr.mxu0 0.0
  %800 = vmatpush1.msra.mxu0 0.0
  %801 = vmatprep.subr.mxu0 0.0
  %802 = vmatpush1.msra.mxu0 0.0
  %803 = vmatprep.subr.mxu0 0.0
  %804 = vmatpush1.msra.mxu0 0.0
  %805 = vmatprep.subr.mxu0 0.0
  %806 = vmatpush1.msra.mxu0 0.0
  %807 = vmatprep.subr.mxu0 0.0
  %808 = vmatpush1.msra.mxu0 0.0
  %809 = vmatprep.subr.mxu0 0.0
  %810 = vmatpush1.msra.mxu0 0.0
  %811 = vmatprep.subr.mxu0 0.0
  %812 = vmatpush1.msra.mxu0 0.0
  %813 = vmatprep.subr.mxu0 0.0
  %814 = vmatpush1.msra.mxu0 0.0
  %815 = vmatprep.subr.mxu0 0.0
  %816 = vmatpush1.msra.mxu0 0.0
  %817 = vmatprep.subr.mxu0 0.0
  %818 = vmatpush1.msra.mxu0 0.0
  %819 = vmatprep.subr.mxu0 0.0
  %820 = vmatpush1.msra.mxu0 0.0
  %821 = vmatprep.subr.mxu0 0.0
  %822 = vmatpush1.msra.mxu0 0.0
  %823 = vmatprep.subr.mxu0 0.0
  %824 = vmatpush1.msra.mxu0 0.0
  %825 = vmatprep.subr.mxu0 0.0
  %826 = vmatpush1.msra.mxu0 0.0
  %827 = vmatprep.subr.mxu0 0.0
  %828 = vmatpush1.msra.mxu0 0.0
  %829 = vmatprep.mubr.f32.mxu0 0.0
  %830 = vmatmul.mubr.f32.gmra.mrb[0].mxu0 %v763
  %v831 = vpop.f32.mrb[0].mxu0
  %v832 = vadd.f32 %v311, %v831
  %v833 = vpop.f32.mrb[0].mxu0
  %834 = vdwg.mxu0
  %835 = vmatprep.subr.mxu0 0.0
  %836 = vmatpush1.msra.mxu0 %v290
  %837 = vmatprep.subr.mxu0 0.0
  %838 = vmatpush1.msra.mxu0 %v291
  %839 = vmatprep.subr.mxu0 0.0
  %840 = vmatpush1.msra.mxu0 %v292
  %841 = vmatprep.subr.mxu0 0.0
  %842 = vmatpush1.msra.mxu0 %v293
  %843 = vmatprep.subr.mxu0 0.0
  %844 = vmatpush1.msra.mxu0 0.0
  %845 = vmatprep.subr.mxu0 0.0
  %846 = vmatpush1.msra.mxu0 0.0
  %847 = vmatprep.subr.mxu0 0.0
  %848 = vmatpush1.msra.mxu0 0.0
  %849 = vmatprep.subr.mxu0 0.0
  %850 = vmatpush1.msra.mxu0 0.0
  %851 = vmatprep.subr.mxu0 0.0
  %852 = vmatpush1.msra.mxu0 0.0
  %853 = vmatprep.subr.mxu0 0.0
  %854 = vmatpush1.msra.mxu0 0.0
  %855 = vmatprep.subr.mxu0 0.0
  %856 = vmatpush1.msra.mxu0 0.0
  %857 = vmatprep.subr.mxu0 0.0
  %858 = vmatpush1.msra.mxu0 0.0
  %859 = vmatprep.subr.mxu0 0.0
  %860 = vmatpush1.msra.mxu0 0.0
  %861 = vmatprep.subr.mxu0 0.0
  %862 = vmatpush1.msra.mxu0 0.0
  %863 = vmatprep.subr.mxu0 0.0
  %864 = vmatpush1.msra.mxu0 0.0
  %865 = vmatprep.subr.mxu0 0.0
  %866 = vmatpush1.msra.mxu0 0.0
  %867 = vmatprep.subr.mxu0 0.0
  %868 = vmatpush1.msra.mxu0 0.0
  %869 = vmatprep.subr.mxu0 0.0
  %870 = vmatpush1.msra.mxu0 0.0
  %871 = vmatprep.subr.mxu0 0.0
  %872 = vmatpush1.msra.mxu0 0.0
  %873 = vmatprep.subr.mxu0 0.0
  %874 = vmatpush1.msra.mxu0 0.0
  %875 = vmatprep.subr.mxu0 0.0
  %876 = vmatpush1.msra.mxu0 0.0
  %877 = vmatprep.subr.mxu0 0.0
  %878 = vmatpush1.msra.mxu0 0.0
  %879 = vmatprep.subr.mxu0 0.0
  %880 = vmatpush1.msra.mxu0 0.0
  %881 = vmatprep.subr.mxu0 0.0
  %882 = vmatpush1.msra.mxu0 0.0
  %883 = vmatprep.subr.mxu0 0.0
  %884 = vmatpush1.msra.mxu0 0.0
  %885 = vmatprep.subr.mxu0 0.0
  %886 = vmatpush1.msra.mxu0 0.0
  %887 = vmatprep.subr.mxu0 0.0
  %888 = vmatpush1.msra.mxu0 0.0
  %889 = vmatprep.subr.mxu0 0.0
  %890 = vmatpush1.msra.mxu0 0.0
  %891 = vmatprep.subr.mxu0 0.0
  %892 = vmatpush1.msra.mxu0 0.0
  %893 = vmatprep.subr.mxu0 0.0
  %894 = vmatpush1.msra.mxu0 0.0
  %895 = vmatprep.subr.mxu0 0.0
  %896 = vmatpush1.msra.mxu0 0.0
  %897 = vmatprep.subr.mxu0 0.0
  %898 = vmatpush1.msra.mxu0 0.0
  %899 = vmatprep.mubr.f32.mxu0 0.0
  %900 = vmatmul.mubr.f32.gmra.mrb[0].mxu0 %v763
  %v901 = vpop.f32.mrb[0].mxu0
  %v902 = vadd.f32 0.0, %v901
  %v903 = vpop.f32.mrb[0].mxu0
  %904 = vdwg.mxu0
  %v905 = vadd.f32 %v287, %v902
  %v906 = vxor.u32 %v905, 2147483648
  %v907 = vmul.f32 %v906, 1.442695
  %v908 = vpow.pop %v907
  %v909 = vadd.f32 %v908, 1.0
  %v910 = vrcp.pop %v909
  %v911 = vmul.f32 1.0, %v910
  %v912 = vadd.f32 %v902, %v394
  %914 = vrot.lane.b32.xlu0 %v912, 64
  %v915 = vpop.permute.xlu0 %914
  %v917 = vmul.f32 %v911, %v915
  %919 = vrot.lane.b32.xlu0 %v917, 64
  %v920 = vpop.permute.xlu0 %919
  %v922 = vadd.f32 %v287, %v920
  %v923 = vtanh.pop %v922
  %v924 = vsub.f32 1.0, %v911
  %926 = vrot.lane.b32.xlu0 %v923, 96
  %v927 = vpop.permute.xlu0 %926
  %v929 = vmul.f32 %v924, %v927
  %v930 = vmul.f32 %v911, %v759
  %v931 = vadd.f32 %v929, %v930
  %933 = vrot.lane.b32.xlu0 %v931, 96
  %v934 = vpop.permute.xlu0 %933
  %v935 = vsel %vm44, %v934, 0
  %937 = vmatprep.subr.mxu0 0.0
  %938 = vmatpush1.msra.mxu0 %v301
  %939 = vmatprep.subr.mxu0 0.0
  %940 = vmatpush1.msra.mxu0 %v302
  %941 = vmatprep.subr.mxu0 0.0
  %942 = vmatpush1.msra.mxu0 %v303
  %943 = vmatprep.subr.mxu0 0.0
  %944 = vmatpush1.msra.mxu0 %v304
  %945 = vmatprep.subr.mxu0 0.0
  %946 = vmatpush1.msra.mxu0 0.0
  %947 = vmatprep.subr.mxu0 0.0
  %948 = vmatpush1.msra.mxu0 0.0
  %949 = vmatprep.subr.mxu0 0.0
  %950 = vmatpush1.msra.mxu0 0.0
  %951 = vmatprep.subr.mxu0 0.0
  %952 = vmatpush1.msra.mxu0 0.0
  %953 = vmatprep.subr.mxu0 0.0
  %954 = vmatpush1.msra.mxu0 0.0
  %955 = vmatprep.subr.mxu0 0.0
  %956 = vmatpush1.msra.mxu0 0.0
  %957 = vmatprep.subr.mxu0 0.0
  %958 = vmatpush1.msra.mxu0 0.0
  %959 = vmatprep.subr.mxu0 0.0
  %960 = vmatpush1.msra.mxu0 0.0
  %961 = vmatprep.subr.mxu0 0.0
  %962 = vmatpush1.msra.mxu0 0.0
  %963 = vmatprep.subr.mxu0 0.0
  %964 = vmatpush1.msra.mxu0 0.0
  %965 = vmatprep.subr.mxu0 0.0
  %966 = vmatpush1.msra.mxu0 0.0
  %967 = vmatprep.subr.mxu0 0.0
  %968 = vmatpush1.msra.mxu0 0.0
  %969 = vmatprep.subr.mxu0 0.0
  %970 = vmatpush1.msra.mxu0 0.0
  %971 = vmatprep.subr.mxu0 0.0
  %972 = vmatpush1.msra.mxu0 0.0
  %973 = vmatprep.subr.mxu0 0.0
  %974 = vmatpush1.msra.mxu0 0.0
  %975 = vmatprep.subr.mxu0 0.0
  %976 = vmatpush1.msra.mxu0 0.0
  %977 = vmatprep.subr.mxu0 0.0
  %978 = vmatpush1.msra.mxu0 0.0
  %979 = vmatprep.subr.mxu0 0.0
  %980 = vmatpush1.msra.mxu0 0.0
  %981 = vmatprep.subr.mxu0 0.0
  %982 = vmatpush1.msra.mxu0 0.0
  %983 = vmatprep.subr.mxu0 0.0
  %984 = vmatpush1.msra.mxu0 0.0
  %985 = vmatprep.subr.mxu0 0.0
  %986 = vmatpush1.msra.mxu0 0.0
  %987 = vmatprep.subr.mxu0 0.0
  %988 = vmatpush1.msra.mxu0 0.0
  %989 = vmatprep.subr.mxu0 0.0
  %990 = vmatpush1.msra.mxu0 0.0
  %991 = vmatprep.subr.mxu0 0.0
  %992 = vmatpush1.msra.mxu0 0.0
  %993 = vmatprep.subr.mxu0 0.0
  %994 = vmatpush1.msra.mxu0 0.0
  %995 = vmatprep.subr.mxu0 0.0
  %996 = vmatpush1.msra.mxu0 0.0
  %997 = vmatprep.subr.mxu0 0.0
  %998 = vmatpush1.msra.mxu0 0.0
  %999 = vmatprep.subr.mxu0 0.0
  %1000 = vmatpush1.msra.mxu0 0.0
  %1001 = vmatprep.mubr.f32.mxu0 0.0
  %1002 = vmatmul.mubr.f32.gmra.mrb[0].mxu0 %v935
  %v1003 = vpop.f32.mrb[0].mxu0
  %v1004 = vadd.f32 %v311, %v1003
  %v1005 = vpop.f32.mrb[0].mxu0
  %1006 = vdwg.mxu0
  %1007 = vmatprep.subr.mxu0 0.0
  %1008 = vmatpush1.msra.mxu0 %v290
  %1009 = vmatprep.subr.mxu0 0.0
  %1010 = vmatpush1.msra.mxu0 %v291
  %1011 = vmatprep.subr.mxu0 0.0
  %1012 = vmatpush1.msra.mxu0 %v292
  %1013 = vmatprep.subr.mxu0 0.0
  %1014 = vmatpush1.msra.mxu0 %v293
  %1015 = vmatprep.subr.mxu0 0.0
  %1016 = vmatpush1.msra.mxu0 0.0
  %1017 = vmatprep.subr.mxu0 0.0
  %1018 = vmatpush1.msra.mxu0 0.0
  %1019 = vmatprep.subr.mxu0 0.0
  %1020 = vmatpush1.msra.mxu0 0.0
  %1021 = vmatprep.subr.mxu0 0.0
  %1022 = vmatpush1.msra.mxu0 0.0
  %1023 = vmatprep.subr.mxu0 0.0
  %1024 = vmatpush1.msra.mxu0 0.0
  %1025 = vmatprep.subr.mxu0 0.0
  %1026 = vmatpush1.msra.mxu0 0.0
  %1027 = vmatprep.subr.mxu0 0.0
  %1028 = vmatpush1.msra.mxu0 0.0
  %1029 = vmatprep.subr.mxu0 0.0
  %1030 = vmatpush1.msra.mxu0 0.0
  %1031 = vmatprep.subr.mxu0 0.0
  %1032 = vmatpush1.msra.mxu0 0.0
  %1033 = vmatprep.subr.mxu0 0.0
  %1034 = vmatpush1.msra.mxu0 0.0
  %1035 = vmatprep.subr.mxu0 0.0
  %1036 = vmatpush1.msra.mxu0 0.0
  %1037 = vmatprep.subr.mxu0 0.0
  %1038 = vmatpush1.msra.mxu0 0.0
  %1039 = vmatprep.subr.mxu0 0.0
  %1040 = vmatpush1.msra.mxu0 0.0
  %1041 = vmatprep.subr.mxu0 0.0
  %1042 = vmatpush1.msra.mxu0 0.0
  %1043 = vmatprep.subr.mxu0 0.0
  %1044 = vmatpush1.msra.mxu0 0.0
  %1045 = vmatprep.subr.mxu0 0.0
  %1046 = vmatpush1.msra.mxu0 0.0
  %1047 = vmatprep.subr.mxu0 0.0
  %1048 = vmatpush1.msra.mxu0 0.0
  %1049 = vmatprep.subr.mxu0 0.0
  %1050 = vmatpush1.msra.mxu0 0.0
  %1051 = vmatprep.subr.mxu0 0.0
  %1052 = vmatpush1.msra.mxu0 0.0
  %1053 = vmatprep.subr.mxu0 0.0
  %1054 = vmatpush1.msra.mxu0 0.0
  %1055 = vmatprep.subr.mxu0 0.0
  %1056 = vmatpush1.msra.mxu0 0.0
  %1057 = vmatprep.subr.mxu0 0.0
  %1058 = vmatpush1.msra.mxu0 0.0
  %1059 = vmatprep.subr.mxu0 0.0
  %1060 = vmatpush1.msra.mxu0 0.0
  %1061 = vmatprep.subr.mxu0 0.0
  %1062 = vmatpush1.msra.mxu0 0.0
  %1063 = vmatprep.subr.mxu0 0.0
  %1064 = vmatpush1.msra.mxu0 0.0
  %1065 = vmatprep.subr.mxu0 0.0
  %1066 = vmatpush1.msra.mxu0 0.0
  %1067 = vmatprep.subr.mxu0 0.0
  %1068 = vmatpush1.msra.mxu0 0.0
  %1069 = vmatprep.subr.mxu0 0.0
  %1070 = vmatpush1.msra.mxu0 0.0
  %1071 = vmatprep.mubr.f32.mxu0 0.0
  %1072 = vmatmul.mubr.f32.gmra.mrb[0].mxu0 %v935
  %v1073 = vpop.f32.mrb[0].mxu0
  %v1074 = vadd.f32 0.0, %v1073
  %v1075 = vpop.f32.mrb[0].mxu0
  %1076 = vdwg.mxu0
  %v1077 = vadd.f32 %v287, %v1074
  %v1078 = vxor.u32 %v1077, 2147483648
  %v1079 = vmul.f32 %v1078, 1.442695
  %v1080 = vpow.pop %v1079
  %v1081 = vadd.f32 %v1080, 1.0
  %v1082 = vrcp.pop %v1081
  %v1083 = vmul.f32 1.0, %v1082
  %v1084 = vadd.f32 %v1074, %v394
  %1086 = vrot.lane.b32.xlu0 %v1084, 64
  %v1087 = vpop.permute.xlu0 %1086
  %v1089 = vmul.f32 %v1083, %v1087
  %1091 = vrot.lane.b32.xlu0 %v1089, 64
  %v1092 = vpop.permute.xlu0 %1091
  %v1094 = vadd.f32 %v287, %v1092
  %v1095 = vtanh.pop %v1094
  %v1096 = vsub.f32 1.0, %v1083
  %1098 = vrot.lane.b32.xlu0 %v1095, 96
  %v1099 = vpop.permute.xlu0 %1098
  %v1101 = vmul.f32 %v1096, %v1099
  %v1102 = vmul.f32 %v1083, %v931
  %v1103 = vadd.f32 %v1101, %v1102
  %1105 = vrot.lane.b32.xlu0 %v1103, 96
  %v1106 = vpop.permute.xlu0 %1105
  %v1107 = vsel %vm44, %v1106, 0
  %1109 = vmatprep.subr.mxu0 0.0
  %1110 = vmatpush1.msra.mxu0 %v301
  %1111 = vmatprep.subr.mxu0 0.0
  %1112 = vmatpush1.msra.mxu0 %v302
  %1113 = vmatprep.subr.mxu0 0.0
  %1114 = vmatpush1.msra.mxu0 %v303
  %1115 = vmatprep.subr.mxu0 0.0
  %1116 = vmatpush1.msra.mxu0 %v304
  %1117 = vmatprep.subr.mxu0 0.0
  %1118 = vmatpush1.msra.mxu0 0.0
  %1119 = vmatprep.subr.mxu0 0.0
  %1120 = vmatpush1.msra.mxu0 0.0
  %1121 = vmatprep.subr.mxu0 0.0
  %1122 = vmatpush1.msra.mxu0 0.0
  %1123 = vmatprep.subr.mxu0 0.0
  %1124 = vmatpush1.msra.mxu0 0.0
  %1125 = vmatprep.subr.mxu0 0.0
  %1126 = vmatpush1.msra.mxu0 0.0
  %1127 = vmatprep.subr.mxu0 0.0
  %1128 = vmatpush1.msra.mxu0 0.0
  %1129 = vmatprep.subr.mxu0 0.0
  %1130 = vmatpush1.msra.mxu0 0.0
  %1131 = vmatprep.subr.mxu0 0.0
  %1132 = vmatpush1.msra.mxu0 0.0
  %1133 = vmatprep.subr.mxu0 0.0
  %1134 = vmatpush1.msra.mxu0 0.0
  %1135 = vmatprep.subr.mxu0 0.0
  %1136 = vmatpush1.msra.mxu0 0.0
  %1137 = vmatprep.subr.mxu0 0.0
  %1138 = vmatpush1.msra.mxu0 0.0
  %1139 = vmatprep.subr.mxu0 0.0
  %1140 = vmatpush1.msra.mxu0 0.0
  %1141 = vmatprep.subr.mxu0 0.0
  %1142 = vmatpush1.msra.mxu0 0.0
  %1143 = vmatprep.subr.mxu0 0.0
  %1144 = vmatpush1.msra.mxu0 0.0
  %1145 = vmatprep.subr.mxu0 0.0
  %1146 = vmatpush1.msra.mxu0 0.0
  %1147 = vmatprep.subr.mxu0 0.0
  %1148 = vmatpush1.msra.mxu0 0.0
  %1149 = vmatprep.subr.mxu0 0.0
  %1150 = vmatpush1.msra.mxu0 0.0
  %1151 = vmatprep.subr.mxu0 0.0
  %1152 = vmatpush1.msra.mxu0 0.0
  %1153 = vmatprep.subr.mxu0 0.0
  %1154 = vmatpush1.msra.mxu0 0.0
  %1155 = vmatprep.subr.mxu0 0.0
  %1156 = vmatpush1.msra.mxu0 0.0
  %1157 = vmatprep.subr.mxu0 0.0
  %1158 = vmatpush1.msra.mxu0 0.0
  %1159 = vmatprep.subr.mxu0 0.0
  %1160 = vmatpush1.msra.mxu0 0.0
  %1161 = vmatprep.subr.mxu0 0.0
  %1162 = vmatpush1.msra.mxu0 0.0
  %1163 = vmatprep.subr.mxu0 0.0
  %1164 = vmatpush1.msra.mxu0 0.0
  %1165 = vmatprep.subr.mxu0 0.0
  %1166 = vmatpush1.msra.mxu0 0.0
  %1167 = vmatprep.subr.mxu0 0.0
  %1168 = vmatpush1.msra.mxu0 0.0
  %1169 = vmatprep.subr.mxu0 0.0
  %1170 = vmatpush1.msra.mxu0 0.0
  %1171 = vmatprep.subr.mxu0 0.0
  %1172 = vmatpush1.msra.mxu0 0.0
  %1173 = vmatprep.mubr.f32.mxu0 0.0
  %1174 = vmatmul.mubr.f32.gmra.mrb[0].mxu0 %v1107
  %v1175 = vpop.f32.mrb[0].mxu0
  %v1176 = vadd.f32 %v311, %v1175
  %v1177 = vpop.f32.mrb[0].mxu0
  %1178 = vdwg.mxu0
  %1179 = vmatprep.subr.mxu0 0.0
  %1180 = vmatpush1.msra.mxu0 %v290
  %1181 = vmatprep.subr.mxu0 0.0
  %1182 = vmatpush1.msra.mxu0 %v291
  %1183 = vmatprep.subr.mxu0 0.0
  %1184 = vmatpush1.msra.mxu0 %v292
  %1185 = vmatprep.subr.mxu0 0.0
  %1186 = vmatpush1.msra.mxu0 %v293
  %1187 = vmatprep.subr.mxu0 0.0
  %1188 = vmatpush1.msra.mxu0 0.0
  %1189 = vmatprep.subr.mxu0 0.0
  %1190 = vmatpush1.msra.mxu0 0.0
  %1191 = vmatprep.subr.mxu0 0.0
  %1192 = vmatpush1.msra.mxu0 0.0
  %1193 = vmatprep.subr.mxu0 0.0
  %1194 = vmatpush1.msra.mxu0 0.0
  %1195 = vmatprep.subr.mxu0 0.0
  %1196 = vmatpush1.msra.mxu0 0.0
  %1197 = vmatprep.subr.mxu0 0.0
  %1198 = vmatpush1.msra.mxu0 0.0
  %1199 = vmatprep.subr.mxu0 0.0
  %1200 = vmatpush1.msra.mxu0 0.0
  %1201 = vmatprep.subr.mxu0 0.0
  %1202 = vmatpush1.msra.mxu0 0.0
  %1203 = vmatprep.subr.mxu0 0.0
  %1204 = vmatpush1.msra.mxu0 0.0
  %1205 = vmatprep.subr.mxu0 0.0
  %1206 = vmatpush1.msra.mxu0 0.0
  %1207 = vmatprep.subr.mxu0 0.0
  %1208 = vmatpush1.msra.mxu0 0.0
  %1209 = vmatprep.subr.mxu0 0.0
  %1210 = vmatpush1.msra.mxu0 0.0
  %1211 = vmatprep.subr.mxu0 0.0
  %1212 = vmatpush1.msra.mxu0 0.0
  %1213 = vmatprep.subr.mxu0 0.0
  %1214 = vmatpush1.msra.mxu0 0.0
  %1215 = vmatprep.subr.mxu0 0.0
  %1216 = vmatpush1.msra.mxu0 0.0
  %1217 = vmatprep.subr.mxu0 0.0
  %1218 = vmatpush1.msra.mxu0 0.0
  %1219 = vmatprep.subr.mxu0 0.0
  %1220 = vmatpush1.msra.mxu0 0.0
  %1221 = vmatprep.subr.mxu0 0.0
  %1222 = vmatpush1.msra.mxu0 0.0
  %1223 = vmatprep.subr.mxu0 0.0
  %1224 = vmatpush1.msra.mxu0 0.0
  %1225 = vmatprep.subr.mxu0 0.0
  %1226 = vmatpush1.msra.mxu0 0.0
  %1227 = vmatprep.subr.mxu0 0.0
  %1228 = vmatpush1.msra.mxu0 0.0
  %1229 = vmatprep.subr.mxu0 0.0
  %1230 = vmatpush1.msra.mxu0 0.0
  %1231 = vmatprep.subr.mxu0 0.0
  %1232 = vmatpush1.msra.mxu0 0.0
  %1233 = vmatprep.subr.mxu0 0.0
  %1234 = vmatpush1.msra.mxu0 0.0
  %1235 = vmatprep.subr.mxu0 0.0
  %1236 = vmatpush1.msra.mxu0 0.0
  %1237 = vmatprep.subr.mxu0 0.0
  %1238 = vmatpush1.msra.mxu0 0.0
  %1239 = vmatprep.subr.mxu0 0.0
  %1240 = vmatpush1.msra.mxu0 0.0
  %1241 = vmatprep.subr.mxu0 0.0
  %1242 = vmatpush1.msra.mxu0 0.0
  %1243 = vmatprep.mubr.f32.mxu0 0.0
  %1244 = vmatmul.mubr.f32.gmra.mrb[0].mxu0 %v1107
  %v1245 = vpop.f32.mrb[0].mxu0
  %v1246 = vadd.f32 0.0, %v1245
  %v1247 = vpop.f32.mrb[0].mxu0
  %1248 = vdwg.mxu0
  %v1249 = vadd.f32 %v287, %v1246
  %v1250 = vxor.u32 %v1249, 2147483648
  %v1251 = vmul.f32 %v1250, 1.442695
  %v1252 = vpow.pop %v1251
  %v1253 = vadd.f32 %v1252, 1.0
  %v1254 = vrcp.pop %v1253
  %v1255 = vmul.f32 1.0, %v1254
  %v1256 = vadd.f32 %v1246, %v394
  %1258 = vrot.lane.b32.xlu0 %v1256, 64
  %v1259 = vpop.permute.xlu0 %1258
  %v1261 = vmul.f32 %v1255, %v1259
  %1263 = vrot.lane.b32.xlu0 %v1261, 64
  %v1264 = vpop.permute.xlu0 %1263
  %v1266 = vadd.f32 %v287, %v1264
  %v1267 = vtanh.pop %v1266
  %v1268 = vsub.f32 1.0, %v1255
  %1270 = vrot.lane.b32.xlu0 %v1267, 96
  %v1271 = vpop.permute.xlu0 %1270
  %v1273 = vmul.f32 %v1268, %v1271
  %v1274 = vmul.f32 %v1255, %v1103
  %v1275 = vadd.f32 %v1273, %v1274
  %1277 = vrot.lane.b32.xlu0 %v1275, 96
  %v1278 = vpop.permute.xlu0 %1277
  %v1279 = vsel %vm44, %v1278, 0
  %1281 = vmatprep.subr.mxu0 0.0
  %1282 = vmatpush1.msra.mxu0 %v301
  %1283 = vmatprep.subr.mxu0 0.0
  %1284 = vmatpush1.msra.mxu0 %v302
  %1285 = vmatprep.subr.mxu0 0.0
  %1286 = vmatpush1.msra.mxu0 %v303
  %1287 = vmatprep.subr.mxu0 0.0
  %1288 = vmatpush1.msra.mxu0 %v304
  %1289 = vmatprep.subr.mxu0 0.0
  %1290 = vmatpush1.msra.mxu0 0.0
  %1291 = vmatprep.subr.mxu0 0.0
  %1292 = vmatpush1.msra.mxu0 0.0
  %1293 = vmatprep.subr.mxu0 0.0
  %1294 = vmatpush1.msra.mxu0 0.0
  %1295 = vmatprep.subr.mxu0 0.0
  %1296 = vmatpush1.msra.mxu0 0.0
  %1297 = vmatprep.subr.mxu0 0.0
  %1298 = vmatpush1.msra.mxu0 0.0
  %1299 = vmatprep.subr.mxu0 0.0
  %1300 = vmatpush1.msra.mxu0 0.0
  %1301 = vmatprep.subr.mxu0 0.0
  %1302 = vmatpush1.msra.mxu0 0.0
  %1303 = vmatprep.subr.mxu0 0.0
  %1304 = vmatpush1.msra.mxu0 0.0
  %1305 = vmatprep.subr.mxu0 0.0
  %1306 = vmatpush1.msra.mxu0 0.0
  %1307 = vmatprep.subr.mxu0 0.0
  %1308 = vmatpush1.msra.mxu0 0.0
  %1309 = vmatprep.subr.mxu0 0.0
  %1310 = vmatpush1.msra.mxu0 0.0
  %1311 = vmatprep.subr.mxu0 0.0
  %1312 = vmatpush1.msra.mxu0 0.0
  %1313 = vmatprep.subr.mxu0 0.0
  %1314 = vmatpush1.msra.mxu0 0.0
  %1315 = vmatprep.subr.mxu0 0.0
  %1316 = vmatpush1.msra.mxu0 0.0
  %1317 = vmatprep.subr.mxu0 0.0
  %1318 = vmatpush1.msra.mxu0 0.0
  %1319 = vmatprep.subr.mxu0 0.0
  %1320 = vmatpush1.msra.mxu0 0.0
  %1321 = vmatprep.subr.mxu0 0.0
  %1322 = vmatpush1.msra.mxu0 0.0
  %1323 = vmatprep.subr.mxu0 0.0
  %1324 = vmatpush1.msra.mxu0 0.0
  %1325 = vmatprep.subr.mxu0 0.0
  %1326 = vmatpush1.msra.mxu0 0.0
  %1327 = vmatprep.subr.mxu0 0.0
  %1328 = vmatpush1.msra.mxu0 0.0
  %1329 = vmatprep.subr.mxu0 0.0
  %1330 = vmatpush1.msra.mxu0 0.0
  %1331 = vmatprep.subr.mxu0 0.0
  %1332 = vmatpush1.msra.mxu0 0.0
  %1333 = vmatprep.subr.mxu0 0.0
  %1334 = vmatpush1.msra.mxu0 0.0
  %1335 = vmatprep.subr.mxu0 0.0
  %1336 = vmatpush1.msra.mxu0 0.0
  %1337 = vmatprep.subr.mxu0 0.0
  %1338 = vmatpush1.msra.mxu0 0.0
  %1339 = vmatprep.subr.mxu0 0.0
  %1340 = vmatpush1.msra.mxu0 0.0
  %1341 = vmatprep.subr.mxu0 0.0
  %1342 = vmatpush1.msra.mxu0 0.0
  %1343 = vmatprep.subr.mxu0 0.0
  %1344 = vmatpush1.msra.mxu0 0.0
  %1345 = vmatprep.mubr.f32.mxu0 0.0
  %1346 = vmatmul.mubr.f32.gmra.mrb[0].mxu0 %v1279
  %v1347 = vpop.f32.mrb[0].mxu0
  %v1348 = vadd.f32 %v311, %v1347
  %v1349 = vpop.f32.mrb[0].mxu0
  %1350 = vdwg.mxu0
  %1351 = vmatprep.subr.mxu0 0.0
  %1352 = vmatpush1.msra.mxu0 %v290
  %1353 = vmatprep.subr.mxu0 0.0
  %1354 = vmatpush1.msra.mxu0 %v291
  %1355 = vmatprep.subr.mxu0 0.0
  %1356 = vmatpush1.msra.mxu0 %v292
  %1357 = vmatprep.subr.mxu0 0.0
  %1358 = vmatpush1.msra.mxu0 %v293
  %1359 = vmatprep.subr.mxu0 0.0
  %1360 = vmatpush1.msra.mxu0 0.0
  %1361 = vmatprep.subr.mxu0 0.0
  %1362 = vmatpush1.msra.mxu0 0.0
  %1363 = vmatprep.subr.mxu0 0.0
  %1364 = vmatpush1.msra.mxu0 0.0
  %1365 = vmatprep.subr.mxu0 0.0
  %1366 = vmatpush1.msra.mxu0 0.0
  %1367 = vmatprep.subr.mxu0 0.0
  %1368 = vmatpush1.msra.mxu0 0.0
  %1369 = vmatprep.subr.mxu0 0.0
  %1370 = vmatpush1.msra.mxu0 0.0
  %1371 = vmatprep.subr.mxu0 0.0
  %1372 = vmatpush1.msra.mxu0 0.0
  %1373 = vmatprep.subr.mxu0 0.0
  %1374 = vmatpush1.msra.mxu0 0.0
  %1375 = vmatprep.subr.mxu0 0.0
  %1376 = vmatpush1.msra.mxu0 0.0
  %1377 = vmatprep.subr.mxu0 0.0
  %1378 = vmatpush1.msra.mxu0 0.0
  %1379 = vmatprep.subr.mxu0 0.0
  %1380 = vmatpush1.msra.mxu0 0.0
  %1381 = vmatprep.subr.mxu0 0.0
  %1382 = vmatpush1.msra.mxu0 0.0
  %1383 = vmatprep.subr.mxu0 0.0
  %1384 = vmatpush1.msra.mxu0 0.0
  %1385 = vmatprep.subr.mxu0 0.0
  %1386 = vmatpush1.msra.mxu0 0.0
  %1387 = vmatprep.subr.mxu0 0.0
  %1388 = vmatpush1.msra.mxu0 0.0
  %1389 = vmatprep.subr.mxu0 0.0
  %1390 = vmatpush1.msra.mxu0 0.0
  %1391 = vmatprep.subr.mxu0 0.0
  %1392 = vmatpush1.msra.mxu0 0.0
  %1393 = vmatprep.subr.mxu0 0.0
  %1394 = vmatpush1.msra.mxu0 0.0
  %1395 = vmatprep.subr.mxu0 0.0
  %1396 = vmatpush1.msra.mxu0 0.0
  %1397 = vmatprep.subr.mxu0 0.0
  %1398 = vmatpush1.msra.mxu0 0.0
  %1399 = vmatprep.subr.mxu0 0.0
  %1400 = vmatpush1.msra.mxu0 0.0
  %1401 = vmatprep.subr.mxu0 0.0
  %1402 = vmatpush1.msra.mxu0 0.0
  %1403 = vmatprep.subr.mxu0 0.0
  %1404 = vmatpush1.msra.mxu0 0.0
  %1405 = vmatprep.subr.mxu0 0.0
  %1406 = vmatpush1.msra.mxu0 0.0
  %1407 = vmatprep.subr.mxu0 0.0
  %1408 = vmatpush1.msra.mxu0 0.0
  %1409 = vmatprep.subr.mxu0 0.0
  %1410 = vmatpush1.msra.mxu0 0.0
  %1411 = vmatprep.subr.mxu0 0.0
  %1412 = vmatpush1.msra.mxu0 0.0
  %1413 = vmatprep.subr.mxu0 0.0
  %1414 = vmatpush1.msra.mxu0 0.0
  %1415 = vmatprep.mubr.f32.mxu0 0.0
  %1416 = vmatmul.mubr.f32.gmra.mrb[0].mxu0 %v1279
  %v1417 = vpop.f32.mrb[0].mxu0
  %v1418 = vadd.f32 0.0, %v1417
  %v1419 = vpop.f32.mrb[0].mxu0
  %1420 = vdwg.mxu0
  %v1421 = vadd.f32 %v287, %v1418
  %v1422 = vxor.u32 %v1421, 2147483648
  %v1423 = vmul.f32 %v1422, 1.442695
  %v1424 = vpow.pop %v1423
  %v1425 = vadd.f32 %v1424, 1.0
  %v1426 = vrcp.pop %v1425
  %v1427 = vmul.f32 1.0, %v1426
  %v1428 = vadd.f32 %v1418, %v394
  %1430 = vrot.lane.b32.xlu0 %v1428, 64
  %v1431 = vpop.permute.xlu0 %1430
  %v1433 = vmul.f32 %v1427, %v1431
  %1435 = vrot.lane.b32.xlu0 %v1433, 64
  %v1436 = vpop.permute.xlu0 %1435
  %v1438 = vadd.f32 %v287, %v1436
  %v1439 = vtanh.pop %v1438
  %v1440 = vsub.f32 1.0, %v1427
  %1442 = vrot.lane.b32.xlu0 %v1439, 96
  %v1443 = vpop.permute.xlu0 %1442
  %v1445 = vmul.f32 %v1440, %v1443
  %v1446 = vmul.f32 %v1427, %v1275
  %v1447 = vadd.f32 %v1445, %v1446
  %1449 = vrot.lane.b32.xlu0 %v1447, 96
  %v1450 = vpop.permute.xlu0 %1449
  %v1451 = vsel %vm44, %v1450, 0
  %1453 = vmatprep.subr.mxu0 0.0
  %1454 = vmatpush1.msra.mxu0 %v301
  %1455 = vmatprep.subr.mxu0 0.0
  %1456 = vmatpush1.msra.mxu0 %v302
  %1457 = vmatprep.subr.mxu0 0.0
  %1458 = vmatpush1.msra.mxu0 %v303
  %1459 = vmatprep.subr.mxu0 0.0
  %1460 = vmatpush1.msra.mxu0 %v304
  %1461 = vmatprep.subr.mxu0 0.0
  %1462 = vmatpush1.msra.mxu0 0.0
  %1463 = vmatprep.subr.mxu0 0.0
  %1464 = vmatpush1.msra.mxu0 0.0
  %1465 = vmatprep.subr.mxu0 0.0
  %1466 = vmatpush1.msra.mxu0 0.0
  %1467 = vmatprep.subr.mxu0 0.0
  %1468 = vmatpush1.msra.mxu0 0.0
  %1469 = vmatprep.subr.mxu0 0.0
  %1470 = vmatpush1.msra.mxu0 0.0
  %1471 = vmatprep.subr.mxu0 0.0
  %1472 = vmatpush1.msra.mxu0 0.0
  %1473 = vmatprep.subr.mxu0 0.0
  %1474 = vmatpush1.msra.mxu0 0.0
  %1475 = vmatprep.subr.mxu0 0.0
  %1476 = vmatpush1.msra.mxu0 0.0
  %1477 = vmatprep.subr.mxu0 0.0
  %1478 = vmatpush1.msra.mxu0 0.0
  %1479 = vmatprep.subr.mxu0 0.0
  %1480 = vmatpush1.msra.mxu0 0.0
  %1481 = vmatprep.subr.mxu0 0.0
  %1482 = vmatpush1.msra.mxu0 0.0
  %1483 = vmatprep.subr.mxu0 0.0
  %1484 = vmatpush1.msra.mxu0 0.0
  %1485 = vmatprep.subr.mxu0 0.0
  %1486 = vmatpush1.msra.mxu0 0.0
  %1487 = vmatprep.subr.mxu0 0.0
  %1488 = vmatpush1.msra.mxu0 0.0
  %1489 = vmatprep.subr.mxu0 0.0
  %1490 = vmatpush1.msra.mxu0 0.0
  %1491 = vmatprep.subr.mxu0 0.0
  %1492 = vmatpush1.msra.mxu0 0.0
  %1493 = vmatprep.subr.mxu0 0.0
  %1494 = vmatpush1.msra.mxu0 0.0
  %1495 = vmatprep.subr.mxu0 0.0
  %1496 = vmatpush1.msra.mxu0 0.0
  %1497 = vmatprep.subr.mxu0 0.0
  %1498 = vmatpush1.msra.mxu0 0.0
  %1499 = vmatprep.subr.mxu0 0.0
  %1500 = vmatpush1.msra.mxu0 0.0
  %1501 = vmatprep.subr.mxu0 0.0
  %1502 = vmatpush1.msra.mxu0 0.0
  %1503 = vmatprep.subr.mxu0 0.0
  %1504 = vmatpush1.msra.mxu0 0.0
  %1505 = vmatprep.subr.mxu0 0.0
  %1506 = vmatpush1.msra.mxu0 0.0
  %1507 = vmatprep.subr.mxu0 0.0
  %1508 = vmatpush1.msra.mxu0 0.0
  %1509 = vmatprep.subr.mxu0 0.0
  %1510 = vmatpush1.msra.mxu0 0.0
  %1511 = vmatprep.subr.mxu0 0.0
  %1512 = vmatpush1.msra.mxu0 0.0
  %1513 = vmatprep.subr.mxu0 0.0
  %1514 = vmatpush1.msra.mxu0 0.0
  %1515 = vmatprep.subr.mxu0 0.0
  %1516 = vmatpush1.msra.mxu0 0.0
  %1517 = vmatprep.mubr.f32.mxu0 0.0
  %1518 = vmatmul.mubr.f32.gmra.mrb[0].mxu0 %v1451
  %v1519 = vpop.f32.mrb[0].mxu0
  %v1520 = vadd.f32 %v311, %v1519
  %v1521 = vpop.f32.mrb[0].mxu0
  %1522 = vdwg.mxu0
  %1523 = vmatprep.subr.mxu0 0.0
  %1524 = vmatpush1.msra.mxu0 %v290
  %1525 = vmatprep.subr.mxu0 0.0
  %1526 = vmatpush1.msra.mxu0 %v291
  %1527 = vmatprep.subr.mxu0 0.0
  %1528 = vmatpush1.msra.mxu0 %v292
  %1529 = vmatprep.subr.mxu0 0.0
  %1530 = vmatpush1.msra.mxu0 %v293
  %1531 = vmatprep.subr.mxu0 0.0
  %1532 = vmatpush1.msra.mxu0 0.0
  %1533 = vmatprep.subr.mxu0 0.0
  %1534 = vmatpush1.msra.mxu0 0.0
  %1535 = vmatprep.subr.mxu0 0.0
  %1536 = vmatpush1.msra.mxu0 0.0
  %1537 = vmatprep.subr.mxu0 0.0
  %1538 = vmatpush1.msra.mxu0 0.0
  %1539 = vmatprep.subr.mxu0 0.0
  %1540 = vmatpush1.msra.mxu0 0.0
  %1541 = vmatprep.subr.mxu0 0.0
  %1542 = vmatpush1.msra.mxu0 0.0
  %1543 = vmatprep.subr.mxu0 0.0
  %1544 = vmatpush1.msra.mxu0 0.0
  %1545 = vmatprep.subr.mxu0 0.0
  %1546 = vmatpush1.msra.mxu0 0.0
  %1547 = vmatprep.subr.mxu0 0.0
  %1548 = vmatpush1.msra.mxu0 0.0
  %1549 = vmatprep.subr.mxu0 0.0
  %1550 = vmatpush1.msra.mxu0 0.0
  %1551 = vmatprep.subr.mxu0 0.0
  %1552 = vmatpush1.msra.mxu0 0.0
  %1553 = vmatprep.subr.mxu0 0.0
  %1554 = vmatpush1.msra.mxu0 0.0
  %1555 = vmatprep.subr.mxu0 0.0
  %1556 = vmatpush1.msra.mxu0 0.0
  %1557 = vmatprep.subr.mxu0 0.0
  %1558 = vmatpush1.msra.mxu0 0.0
  %1559 = vmatprep.subr.mxu0 0.0
  %1560 = vmatpush1.msra.mxu0 0.0
  %1561 = vmatprep.subr.mxu0 0.0
  %1562 = vmatpush1.msra.mxu0 0.0
  %1563 = vmatprep.subr.mxu0 0.0
  %1564 = vmatpush1.msra.mxu0 0.0
  %1565 = vmatprep.subr.mxu0 0.0
  %1566 = vmatpush1.msra.mxu0 0.0
  %1567 = vmatprep.subr.mxu0 0.0
  %1568 = vmatpush1.msra.mxu0 0.0
  %1569 = vmatprep.subr.mxu0 0.0
  %1570 = vmatpush1.msra.mxu0 0.0
  %1571 = vmatprep.subr.mxu0 0.0
  %1572 = vmatpush1.msra.mxu0 0.0
  %1573 = vmatprep.subr.mxu0 0.0
  %1574 = vmatpush1.msra.mxu0 0.0
  %1575 = vmatprep.subr.mxu0 0.0
  %1576 = vmatpush1.msra.mxu0 0.0
  %1577 = vmatprep.subr.mxu0 0.0
  %1578 = vmatpush1.msra.mxu0 0.0
  %1579 = vmatprep.subr.mxu0 0.0
  %1580 = vmatpush1.msra.mxu0 0.0
  %1581 = vmatprep.subr.mxu0 0.0
  %1582 = vmatpush1.msra.mxu0 0.0
  %1583 = vmatprep.subr.mxu0 0.0
  %1584 = vmatpush1.msra.mxu0 0.0
  %1585 = vmatprep.subr.mxu0 0.0
  %1586 = vmatpush1.msra.mxu0 0.0
  %1587 = vmatprep.mubr.f32.mxu0 0.0
  %1588 = vmatmul.mubr.f32.gmra.mrb[0].mxu0 %v1451
  %v1589 = vpop.f32.mrb[0].mxu0
  %v1590 = vadd.f32 0.0, %v1589
  %v1591 = vpop.f32.mrb[0].mxu0
  %1592 = vdwg.mxu0
  %v1593 = vadd.f32 %v287, %v1590
  %v1594 = vxor.u32 %v1593, 2147483648
  %v1595 = vmul.f32 %v1594, 1.442695
  %v1596 = vpow.pop %v1595
  %v1597 = vadd.f32 %v1596, 1.0
  %v1598 = vrcp.pop %v1597
  %v1599 = vmul.f32 1.0, %v1598
  %v1600 = vadd.f32 %v1590, %v394
  %1602 = vrot.lane.b32.xlu0 %v1600, 64
  %v1603 = vpop.permute.xlu0 %1602
  %v1605 = vmul.f32 %v1599, %v1603
  %1607 = vrot.lane.b32.xlu0 %v1605, 64
  %v1608 = vpop.permute.xlu0 %1607
  %v1610 = vadd.f32 %v287, %v1608
  %v1611 = vtanh.pop %v1610
  %v1612 = vsub.f32 1.0, %v1599
  %1614 = vrot.lane.b32.xlu0 %v1611, 96
  %v1615 = vpop.permute.xlu0 %1614
  %v1617 = vmul.f32 %v1612, %v1615
  %v1618 = vmul.f32 %v1599, %v1447
  %v1619 = vadd.f32 %v1617, %v1618
  %1621 = vrot.lane.b32.xlu0 %v1619, 96
  %v1622 = vpop.permute.xlu0 %1621
  %v1623 = vsel %vm44, %v1622, 0
  %1625 = vmatprep.subr.mxu0 0.0
  %1626 = vmatpush1.msra.mxu0 %v301
  %1627 = vmatprep.subr.mxu0 0.0
  %1628 = vmatpush1.msra.mxu0 %v302
  %1629 = vmatprep.subr.mxu0 0.0
  %1630 = vmatpush1.msra.mxu0 %v303
  %1631 = vmatprep.subr.mxu0 0.0
  %1632 = vmatpush1.msra.mxu0 %v304
  %1633 = vmatprep.subr.mxu0 0.0
  %1634 = vmatpush1.msra.mxu0 0.0
  %1635 = vmatprep.subr.mxu0 0.0
  %1636 = vmatpush1.msra.mxu0 0.0
  %1637 = vmatprep.subr.mxu0 0.0
  %1638 = vmatpush1.msra.mxu0 0.0
  %1639 = vmatprep.subr.mxu0 0.0
  %1640 = vmatpush1.msra.mxu0 0.0
  %1641 = vmatprep.subr.mxu0 0.0
  %1642 = vmatpush1.msra.mxu0 0.0
  %1643 = vmatprep.subr.mxu0 0.0
  %1644 = vmatpush1.msra.mxu0 0.0
  %1645 = vmatprep.subr.mxu0 0.0
  %1646 = vmatpush1.msra.mxu0 0.0
  %1647 = vmatprep.subr.mxu0 0.0
  %1648 = vmatpush1.msra.mxu0 0.0
  %1649 = vmatprep.subr.mxu0 0.0
  %1650 = vmatpush1.msra.mxu0 0.0
  %1651 = vmatprep.subr.mxu0 0.0
  %1652 = vmatpush1.msra.mxu0 0.0
  %1653 = vmatprep.subr.mxu0 0.0
  %1654 = vmatpush1.msra.mxu0 0.0
  %1655 = vmatprep.subr.mxu0 0.0
  %1656 = vmatpush1.msra.mxu0 0.0
  %1657 = vmatprep.subr.mxu0 0.0
  %1658 = vmatpush1.msra.mxu0 0.0
  %1659 = vmatprep.subr.mxu0 0.0
  %1660 = vmatpush1.msra.mxu0 0.0
  %1661 = vmatprep.subr.mxu0 0.0
  %1662 = vmatpush1.msra.mxu0 0.0
  %1663 = vmatprep.subr.mxu0 0.0
  %1664 = vmatpush1.msra.mxu0 0.0
  %1665 = vmatprep.subr.mxu0 0.0
  %1666 = vmatpush1.msra.mxu0 0.0
  %1667 = vmatprep.subr.mxu0 0.0
  %1668 = vmatpush1.msra.mxu0 0.0
  %1669 = vmatprep.subr.mxu0 0.0
  %1670 = vmatpush1.msra.mxu0 0.0
  %1671 = vmatprep.subr.mxu0 0.0
  %1672 = vmatpush1.msra.mxu0 0.0
  %1673 = vmatprep.subr.mxu0 0.0
  %1674 = vmatpush1.msra.mxu0 0.0
  %1675 = vmatprep.subr.mxu0 0.0
  %1676 = vmatpush1.msra.mxu0 0.0
  %1677 = vmatprep.subr.mxu0 0.0
  %1678 = vmatpush1.msra.mxu0 0.0
  %1679 = vmatprep.subr.mxu0 0.0
  %1680 = vmatpush1.msra.mxu0 0.0
  %1681 = vmatprep.subr.mxu0 0.0
  %1682 = vmatpush1.msra.mxu0 0.0
  %1683 = vmatprep.subr.mxu0 0.0
  %1684 = vmatpush1.msra.mxu0 0.0
  %1685 = vmatprep.subr.mxu0 0.0
  %1686 = vmatpush1.msra.mxu0 0.0
  %1687 = vmatprep.subr.mxu0 0.0
  %1688 = vmatpush1.msra.mxu0 0.0
  %1689 = vmatprep.mubr.f32.mxu0 0.0
  %1690 = vmatmul.mubr.f32.gmra.mrb[0].mxu0 %v1623
  %v1691 = vpop.f32.mrb[0].mxu0
  %v1692 = vadd.f32 %v311, %v1691
  %v1693 = vpop.f32.mrb[0].mxu0
  %1694 = vdwg.mxu0
  %s1695 = scalar_lea.vmem %s5, 32
  %v1696 = vld [vmem:[%s1695] sm:$0xff]
  %v1697 = vld [vmem:[%s1695 + $0x8] sm:$0xff]
  %v1698 = vld [vmem:[%s1695 + $0x10] sm:$0xff]
  %v1699 = vld [vmem:[%s1695 + $0x18] sm:$0xff]
  %s1700 = scalar_lea.vmem %s6, 1
  %v1701 = vld [vmem:[%s1700] sm:$0x1]
  %v1703 = vlaneseq
  %v1704 = vshrl.u32 %v1703, 7
  %v1705 = vsub.s32 0, %v1704
  %v1706 = vrot.slane %v1701, %v1705
  %v1707 = vld [vmem:[%s7] sm:$0xff]
  %v1708 = vld [vmem:[%s7 + $0x8] sm:$0xff]
  %v1709 = vld [vmem:[%s7 + $0x10] sm:$0xff]
  %v1710 = vld [vmem:[%s7 + $0x18] sm:$0xff]
  %v1711 = vld [vmem:[%s8] sm:$0x1]
  %v1713 = vlaneseq
  %v1714 = vshrl.u32 %v1713, 7
  %v1715 = vsub.s32 0, %v1714
  %v1716 = vrot.slane %v1711, %v1715
  %1718 = vmatprep.subr.mxu0 0.0
  %1719 = vmatpush1.msra.mxu0 %v1696
  %1720 = vmatprep.subr.mxu0 0.0
  %1721 = vmatpush1.msra.mxu0 %v1697
  %1722 = vmatprep.subr.mxu0 0.0
  %1723 = vmatpush1.msra.mxu0 %v1698
  %1724 = vmatprep.subr.mxu0 0.0
  %1725 = vmatpush1.msra.mxu0 %v1699
  %1726 = vmatprep.subr.mxu0 0.0
  %1727 = vmatpush1.msra.mxu0 0.0
  %1728 = vmatprep.subr.mxu0 0.0
  %1729 = vmatpush1.msra.mxu0 0.0
  %1730 = vmatprep.subr.mxu0 0.0
  %1731 = vmatpush1.msra.mxu0 0.0
  %1732 = vmatprep.subr.mxu0 0.0
  %1733 = vmatpush1.msra.mxu0 0.0
  %1734 = vmatprep.subr.mxu0 0.0
  %1735 = vmatpush1.msra.mxu0 0.0
  %1736 = vmatprep.subr.mxu0 0.0
  %1737 = vmatpush1.msra.mxu0 0.0
  %1738 = vmatprep.subr.mxu0 0.0
  %1739 = vmatpush1.msra.mxu0 0.0
  %1740 = vmatprep.subr.mxu0 0.0
  %1741 = vmatpush1.msra.mxu0 0.0
  %1742 = vmatprep.subr.mxu0 0.0
  %1743 = vmatpush1.msra.mxu0 0.0
  %1744 = vmatprep.subr.mxu0 0.0
  %1745 = vmatpush1.msra.mxu0 0.0
  %1746 = vmatprep.subr.mxu0 0.0
  %1747 = vmatpush1.msra.mxu0 0.0
  %1748 = vmatprep.subr.mxu0 0.0
  %1749 = vmatpush1.msra.mxu0 0.0
  %1750 = vmatprep.subr.mxu0 0.0
  %1751 = vmatpush1.msra.mxu0 0.0
  %1752 = vmatprep.subr.mxu0 0.0
  %1753 = vmatpush1.msra.mxu0 0.0
  %1754 = vmatprep.subr.mxu0 0.0
  %1755 = vmatpush1.msra.mxu0 0.0
  %1756 = vmatprep.subr.mxu0 0.0
  %1757 = vmatpush1.msra.mxu0 0.0
  %1758 = vmatprep.subr.mxu0 0.0
  %1759 = vmatpush1.msra.mxu0 0.0
  %1760 = vmatprep.subr.mxu0 0.0
  %1761 = vmatpush1.msra.mxu0 0.0
  %1762 = vmatprep.subr.mxu0 0.0
  %1763 = vmatpush1.msra.mxu0 0.0
  %1764 = vmatprep.subr.mxu0 0.0
  %1765 = vmatpush1.msra.mxu0 0.0
  %1766 = vmatprep.subr.mxu0 0.0
  %1767 = vmatpush1.msra.mxu0 0.0
  %1768 = vmatprep.subr.mxu0 0.0
  %1769 = vmatpush1.msra.mxu0 0.0
  %1770 = vmatprep.subr.mxu0 0.0
  %1771 = vmatpush1.msra.mxu0 0.0
  %1772 = vmatprep.subr.mxu0 0.0
  %1773 = vmatpush1.msra.mxu0 0.0
  %1774 = vmatprep.subr.mxu0 0.0
  %1775 = vmatpush1.msra.mxu0 0.0
  %1776 = vmatprep.subr.mxu0 0.0
  %1777 = vmatpush1.msra.mxu0 0.0
  %1778 = vmatprep.subr.mxu0 0.0
  %1779 = vmatpush1.msra.mxu0 0.0
  %1780 = vmatprep.subr.mxu0 0.0
  %1781 = vmatpush1.msra.mxu0 0.0
  %1782 = vmatprep.mubr.f32.mxu0 0.0
  %1783 = vmatmul.mubr.f32.gmra.mrb[0].mxu0 %v314
  %v1784 = vpop.f32.mrb[0].mxu0
  %v1785 = vadd.f32 0.0, %v1784
  %v1786 = vpop.f32.mrb[0].mxu0
  %1787 = vdwg.mxu0
  %v1788 = vadd.f32 %v488, %v1785
  %v1789 = vxor.u32 %v1788, 2147483648
  %v1790 = vmul.f32 %v1789, 1.442695
  %v1791 = vpow.pop %v1790
  %v1792 = vadd.f32 %v1791, 1.0
  %v1793 = vrcp.pop %v1792
  %v1794 = vmul.f32 1.0, %v1793
  %1795 = vrot.lane.b32.xlu0 %v1706, 64
  %v1796 = vpop.permute.xlu0 %1795
  %v1798 = vadd.f32 %v1785, %v1796
  %1800 = vrot.lane.b32.xlu0 %v1798, 64
  %v1801 = vpop.permute.xlu0 %1800
  %v1803 = vmul.f32 %v1794, %v1801
  %1805 = vrot.lane.b32.xlu0 %v1803, 64
  %v1806 = vpop.permute.xlu0 %1805
  %v1808 = vadd.f32 %v488, %v1806
  %v1809 = vtanh.pop %v1808
  %v1810 = vsub.f32 1.0, %v1794
  %1812 = vrot.lane.b32.xlu0 %v1809, 96
  %v1813 = vpop.permute.xlu0 %1812
  %v1815 = vmul.f32 %v1810, %v1813
  %v1816 = vmul.f32 %v1794, 0.0
  %v1817 = vadd.f32 %v1815, %v1816
  %1819 = vrot.lane.b32.xlu0 %v1817, 96
  %v1820 = vpop.permute.xlu0 %1819
  %v1821 = vsel %vm44, %v1820, 0
  %1823 = vmatprep.subr.mxu0 0.0
  %1824 = vmatpush1.msra.mxu0 %v1707
  %1825 = vmatprep.subr.mxu0 0.0
  %1826 = vmatpush1.msra.mxu0 %v1708
  %1827 = vmatprep.subr.mxu0 0.0
  %1828 = vmatpush1.msra.mxu0 %v1709
  %1829 = vmatprep.subr.mxu0 0.0
  %1830 = vmatpush1.msra.mxu0 %v1710
  %1831 = vmatprep.subr.mxu0 0.0
  %1832 = vmatpush1.msra.mxu0 0.0
  %1833 = vmatprep.subr.mxu0 0.0
  %1834 = vmatpush1.msra.mxu0 0.0
  %1835 = vmatprep.subr.mxu0 0.0
  %1836 = vmatpush1.msra.mxu0 0.0
  %1837 = vmatprep.subr.mxu0 0.0
  %1838 = vmatpush1.msra.mxu0 0.0
  %1839 = vmatprep.subr.mxu0 0.0
  %1840 = vmatpush1.msra.mxu0 0.0
  %1841 = vmatprep.subr.mxu0 0.0
  %1842 = vmatpush1.msra.mxu0 0.0
  %1843 = vmatprep.subr.mxu0 0.0
  %1844 = vmatpush1.msra.mxu0 0.0
  %1845 = vmatprep.subr.mxu0 0.0
  %1846 = vmatpush1.msra.mxu0 0.0
  %1847 = vmatprep.subr.mxu0 0.0
  %1848 = vmatpush1.msra.mxu0 0.0
  %1849 = vmatprep.subr.mxu0 0.0
  %1850 = vmatpush1.msra.mxu0 0.0
  %1851 = vmatprep.subr.mxu0 0.0
  %1852 = vmatpush1.msra.mxu0 0.0
  %1853 = vmatprep.subr.mxu0 0.0
  %1854 = vmatpush1.msra.mxu0 0.0
  %1855 = vmatprep.subr.mxu0 0.0
  %1856 = vmatpush1.msra.mxu0 0.0
  %1857 = vmatprep.subr.mxu0 0.0
  %1858 = vmatpush1.msra.mxu0 0.0
  %1859 = vmatprep.subr.mxu0 0.0
  %1860 = vmatpush1.msra.mxu0 0.0
  %1861 = vmatprep.subr.mxu0 0.0
  %1862 = vmatpush1.msra.mxu0 0.0
  %1863 = vmatprep.subr.mxu0 0.0
  %1864 = vmatpush1.msra.mxu0 0.0
  %1865 = vmatprep.subr.mxu0 0.0
  %1866 = vmatpush1.msra.mxu0 0.0
  %1867 = vmatprep.subr.mxu0 0.0
  %1868 = vmatpush1.msra.mxu0 0.0
  %1869 = vmatprep.subr.mxu0 0.0
  %1870 = vmatpush1.msra.mxu0 0.0
  %1871 = vmatprep.subr.mxu0 0.0
  %1872 = vmatpush1.msra.mxu0 0.0
  %1873 = vmatprep.subr.mxu0 0.0
  %1874 = vmatpush1.msra.mxu0 0.0
  %1875 = vmatprep.subr.mxu0 0.0
  %1876 = vmatpush1.msra.mxu0 0.0
  %1877 = vmatprep.subr.mxu0 0.0
  %1878 = vmatpush1.msra.mxu0 0.0
  %1879 = vmatprep.subr.mxu0 0.0
  %1880 = vmatpush1.msra.mxu0 0.0
  %1881 = vmatprep.subr.mxu0 0.0
  %1882 = vmatpush1.msra.mxu0 0.0
  %1883 = vmatprep.subr.mxu0 0.0
  %1884 = vmatpush1.msra.mxu0 0.0
  %1885 = vmatprep.subr.mxu0 0.0
  %1886 = vmatpush1.msra.mxu0 0.0
  %1887 = vmatprep.mubr.f32.mxu0 0.0
  %1888 = vmatmul.mubr.f32.gmra.mrb[0].mxu0 %v1821
  %v1889 = vpop.f32.mrb[0].mxu0
  %v1890 = vadd.f32 %v1716, %v1889
  %v1891 = vpop.f32.mrb[0].mxu0
  %1892 = vdwg.mxu0
  %1893 = vmatprep.subr.mxu0 0.0
  %1894 = vmatpush1.msra.mxu0 %v1696
  %1895 = vmatprep.subr.mxu0 0.0
  %1896 = vmatpush1.msra.mxu0 %v1697
  %1897 = vmatprep.subr.mxu0 0.0
  %1898 = vmatpush1.msra.mxu0 %v1698
  %1899 = vmatprep.subr.mxu0 0.0
  %1900 = vmatpush1.msra.mxu0 %v1699
  %1901 = vmatprep.subr.mxu0 0.0
  %1902 = vmatpush1.msra.mxu0 0.0
  %1903 = vmatprep.subr.mxu0 0.0
  %1904 = vmatpush1.msra.mxu0 0.0
  %1905 = vmatprep.subr.mxu0 0.0
  %1906 = vmatpush1.msra.mxu0 0.0
  %1907 = vmatprep.subr.mxu0 0.0
  %1908 = vmatpush1.msra.mxu0 0.0
  %1909 = vmatprep.subr.mxu0 0.0
  %1910 = vmatpush1.msra.mxu0 0.0
  %1911 = vmatprep.subr.mxu0 0.0
  %1912 = vmatpush1.msra.mxu0 0.0
  %1913 = vmatprep.subr.mxu0 0.0
  %1914 = vmatpush1.msra.mxu0 0.0
  %1915 = vmatprep.subr.mxu0 0.0
  %1916 = vmatpush1.msra.mxu0 0.0
  %1917 = vmatprep.subr.mxu0 0.0
  %1918 = vmatpush1.msra.mxu0 0.0
  %1919 = vmatprep.subr.mxu0 0.0
  %1920 = vmatpush1.msra.mxu0 0.0
  %1921 = vmatprep.subr.mxu0 0.0
  %1922 = vmatpush1.msra.mxu0 0.0
  %1923 = vmatprep.subr.mxu0 0.0
  %1924 = vmatpush1.msra.mxu0 0.0
  %1925 = vmatprep.subr.mxu0 0.0
  %1926 = vmatpush1.msra.mxu0 0.0
  %1927 = vmatprep.subr.mxu0 0.0
  %1928 = vmatpush1.msra.mxu0 0.0
  %1929 = vmatprep.subr.mxu0 0.0
  %1930 = vmatpush1.msra.mxu0 0.0
  %1931 = vmatprep.subr.mxu0 0.0
  %1932 = vmatpush1.msra.mxu0 0.0
  %1933 = vmatprep.subr.mxu0 0.0
  %1934 = vmatpush1.msra.mxu0 0.0
  %1935 = vmatprep.subr.mxu0 0.0
  %1936 = vmatpush1.msra.mxu0 0.0
  %1937 = vmatprep.subr.mxu0 0.0
  %1938 = vmatpush1.msra.mxu0 0.0
  %1939 = vmatprep.subr.mxu0 0.0
  %1940 = vmatpush1.msra.mxu0 0.0
  %1941 = vmatprep.subr.mxu0 0.0
  %1942 = vmatpush1.msra.mxu0 0.0
  %1943 = vmatprep.subr.mxu0 0.0
  %1944 = vmatpush1.msra.mxu0 0.0
  %1945 = vmatprep.subr.mxu0 0.0
  %1946 = vmatpush1.msra.mxu0 0.0
  %1947 = vmatprep.subr.mxu0 0.0
  %1948 = vmatpush1.msra.mxu0 0.0
  %1949 = vmatprep.subr.mxu0 0.0
  %1950 = vmatpush1.msra.mxu0 0.0
  %1951 = vmatprep.subr.mxu0 0.0
  %1952 = vmatpush1.msra.mxu0 0.0
  %1953 = vmatprep.subr.mxu0 0.0
  %1954 = vmatpush1.msra.mxu0 0.0
  %1955 = vmatprep.subr.mxu0 0.0
  %1956 = vmatpush1.msra.mxu0 0.0
  %1957 = vmatprep.mubr.f32.mxu0 0.0
  %1958 = vmatmul.mubr.f32.gmra.mrb[0].mxu0 %v1821
  %v1959 = vpop.f32.mrb[0].mxu0
  %v1960 = vadd.f32 0.0, %v1959
  %v1961 = vpop.f32.mrb[0].mxu0
  %1962 = vdwg.mxu0
  %v1963 = vadd.f32 %v660, %v1960
  %v1964 = vxor.u32 %v1963, 2147483648
  %v1965 = vmul.f32 %v1964, 1.442695
  %v1966 = vpow.pop %v1965
  %v1967 = vadd.f32 %v1966, 1.0
  %v1968 = vrcp.pop %v1967
  %v1969 = vmul.f32 1.0, %v1968
  %v1970 = vadd.f32 %v1960, %v1796
  %1972 = vrot.lane.b32.xlu0 %v1970, 64
  %v1973 = vpop.permute.xlu0 %1972
  %v1975 = vmul.f32 %v1969, %v1973
  %1977 = vrot.lane.b32.xlu0 %v1975, 64
  %v1978 = vpop.permute.xlu0 %1977
  %v1980 = vadd.f32 %v660, %v1978
  %v1981 = vtanh.pop %v1980
  %v1982 = vsub.f32 1.0, %v1969
  %1984 = vrot.lane.b32.xlu0 %v1981, 96
  %v1985 = vpop.permute.xlu0 %1984
  %v1987 = vmul.f32 %v1982, %v1985
  %v1988 = vmul.f32 %v1969, %v1817
  %v1989 = vadd.f32 %v1987, %v1988
  %1991 = vrot.lane.b32.xlu0 %v1989, 96
  %v1992 = vpop.permute.xlu0 %1991
  %v1993 = vsel %vm44, %v1992, 0
  %1995 = vmatprep.subr.mxu0 0.0
  %1996 = vmatpush1.msra.mxu0 %v1707
  %1997 = vmatprep.subr.mxu0 0.0
  %1998 = vmatpush1.msra.mxu0 %v1708
  %1999 = vmatprep.subr.mxu0 0.0
  %2000 = vmatpush1.msra.mxu0 %v1709
  %2001 = vmatprep.subr.mxu0 0.0
  %2002 = vmatpush1.msra.mxu0 %v1710
  %2003 = vmatprep.subr.mxu0 0.0
  %2004 = vmatpush1.msra.mxu0 0.0
  %2005 = vmatprep.subr.mxu0 0.0
  %2006 = vmatpush1.msra.mxu0 0.0
  %2007 = vmatprep.subr.mxu0 0.0
  %2008 = vmatpush1.msra.mxu0 0.0
  %2009 = vmatprep.subr.mxu0 0.0
  %2010 = vmatpush1.msra.mxu0 0.0
  %2011 = vmatprep.subr.mxu0 0.0
  %2012 = vmatpush1.msra.mxu0 0.0
  %2013 = vmatprep.subr.mxu0 0.0
  %2014 = vmatpush1.msra.mxu0 0.0
  %2015 = vmatprep.subr.mxu0 0.0
  %2016 = vmatpush1.msra.mxu0 0.0
  %2017 = vmatprep.subr.mxu0 0.0
  %2018 = vmatpush1.msra.mxu0 0.0
  %2019 = vmatprep.subr.mxu0 0.0
  %2020 = vmatpush1.msra.mxu0 0.0
  %2021 = vmatprep.subr.mxu0 0.0
  %2022 = vmatpush1.msra.mxu0 0.0
  %2023 = vmatprep.subr.mxu0 0.0
  %2024 = vmatpush1.msra.mxu0 0.0
  %2025 = vmatprep.subr.mxu0 0.0
  %2026 = vmatpush1.msra.mxu0 0.0
  %2027 = vmatprep.subr.mxu0 0.0
  %2028 = vmatpush1.msra.mxu0 0.0
  %2029 = vmatprep.subr.mxu0 0.0
  %2030 = vmatpush1.msra.mxu0 0.0
  %2031 = vmatprep.subr.mxu0 0.0
  %2032 = vmatpush1.msra.mxu0 0.0
  %2033 = vmatprep.subr.mxu0 0.0
  %2034 = vmatpush1.msra.mxu0 0.0
  %2035 = vmatprep.subr.mxu0 0.0
  %2036 = vmatpush1.msra.mxu0 0.0
  %2037 = vmatprep.subr.mxu0 0.0
  %2038 = vmatpush1.msra.mxu0 0.0
  %2039 = vmatprep.subr.mxu0 0.0
  %2040 = vmatpush1.msra.mxu0 0.0
  %2041 = vmatprep.subr.mxu0 0.0
  %2042 = vmatpush1.msra.mxu0 0.0
  %2043 = vmatprep.subr.mxu0 0.0
  %2044 = vmatpush1.msra.mxu0 0.0
  %2045 = vmatprep.subr.mxu0 0.0
  %2046 = vmatpush1.msra.mxu0 0.0
  %2047 = vmatprep.subr.mxu0 0.0
  %2048 = vmatpush1.msra.mxu0 0.0
  %2049 = vmatprep.subr.mxu0 0.0
  %2050 = vmatpush1.msra.mxu0 0.0
  %2051 = vmatprep.subr.mxu0 0.0
  %2052 = vmatpush1.msra.mxu0 0.0
  %2053 = vmatprep.subr.mxu0 0.0
  %2054 = vmatpush1.msra.mxu0 0.0
  %2055 = vmatprep.subr.mxu0 0.0
  %2056 = vmatpush1.msra.mxu0 0.0
  %2057 = vmatprep.subr.mxu0 0.0
  %2058 = vmatpush1.msra.mxu0 0.0
  %2059 = vmatprep.mubr.f32.mxu0 0.0
  %2060 = vmatmul.mubr.f32.gmra.mrb[0].mxu0 %v1993
  %v2061 = vpop.f32.mrb[0].mxu0
  %v2062 = vadd.f32 %v1716, %v2061
  %v2063 = vpop.f32.mrb[0].mxu0
  %2064 = vdwg.mxu0
  %2065 = vmatprep.subr.mxu0 0.0
  %2066 = vmatpush1.msra.mxu0 %v1696
  %2067 = vmatprep.subr.mxu0 0.0
  %2068 = vmatpush1.msra.mxu0 %v1697
  %2069 = vmatprep.subr.mxu0 0.0
  %2070 = vmatpush1.msra.mxu0 %v1698
  %2071 = vmatprep.subr.mxu0 0.0
  %2072 = vmatpush1.msra.mxu0 %v1699
  %2073 = vmatprep.subr.mxu0 0.0
  %2074 = vmatpush1.msra.mxu0 0.0
  %2075 = vmatprep.subr.mxu0 0.0
  %2076 = vmatpush1.msra.mxu0 0.0
  %2077 = vmatprep.subr.mxu0 0.0
  %2078 = vmatpush1.msra.mxu0 0.0
  %2079 = vmatprep.subr.mxu0 0.0
  %2080 = vmatpush1.msra.mxu0 0.0
  %2081 = vmatprep.subr.mxu0 0.0
  %2082 = vmatpush1.msra.mxu0 0.0
  %2083 = vmatprep.subr.mxu0 0.0
  %2084 = vmatpush1.msra.mxu0 0.0
  %2085 = vmatprep.subr.mxu0 0.0
  %2086 = vmatpush1.msra.mxu0 0.0
  %2087 = vmatprep.subr.mxu0 0.0
  %2088 = vmatpush1.msra.mxu0 0.0
  %2089 = vmatprep.subr.mxu0 0.0
  %2090 = vmatpush1.msra.mxu0 0.0
  %2091 = vmatprep.subr.mxu0 0.0
  %2092 = vmatpush1.msra.mxu0 0.0
  %2093 = vmatprep.subr.mxu0 0.0
  %2094 = vmatpush1.msra.mxu0 0.0
  %2095 = vmatprep.subr.mxu0 0.0
  %2096 = vmatpush1.msra.mxu0 0.0
  %2097 = vmatprep.subr.mxu0 0.0
  %2098 = vmatpush1.msra.mxu0 0.0
  %2099 = vmatprep.subr.mxu0 0.0
  %2100 = vmatpush1.msra.mxu0 0.0
  %2101 = vmatprep.subr.mxu0 0.0
  %2102 = vmatpush1.msra.mxu0 0.0
  %2103 = vmatprep.subr.mxu0 0.0
  %2104 = vmatpush1.msra.mxu0 0.0
  %2105 = vmatprep.subr.mxu0 0.0
  %2106 = vmatpush1.msra.mxu0 0.0
  %2107 = vmatprep.subr.mxu0 0.0
  %2108 = vmatpush1.msra.mxu0 0.0
  %2109 = vmatprep.subr.mxu0 0.0
  %2110 = vmatpush1.msra.mxu0 0.0
  %2111 = vmatprep.subr.mxu0 0.0
  %2112 = vmatpush1.msra.mxu0 0.0
  %2113 = vmatprep.subr.mxu0 0.0
  %2114 = vmatpush1.msra.mxu0 0.0
  %2115 = vmatprep.subr.mxu0 0.0
  %2116 = vmatpush1.msra.mxu0 0.0
  %2117 = vmatprep.subr.mxu0 0.0
  %2118 = vmatpush1.msra.mxu0 0.0
  %2119 = vmatprep.subr.mxu0 0.0
  %2120 = vmatpush1.msra.mxu0 0.0
  %2121 = vmatprep.subr.mxu0 0.0
  %2122 = vmatpush1.msra.mxu0 0.0
  %2123 = vmatprep.subr.mxu0 0.0
  %2124 = vmatpush1.msra.mxu0 0.0
  %2125 = vmatprep.subr.mxu0 0.0
  %2126 = vmatpush1.msra.mxu0 0.0
  %2127 = vmatprep.subr.mxu0 0.0
  %2128 = vmatpush1.msra.mxu0 0.0
  %2129 = vmatprep.mubr.f32.mxu0 0.0
  %2130 = vmatmul.mubr.f32.gmra.mrb[0].mxu0 %v1993
  %v2131 = vpop.f32.mrb[0].mxu0
  %v2132 = vadd.f32 0.0, %v2131
  %v2133 = vpop.f32.mrb[0].mxu0
  %2134 = vdwg.mxu0
  %v2135 = vadd.f32 %v832, %v2132
  %v2136 = vxor.u32 %v2135, 2147483648
  %v2137 = vmul.f32 %v2136, 1.442695
  %v2138 = vpow.pop %v2137
  %v2139 = vadd.f32 %v2138, 1.0
  %v2140 = vrcp.pop %v2139
  %v2141 = vmul.f32 1.0, %v2140
  %v2142 = vadd.f32 %v2132, %v1796
  %2144 = vrot.lane.b32.xlu0 %v2142, 64
  %v2145 = vpop.permute.xlu0 %2144
  %v2147 = vmul.f32 %v2141, %v2145
  %2149 = vrot.lane.b32.xlu0 %v2147, 64
  %v2150 = vpop.permute.xlu0 %2149
  %v2152 = vadd.f32 %v832, %v2150
  %v2153 = vtanh.pop %v2152
  %v2154 = vsub.f32 1.0, %v2141
  %2156 = vrot.lane.b32.xlu0 %v2153, 96
  %v2157 = vpop.permute.xlu0 %2156
  %v2159 = vmul.f32 %v2154, %v2157
  %v2160 = vmul.f32 %v2141, %v1989
  %v2161 = vadd.f32 %v2159, %v2160
  %2163 = vrot.lane.b32.xlu0 %v2161, 96
  %v2164 = vpop.permute.xlu0 %2163
  %v2165 = vsel %vm44, %v2164, 0
  %2167 = vmatprep.subr.mxu0 0.0
  %2168 = vmatpush1.msra.mxu0 %v1707
  %2169 = vmatprep.subr.mxu0 0.0
  %2170 = vmatpush1.msra.mxu0 %v1708
  %2171 = vmatprep.subr.mxu0 0.0
  %2172 = vmatpush1.msra.mxu0 %v1709
  %2173 = vmatprep.subr.mxu0 0.0
  %2174 = vmatpush1.msra.mxu0 %v1710
  %2175 = vmatprep.subr.mxu0 0.0
  %2176 = vmatpush1.msra.mxu0 0.0
  %2177 = vmatprep.subr.mxu0 0.0
  %2178 = vmatpush1.msra.mxu0 0.0
  %2179 = vmatprep.subr.mxu0 0.0
  %2180 = vmatpush1.msra.mxu0 0.0
  %2181 = vmatprep.subr.mxu0 0.0
  %2182 = vmatpush1.msra.mxu0 0.0
  %2183 = vmatprep.subr.mxu0 0.0
  %2184 = vmatpush1.msra.mxu0 0.0
  %2185 = vmatprep.subr.mxu0 0.0
  %2186 = vmatpush1.msra.mxu0 0.0
  %2187 = vmatprep.subr.mxu0 0.0
  %2188 = vmatpush1.msra.mxu0 0.0
  %2189 = vmatprep.subr.mxu0 0.0
  %2190 = vmatpush1.msra.mxu0 0.0
  %2191 = vmatprep.subr.mxu0 0.0
  %2192 = vmatpush1.msra.mxu0 0.0
  %2193 = vmatprep.subr.mxu0 0.0
  %2194 = vmatpush1.msra.mxu0 0.0
  %2195 = vmatprep.subr.mxu0 0.0
  %2196 = vmatpush1.msra.mxu0 0.0
  %2197 = vmatprep.subr.mxu0 0.0
  %2198 = vmatpush1.msra.mxu0 0.0
  %2199 = vmatprep.subr.mxu0 0.0
  %2200 = vmatpush1.msra.mxu0 0.0
  %2201 = vmatprep.subr.mxu0 0.0
  %2202 = vmatpush1.msra.mxu0 0.0
  %2203 = vmatprep.subr.mxu0 0.0
  %2204 = vmatpush1.msra.mxu0 0.0
  %2205 = vmatprep.subr.mxu0 0.0
  %2206 = vmatpush1.msra.mxu0 0.0
  %2207 = vmatprep.subr.mxu0 0.0
  %2208 = vmatpush1.msra.mxu0 0.0
  %2209 = vmatprep.subr.mxu0 0.0
  %2210 = vmatpush1.msra.mxu0 0.0
  %2211 = vmatprep.subr.mxu0 0.0
  %2212 = vmatpush1.msra.mxu0 0.0
  %2213 = vmatprep.subr.mxu0 0.0
  %2214 = vmatpush1.msra.mxu0 0.0
  %2215 = vmatprep.subr.mxu0 0.0
  %2216 = vmatpush1.msra.mxu0 0.0
  %2217 = vmatprep.subr.mxu0 0.0
  %2218 = vmatpush1.msra.mxu0 0.0
  %2219 = vmatprep.subr.mxu0 0.0
  %2220 = vmatpush1.msra.mxu0 0.0
  %2221 = vmatprep.subr.mxu0 0.0
  %2222 = vmatpush1.msra.mxu0 0.0
  %2223 = vmatprep.subr.mxu0 0.0
  %2224 = vmatpush1.msra.mxu0 0.0
  %2225 = vmatprep.subr.mxu0 0.0
  %2226 = vmatpush1.msra.mxu0 0.0
  %2227 = vmatprep.subr.mxu0 0.0
  %2228 = vmatpush1.msra.mxu0 0.0
  %2229 = vmatprep.subr.mxu0 0.0
  %2230 = vmatpush1.msra.mxu0 0.0
  %2231 = vmatprep.mubr.f32.mxu0 0.0
  %2232 = vmatmul.mubr.f32.gmra.mrb[0].mxu0 %v2165
  %v2233 = vpop.f32.mrb[0].mxu0
  %v2234 = vadd.f32 %v1716, %v2233
  %v2235 = vpop.f32.mrb[0].mxu0
  %2236 = vdwg.mxu0
  %2237 = vmatprep.subr.mxu0 0.0
  %2238 = vmatpush1.msra.mxu0 %v1696
  %2239 = vmatprep.subr.mxu0 0.0
  %2240 = vmatpush1.msra.mxu0 %v1697
  %2241 = vmatprep.subr.mxu0 0.0
  %2242 = vmatpush1.msra.mxu0 %v1698
  %2243 = vmatprep.subr.mxu0 0.0
  %2244 = vmatpush1.msra.mxu0 %v1699
  %2245 = vmatprep.subr.mxu0 0.0
  %2246 = vmatpush1.msra.mxu0 0.0
  %2247 = vmatprep.subr.mxu0 0.0
  %2248 = vmatpush1.msra.mxu0 0.0
  %2249 = vmatprep.subr.mxu0 0.0
  %2250 = vmatpush1.msra.mxu0 0.0
  %2251 = vmatprep.subr.mxu0 0.0
  %2252 = vmatpush1.msra.mxu0 0.0
  %2253 = vmatprep.subr.mxu0 0.0
  %2254 = vmatpush1.msra.mxu0 0.0
  %2255 = vmatprep.subr.mxu0 0.0
  %2256 = vmatpush1.msra.mxu0 0.0
  %2257 = vmatprep.subr.mxu0 0.0
  %2258 = vmatpush1.msra.mxu0 0.0
  %2259 = vmatprep.subr.mxu0 0.0
  %2260 = vmatpush1.msra.mxu0 0.0
  %2261 = vmatprep.subr.mxu0 0.0
  %2262 = vmatpush1.msra.mxu0 0.0
  %2263 = vmatprep.subr.mxu0 0.0
  %2264 = vmatpush1.msra.mxu0 0.0
  %2265 = vmatprep.subr.mxu0 0.0
  %2266 = vmatpush1.msra.mxu0 0.0
  %2267 = vmatprep.subr.mxu0 0.0
  %2268 = vmatpush1.msra.mxu0 0.0
  %2269 = vmatprep.subr.mxu0 0.0
  %2270 = vmatpush1.msra.mxu0 0.0
  %2271 = vmatprep.subr.mxu0 0.0
  %2272 = vmatpush1.msra.mxu0 0.0
  %2273 = vmatprep.subr.mxu0 0.0
  %2274 = vmatpush1.msra.mxu0 0.0
  %2275 = vmatprep.subr.mxu0 0.0
  %2276 = vmatpush1.msra.mxu0 0.0
  %2277 = vmatprep.subr.mxu0 0.0
  %2278 = vmatpush1.msra.mxu0 0.0
  %2279 = vmatprep.subr.mxu0 0.0
  %2280 = vmatpush1.msra.mxu0 0.0
  %2281 = vmatprep.subr.mxu0 0.0
  %2282 = vmatpush1.msra.mxu0 0.0
  %2283 = vmatprep.subr.mxu0 0.0
  %2284 = vmatpush1.msra.mxu0 0.0
  %2285 = vmatprep.subr.mxu0 0.0
  %2286 = vmatpush1.msra.mxu0 0.0
  %2287 = vmatprep.subr.mxu0 0.0
  %2288 = vmatpush1.msra.mxu0 0.0
  %2289 = vmatprep.subr.mxu0 0.0
  %2290 = vmatpush1.msra.mxu0 0.0
  %2291 = vmatprep.subr.mxu0 0.0
  %2292 = vmatpush1.msra.mxu0 0.0
  %2293 = vmatprep.subr.mxu0 0.0
  %2294 = vmatpush1.msra.mxu0 0.0
  %2295 = vmatprep.subr.mxu0 0.0
  %2296 = vmatpush1.msra.mxu0 0.0
  %2297 = vmatprep.subr.mxu0 0.0
  %2298 = vmatpush1.msra.mxu0 0.0
  %2299 = vmatprep.subr.mxu0 0.0
  %2300 = vmatpush1.msra.mxu0 0.0
  %2301 = vmatprep.mubr.f32.mxu0 0.0
  %2302 = vmatmul.mubr.f32.gmra.mrb[0].mxu0 %v2165
  %v2303 = vpop.f32.mrb[0].mxu0
  %v2304 = vadd.f32 0.0, %v2303
  %v2305 = vpop.f32.mrb[0].mxu0
  %2306 = vdwg.mxu0
  %v2307 = vadd.f32 %v1004, %v2304
  %v2308 = vxor.u32 %v2307, 2147483648
  %v2309 = vmul.f32 %v2308, 1.442695
  %v2310 = vpow.pop %v2309
  %v2311 = vadd.f32 %v2310, 1.0
  %v2312 = vrcp.pop %v2311
  %v2313 = vmul.f32 1.0, %v2312
  %v2314 = vadd.f32 %v2304, %v1796
  %2316 = vrot.lane.b32.xlu0 %v2314, 64
  %v2317 = vpop.permute.xlu0 %2316
  %v2319 = vmul.f32 %v2313, %v2317
  %2321 = vrot.lane.b32.xlu0 %v2319, 64
  %v2322 = vpop.permute.xlu0 %2321
  %v2324 = vadd.f32 %v1004, %v2322
  %v2325 = vtanh.pop %v2324
  %v2326 = vsub.f32 1.0, %v2313
  %2328 = vrot.lane.b32.xlu0 %v2325, 96
  %v2329 = vpop.permute.xlu0 %2328
  %v2331 = vmul.f32 %v2326, %v2329
  %v2332 = vmul.f32 %v2313, %v2161
  %v2333 = vadd.f32 %v2331, %v2332
  %2335 = vrot.lane.b32.xlu0 %v2333, 96
  %v2336 = vpop.permute.xlu0 %2335
  %v2337 = vsel %vm44, %v2336, 0
  %2339 = vmatprep.subr.mxu0 0.0
  %2340 = vmatpush1.msra.mxu0 %v1707
  %2341 = vmatprep.subr.mxu0 0.0
  %2342 = vmatpush1.msra.mxu0 %v1708
  %2343 = vmatprep.subr.mxu0 0.0
  %2344 = vmatpush1.msra.mxu0 %v1709
  %2345 = vmatprep.subr.mxu0 0.0
  %2346 = vmatpush1.msra.mxu0 %v1710
  %2347 = vmatprep.subr.mxu0 0.0
  %2348 = vmatpush1.msra.mxu0 0.0
  %2349 = vmatprep.subr.mxu0 0.0
  %2350 = vmatpush1.msra.mxu0 0.0
  %2351 = vmatprep.subr.mxu0 0.0
  %2352 = vmatpush1.msra.mxu0 0.0
  %2353 = vmatprep.subr.mxu0 0.0
  %2354 = vmatpush1.msra.mxu0 0.0
  %2355 = vmatprep.subr.mxu0 0.0
  %2356 = vmatpush1.msra.mxu0 0.0
  %2357 = vmatprep.subr.mxu0 0.0
  %2358 = vmatpush1.msra.mxu0 0.0
  %2359 = vmatprep.subr.mxu0 0.0
  %2360 = vmatpush1.msra.mxu0 0.0
  %2361 = vmatprep.subr.mxu0 0.0
  %2362 = vmatpush1.msra.mxu0 0.0
  %2363 = vmatprep.subr.mxu0 0.0
  %2364 = vmatpush1.msra.mxu0 0.0
  %2365 = vmatprep.subr.mxu0 0.0
  %2366 = vmatpush1.msra.mxu0 0.0
  %2367 = vmatprep.subr.mxu0 0.0
  %2368 = vmatpush1.msra.mxu0 0.0
  %2369 = vmatprep.subr.mxu0 0.0
  %2370 = vmatpush1.msra.mxu0 0.0
  %2371 = vmatprep.subr.mxu0 0.0
  %2372 = vmatpush1.msra.mxu0 0.0
  %2373 = vmatprep.subr.mxu0 0.0
  %2374 = vmatpush1.msra.mxu0 0.0
  %2375 = vmatprep.subr.mxu0 0.0
  %2376 = vmatpush1.msra.mxu0 0.0
  %2377 = vmatprep.subr.mxu0 0.0
  %2378 = vmatpush1.msra.mxu0 0.0
  %2379 = vmatprep.subr.mxu0 0.0
  %2380 = vmatpush1.msra.mxu0 0.0
  %2381 = vmatprep.subr.mxu0 0.0
  %2382 = vmatpush1.msra.mxu0 0.0
  %2383 = vmatprep.subr.mxu0 0.0
  %2384 = vmatpush1.msra.mxu0 0.0
  %2385 = vmatprep.subr.mxu0 0.0
  %2386 = vmatpush1.msra.mxu0 0.0
  %2387 = vmatprep.subr.mxu0 0.0
  %2388 = vmatpush1.msra.mxu0 0.0
  %2389 = vmatprep.subr.mxu0 0.0
  %2390 = vmatpush1.msra.mxu0 0.0
  %2391 = vmatprep.subr.mxu0 0.0
  %2392 = vmatpush1.msra.mxu0 0.0
  %2393 = vmatprep.subr.mxu0 0.0
  %2394 = vmatpush1.msra.mxu0 0.0
  %2395 = vmatprep.subr.mxu0 0.0
  %2396 = vmatpush1.msra.mxu0 0.0
  %2397 = vmatprep.subr.mxu0 0.0
  %2398 = vmatpush1.msra.mxu0 0.0
  %2399 = vmatprep.subr.mxu0 0.0
  %2400 = vmatpush1.msra.mxu0 0.0
  %2401 = vmatprep.subr.mxu0 0.0
  %2402 = vmatpush1.msra.mxu0 0.0
  %2403 = vmatprep.mubr.f32.mxu0 0.0
  %2404 = vmatmul.mubr.f32.gmra.mrb[0].mxu0 %v2337
  %v2405 = vpop.f32.mrb[0].mxu0
  %v2406 = vadd.f32 %v1716, %v2405
  %v2407 = vpop.f32.mrb[0].mxu0
  %2408 = vdwg.mxu0
  %2409 = vmatprep.subr.mxu0 0.0
  %2410 = vmatpush1.msra.mxu0 %v1696
  %2411 = vmatprep.subr.mxu0 0.0
  %2412 = vmatpush1.msra.mxu0 %v1697
  %2413 = vmatprep.subr.mxu0 0.0
  %2414 = vmatpush1.msra.mxu0 %v1698
  %2415 = vmatprep.subr.mxu0 0.0
  %2416 = vmatpush1.msra.mxu0 %v1699
  %2417 = vmatprep.subr.mxu0 0.0
  %2418 = vmatpush1.msra.mxu0 0.0
  %2419 = vmatprep.subr.mxu0 0.0
  %2420 = vmatpush1.msra.mxu0 0.0
  %2421 = vmatprep.subr.mxu0 0.0
  %2422 = vmatpush1.msra.mxu0 0.0
  %2423 = vmatprep.subr.mxu0 0.0
  %2424 = vmatpush1.msra.mxu0 0.0
  %2425 = vmatprep.subr.mxu0 0.0
  %2426 = vmatpush1.msra.mxu0 0.0
  %2427 = vmatprep.subr.mxu0 0.0
  %2428 = vmatpush1.msra.mxu0 0.0
  %2429 = vmatprep.subr.mxu0 0.0
  %2430 = vmatpush1.msra.mxu0 0.0
  %2431 = vmatprep.subr.mxu0 0.0
  %2432 = vmatpush1.msra.mxu0 0.0
  %2433 = vmatprep.subr.mxu0 0.0
  %2434 = vmatpush1.msra.mxu0 0.0
  %2435 = vmatprep.subr.mxu0 0.0
  %2436 = vmatpush1.msra.mxu0 0.0
  %2437 = vmatprep.subr.mxu0 0.0
  %2438 = vmatpush1.msra.mxu0 0.0
  %2439 = vmatprep.subr.mxu0 0.0
  %2440 = vmatpush1.msra.mxu0 0.0
  %2441 = vmatprep.subr.mxu0 0.0
  %2442 = vmatpush1.msra.mxu0 0.0
  %2443 = vmatprep.subr.mxu0 0.0
  %2444 = vmatpush1.msra.mxu0 0.0
  %2445 = vmatprep.subr.mxu0 0.0
  %2446 = vmatpush1.msra.mxu0 0.0
  %2447 = vmatprep.subr.mxu0 0.0
  %2448 = vmatpush1.msra.mxu0 0.0
  %2449 = vmatprep.subr.mxu0 0.0
  %2450 = vmatpush1.msra.mxu0 0.0
  %2451 = vmatprep.subr.mxu0 0.0
  %2452 = vmatpush1.msra.mxu0 0.0
  %2453 = vmatprep.subr.mxu0 0.0
  %2454 = vmatpush1.msra.mxu0 0.0
  %2455 = vmatprep.subr.mxu0 0.0
  %2456 = vmatpush1.msra.mxu0 0.0
  %2457 = vmatprep.subr.mxu0 0.0
  %2458 = vmatpush1.msra.mxu0 0.0
  %2459 = vmatprep.subr.mxu0 0.0
  %2460 = vmatpush1.msra.mxu0 0.0
  %2461 = vmatprep.subr.mxu0 0.0
  %2462 = vmatpush1.msra.mxu0 0.0
  %2463 = vmatprep.subr.mxu0 0.0
  %2464 = vmatpush1.msra.mxu0 0.0
  %2465 = vmatprep.subr.mxu0 0.0
  %2466 = vmatpush1.msra.mxu0 0.0
  %2467 = vmatprep.subr.mxu0 0.0
  %2468 = vmatpush1.msra.mxu0 0.0
  %2469 = vmatprep.subr.mxu0 0.0
  %2470 = vmatpush1.msra.mxu0 0.0
  %2471 = vmatprep.subr.mxu0 0.0
  %2472 = vmatpush1.msra.mxu0 0.0
  %2473 = vmatprep.mubr.f32.mxu0 0.0
  %2474 = vmatmul.mubr.f32.gmra.mrb[0].mxu0 %v2337
  %v2475 = vpop.f32.mrb[0].mxu0
  %v2476 = vadd.f32 0.0, %v2475
  %v2477 = vpop.f32.mrb[0].mxu0
  %2478 = vdwg.mxu0
  %v2479 = vadd.f32 %v1176, %v2476
  %v2480 = vxor.u32 %v2479, 2147483648
  %v2481 = vmul.f32 %v2480, 1.442695
  %v2482 = vpow.pop %v2481
  %v2483 = vadd.f32 %v2482, 1.0
  %v2484 = vrcp.pop %v2483
  %v2485 = vmul.f32 1.0, %v2484
  %v2486 = vadd.f32 %v2476, %v1796
  %2488 = vrot.lane.b32.xlu0 %v2486, 64
  %v2489 = vpop.permute.xlu0 %2488
  %v2491 = vmul.f32 %v2485, %v2489
  %2493 = vrot.lane.b32.xlu0 %v2491, 64
  %v2494 = vpop.permute.xlu0 %2493
  %v2496 = vadd.f32 %v1176, %v2494
  %v2497 = vtanh.pop %v2496
  %v2498 = vsub.f32 1.0, %v2485
  %2500 = vrot.lane.b32.xlu0 %v2497, 96
  %v2501 = vpop.permute.xlu0 %2500
  %v2503 = vmul.f32 %v2498, %v2501
  %v2504 = vmul.f32 %v2485, %v2333
  %v2505 = vadd.f32 %v2503, %v2504
  %2507 = vrot.lane.b32.xlu0 %v2505, 96
  %v2508 = vpop.permute.xlu0 %2507
  %v2509 = vsel %vm44, %v2508, 0
  %2511 = vmatprep.subr.mxu0 0.0
  %2512 = vmatpush1.msra.mxu0 %v1707
  %2513 = vmatprep.subr.mxu0 0.0
  %2514 = vmatpush1.msra.mxu0 %v1708
  %2515 = vmatprep.subr.mxu0 0.0
  %2516 = vmatpush1.msra.mxu0 %v1709
  %2517 = vmatprep.subr.mxu0 0.0
  %2518 = vmatpush1.msra.mxu0 %v1710
  %2519 = vmatprep.subr.mxu0 0.0
  %2520 = vmatpush1.msra.mxu0 0.0
  %2521 = vmatprep.subr.mxu0 0.0
  %2522 = vmatpush1.msra.mxu0 0.0
  %2523 = vmatprep.subr.mxu0 0.0
  %2524 = vmatpush1.msra.mxu0 0.0
  %2525 = vmatprep.subr.mxu0 0.0
  %2526 = vmatpush1.msra.mxu0 0.0
  %2527 = vmatprep.subr.mxu0 0.0
  %2528 = vmatpush1.msra.mxu0 0.0
  %2529 = vmatprep.subr.mxu0 0.0
  %2530 = vmatpush1.msra.mxu0 0.0
  %2531 = vmatprep.subr.mxu0 0.0
  %2532 = vmatpush1.msra.mxu0 0.0
  %2533 = vmatprep.subr.mxu0 0.0
  %2534 = vmatpush1.msra.mxu0 0.0
  %2535 = vmatprep.subr.mxu0 0.0
  %2536 = vmatpush1.msra.mxu0 0.0
  %2537 = vmatprep.subr.mxu0 0.0
  %2538 = vmatpush1.msra.mxu0 0.0
  %2539 = vmatprep.subr.mxu0 0.0
  %2540 = vmatpush1.msra.mxu0 0.0
  %2541 = vmatprep.subr.mxu0 0.0
  %2542 = vmatpush1.msra.mxu0 0.0
  %2543 = vmatprep.subr.mxu0 0.0
  %2544 = vmatpush1.msra.mxu0 0.0
  %2545 = vmatprep.subr.mxu0 0.0
  %2546 = vmatpush1.msra.mxu0 0.0
  %2547 = vmatprep.subr.mxu0 0.0
  %2548 = vmatpush1.msra.mxu0 0.0
  %2549 = vmatprep.subr.mxu0 0.0
  %2550 = vmatpush1.msra.mxu0 0.0
  %2551 = vmatprep.subr.mxu0 0.0
  %2552 = vmatpush1.msra.mxu0 0.0
  %2553 = vmatprep.subr.mxu0 0.0
  %2554 = vmatpush1.msra.mxu0 0.0
  %2555 = vmatprep.subr.mxu0 0.0
  %2556 = vmatpush1.msra.mxu0 0.0
  %2557 = vmatprep.subr.mxu0 0.0
  %2558 = vmatpush1.msra.mxu0 0.0
  %2559 = vmatprep.subr.mxu0 0.0
  %2560 = vmatpush1.msra.mxu0 0.0
  %2561 = vmatprep.subr.mxu0 0.0
  %2562 = vmatpush1.msra.mxu0 0.0
  %2563 = vmatprep.subr.mxu0 0.0
  %2564 = vmatpush1.msra.mxu0 0.0
  %2565 = vmatprep.subr.mxu0 0.0
  %2566 = vmatpush1.msra.mxu0 0.0
  %2567 = vmatprep.subr.mxu0 0.0
  %2568 = vmatpush1.msra.mxu0 0.0
  %2569 = vmatprep.subr.mxu0 0.0
  %2570 = vmatpush1.msra.mxu0 0.0
  %2571 = vmatprep.subr.mxu0 0.0
  %2572 = vmatpush1.msra.mxu0 0.0
  %2573 = vmatprep.subr.mxu0 0.0
  %2574 = vmatpush1.msra.mxu0 0.0
  %2575 = vmatprep.mubr.f32.mxu0 0.0
  %2576 = vmatmul.mubr.f32.gmra.mrb[0].mxu0 %v2509
  %v2577 = vpop.f32.mrb[0].mxu0
  %v2578 = vadd.f32 %v1716, %v2577
  %v2579 = vpop.f32.mrb[0].mxu0
  %2580 = vdwg.mxu0
  %2581 = vmatprep.subr.mxu0 0.0
  %2582 = vmatpush1.msra.mxu0 %v1696
  %2583 = vmatprep.subr.mxu0 0.0
  %2584 = vmatpush1.msra.mxu0 %v1697
  %2585 = vmatprep.subr.mxu0 0.0
  %2586 = vmatpush1.msra.mxu0 %v1698
  %2587 = vmatprep.subr.mxu0 0.0
  %2588 = vmatpush1.msra.mxu0 %v1699
  %2589 = vmatprep.subr.mxu0 0.0
  %2590 = vmatpush1.msra.mxu0 0.0
  %2591 = vmatprep.subr.mxu0 0.0
  %2592 = vmatpush1.msra.mxu0 0.0
  %2593 = vmatprep.subr.mxu0 0.0
  %2594 = vmatpush1.msra.mxu0 0.0
  %2595 = vmatprep.subr.mxu0 0.0
  %2596 = vmatpush1.msra.mxu0 0.0
  %2597 = vmatprep.subr.mxu0 0.0
  %2598 = vmatpush1.msra.mxu0 0.0
  %2599 = vmatprep.subr.mxu0 0.0
  %2600 = vmatpush1.msra.mxu0 0.0
  %2601 = vmatprep.subr.mxu0 0.0
  %2602 = vmatpush1.msra.mxu0 0.0
  %2603 = vmatprep.subr.mxu0 0.0
  %2604 = vmatpush1.msra.mxu0 0.0
  %2605 = vmatprep.subr.mxu0 0.0
  %2606 = vmatpush1.msra.mxu0 0.0
  %2607 = vmatprep.subr.mxu0 0.0
  %2608 = vmatpush1.msra.mxu0 0.0
  %2609 = vmatprep.subr.mxu0 0.0
  %2610 = vmatpush1.msra.mxu0 0.0
  %2611 = vmatprep.subr.mxu0 0.0
  %2612 = vmatpush1.msra.mxu0 0.0
  %2613 = vmatprep.subr.mxu0 0.0
  %2614 = vmatpush1.msra.mxu0 0.0
  %2615 = vmatprep.subr.mxu0 0.0
  %2616 = vmatpush1.msra.mxu0 0.0
  %2617 = vmatprep.subr.mxu0 0.0
  %2618 = vmatpush1.msra.mxu0 0.0
  %2619 = vmatprep.subr.mxu0 0.0
  %2620 = vmatpush1.msra.mxu0 0.0
  %2621 = vmatprep.subr.mxu0 0.0
  %2622 = vmatpush1.msra.mxu0 0.0
  %2623 = vmatprep.subr.mxu0 0.0
  %2624 = vmatpush1.msra.mxu0 0.0
  %2625 = vmatprep.subr.mxu0 0.0
  %2626 = vmatpush1.msra.mxu0 0.0
  %2627 = vmatprep.subr.mxu0 0.0
  %2628 = vmatpush1.msra.mxu0 0.0
  %2629 = vmatprep.subr.mxu0 0.0
  %2630 = vmatpush1.msra.mxu0 0.0
  %2631 = vmatprep.subr.mxu0 0.0
  %2632 = vmatpush1.msra.mxu0 0.0
  %2633 = vmatprep.subr.mxu0 0.0
  %2634 = vmatpush1.msra.mxu0 0.0
  %2635 = vmatprep.subr.mxu0 0.0
  %2636 = vmatpush1.msra.mxu0 0.0
  %2637 = vmatprep.subr.mxu0 0.0
  %2638 = vmatpush1.msra.mxu0 0.0
  %2639 = vmatprep.subr.mxu0 0.0
  %2640 = vmatpush1.msra.mxu0 0.0
  %2641 = vmatprep.subr.mxu0 0.0
  %2642 = vmatpush1.msra.mxu0 0.0
  %2643 = vmatprep.subr.mxu0 0.0
  %2644 = vmatpush1.msra.mxu0 0.0
  %2645 = vmatprep.mubr.f32.mxu0 0.0
  %2646 = vmatmul.mubr.f32.gmra.mrb[0].mxu0 %v2509
  %v2647 = vpop.f32.mrb[0].mxu0
  %v2648 = vadd.f32 0.0, %v2647
  %v2649 = vpop.f32.mrb[0].mxu0
  %2650 = vdwg.mxu0
  %v2651 = vadd.f32 %v1348, %v2648
  %v2652 = vxor.u32 %v2651, 2147483648
  %v2653 = vmul.f32 %v2652, 1.442695
  %v2654 = vpow.pop %v2653
  %v2655 = vadd.f32 %v2654, 1.0
  %v2656 = vrcp.pop %v2655
  %v2657 = vmul.f32 1.0, %v2656
  %v2658 = vadd.f32 %v2648, %v1796
  %2660 = vrot.lane.b32.xlu0 %v2658, 64
  %v2661 = vpop.permute.xlu0 %2660
  %v2663 = vmul.f32 %v2657, %v2661
  %2665 = vrot.lane.b32.xlu0 %v2663, 64
  %v2666 = vpop.permute.xlu0 %2665
  %v2668 = vadd.f32 %v1348, %v2666
  %v2669 = vtanh.pop %v2668
  %v2670 = vsub.f32 1.0, %v2657
  %2672 = vrot.lane.b32.xlu0 %v2669, 96
  %v2673 = vpop.permute.xlu0 %2672
  %v2675 = vmul.f32 %v2670, %v2673
  %v2676 = vmul.f32 %v2657, %v2505
  %v2677 = vadd.f32 %v2675, %v2676
  %2679 = vrot.lane.b32.xlu0 %v2677, 96
  %v2680 = vpop.permute.xlu0 %2679
  %v2681 = vsel %vm44, %v2680, 0
  %2683 = vmatprep.subr.mxu0 0.0
  %2684 = vmatpush1.msra.mxu0 %v1707
  %2685 = vmatprep.subr.mxu0 0.0
  %2686 = vmatpush1.msra.mxu0 %v1708
  %2687 = vmatprep.subr.mxu0 0.0
  %2688 = vmatpush1.msra.mxu0 %v1709
  %2689 = vmatprep.subr.mxu0 0.0
  %2690 = vmatpush1.msra.mxu0 %v1710
  %2691 = vmatprep.subr.mxu0 0.0
  %2692 = vmatpush1.msra.mxu0 0.0
  %2693 = vmatprep.subr.mxu0 0.0
  %2694 = vmatpush1.msra.mxu0 0.0
  %2695 = vmatprep.subr.mxu0 0.0
  %2696 = vmatpush1.msra.mxu0 0.0
  %2697 = vmatprep.subr.mxu0 0.0
  %2698 = vmatpush1.msra.mxu0 0.0
  %2699 = vmatprep.subr.mxu0 0.0
  %2700 = vmatpush1.msra.mxu0 0.0
  %2701 = vmatprep.subr.mxu0 0.0
  %2702 = vmatpush1.msra.mxu0 0.0
  %2703 = vmatprep.subr.mxu0 0.0
  %2704 = vmatpush1.msra.mxu0 0.0
  %2705 = vmatprep.subr.mxu0 0.0
  %2706 = vmatpush1.msra.mxu0 0.0
  %2707 = vmatprep.subr.mxu0 0.0
  %2708 = vmatpush1.msra.mxu0 0.0
  %2709 = vmatprep.subr.mxu0 0.0
  %2710 = vmatpush1.msra.mxu0 0.0
  %2711 = vmatprep.subr.mxu0 0.0
  %2712 = vmatpush1.msra.mxu0 0.0
  %2713 = vmatprep.subr.mxu0 0.0
  %2714 = vmatpush1.msra.mxu0 0.0
  %2715 = vmatprep.subr.mxu0 0.0
  %2716 = vmatpush1.msra.mxu0 0.0
  %2717 = vmatprep.subr.mxu0 0.0
  %2718 = vmatpush1.msra.mxu0 0.0
  %2719 = vmatprep.subr.mxu0 0.0
  %2720 = vmatpush1.msra.mxu0 0.0
  %2721 = vmatprep.subr.mxu0 0.0
  %2722 = vmatpush1.msra.mxu0 0.0
  %2723 = vmatprep.subr.mxu0 0.0
  %2724 = vmatpush1.msra.mxu0 0.0
  %2725 = vmatprep.subr.mxu0 0.0
  %2726 = vmatpush1.msra.mxu0 0.0
  %2727 = vmatprep.subr.mxu0 0.0
  %2728 = vmatpush1.msra.mxu0 0.0
  %2729 = vmatprep.subr.mxu0 0.0
  %2730 = vmatpush1.msra.mxu0 0.0
  %2731 = vmatprep.subr.mxu0 0.0
  %2732 = vmatpush1.msra.mxu0 0.0
  %2733 = vmatprep.subr.mxu0 0.0
  %2734 = vmatpush1.msra.mxu0 0.0
  %2735 = vmatprep.subr.mxu0 0.0
  %2736 = vmatpush1.msra.mxu0 0.0
  %2737 = vmatprep.subr.mxu0 0.0
  %2738 = vmatpush1.msra.mxu0 0.0
  %2739 = vmatprep.subr.mxu0 0.0
  %2740 = vmatpush1.msra.mxu0 0.0
  %2741 = vmatprep.subr.mxu0 0.0
  %2742 = vmatpush1.msra.mxu0 0.0
  %2743 = vmatprep.subr.mxu0 0.0
  %2744 = vmatpush1.msra.mxu0 0.0
  %2745 = vmatprep.subr.mxu0 0.0
  %2746 = vmatpush1.msra.mxu0 0.0
  %2747 = vmatprep.mubr.f32.mxu0 0.0
  %2748 = vmatmul.mubr.f32.gmra.mrb[0].mxu0 %v2681
  %v2749 = vpop.f32.mrb[0].mxu0
  %v2750 = vadd.f32 %v1716, %v2749
  %v2751 = vpop.f32.mrb[0].mxu0
  %2752 = vdwg.mxu0
  %2753 = vmatprep.subr.mxu0 0.0
  %2754 = vmatpush1.msra.mxu0 %v1696
  %2755 = vmatprep.subr.mxu0 0.0
  %2756 = vmatpush1.msra.mxu0 %v1697
  %2757 = vmatprep.subr.mxu0 0.0
  %2758 = vmatpush1.msra.mxu0 %v1698
  %2759 = vmatprep.subr.mxu0 0.0
  %2760 = vmatpush1.msra.mxu0 %v1699
  %2761 = vmatprep.subr.mxu0 0.0
  %2762 = vmatpush1.msra.mxu0 0.0
  %2763 = vmatprep.subr.mxu0 0.0
  %2764 = vmatpush1.msra.mxu0 0.0
  %2765 = vmatprep.subr.mxu0 0.0
  %2766 = vmatpush1.msra.mxu0 0.0
  %2767 = vmatprep.subr.mxu0 0.0
  %2768 = vmatpush1.msra.mxu0 0.0
  %2769 = vmatprep.subr.mxu0 0.0
  %2770 = vmatpush1.msra.mxu0 0.0
  %2771 = vmatprep.subr.mxu0 0.0
  %2772 = vmatpush1.msra.mxu0 0.0
  %2773 = vmatprep.subr.mxu0 0.0
  %2774 = vmatpush1.msra.mxu0 0.0
  %2775 = vmatprep.subr.mxu0 0.0
  %2776 = vmatpush1.msra.mxu0 0.0
  %2777 = vmatprep.subr.mxu0 0.0
  %2778 = vmatpush1.msra.mxu0 0.0
  %2779 = vmatprep.subr.mxu0 0.0
  %2780 = vmatpush1.msra.mxu0 0.0
  %2781 = vmatprep.subr.mxu0 0.0
  %2782 = vmatpush1.msra.mxu0 0.0
  %2783 = vmatprep.subr.mxu0 0.0
  %2784 = vmatpush1.msra.mxu0 0.0
  %2785 = vmatprep.subr.mxu0 0.0
  %2786 = vmatpush1.msra.mxu0 0.0
  %2787 = vmatprep.subr.mxu0 0.0
  %2788 = vmatpush1.msra.mxu0 0.0
  %2789 = vmatprep.subr.mxu0 0.0
  %2790 = vmatpush1.msra.mxu0 0.0
  %2791 = vmatprep.subr.mxu0 0.0
  %2792 = vmatpush1.msra.mxu0 0.0
  %2793 = vmatprep.subr.mxu0 0.0
  %2794 = vmatpush1.msra.mxu0 0.0
  %2795 = vmatprep.subr.mxu0 0.0
  %2796 = vmatpush1.msra.mxu0 0.0
  %2797 = vmatprep.subr.mxu0 0.0
  %2798 = vmatpush1.msra.mxu0 0.0
  %2799 = vmatprep.subr.mxu0 0.0
  %2800 = vmatpush1.msra.mxu0 0.0
  %2801 = vmatprep.subr.mxu0 0.0
  %2802 = vmatpush1.msra.mxu0 0.0
  %2803 = vmatprep.subr.mxu0 0.0
  %2804 = vmatpush1.msra.mxu0 0.0
  %2805 = vmatprep.subr.mxu0 0.0
  %2806 = vmatpush1.msra.mxu0 0.0
  %2807 = vmatprep.subr.mxu0 0.0
  %2808 = vmatpush1.msra.mxu0 0.0
  %2809 = vmatprep.subr.mxu0 0.0
  %2810 = vmatpush1.msra.mxu0 0.0
  %2811 = vmatprep.subr.mxu0 0.0
  %2812 = vmatpush1.msra.mxu0 0.0
  %2813 = vmatprep.subr.mxu0 0.0
  %2814 = vmatpush1.msra.mxu0 0.0
  %2815 = vmatprep.subr.mxu0 0.0
  %2816 = vmatpush1.msra.mxu0 0.0
  %2817 = vmatprep.mubr.f32.mxu0 0.0
  %2818 = vmatmul.mubr.f32.gmra.mrb[0].mxu0 %v2681
  %v2819 = vpop.f32.mrb[0].mxu0
  %v2820 = vadd.f32 0.0, %v2819
  %v2821 = vpop.f32.mrb[0].mxu0
  %2822 = vdwg.mxu0
  %v2823 = vadd.f32 %v1520, %v2820
  %v2824 = vxor.u32 %v2823, 2147483648
  %v2825 = vmul.f32 %v2824, 1.442695
  %v2826 = vpow.pop %v2825
  %v2827 = vadd.f32 %v2826, 1.0
  %v2828 = vrcp.pop %v2827
  %v2829 = vmul.f32 1.0, %v2828
  %v2830 = vadd.f32 %v2820, %v1796
  %2832 = vrot.lane.b32.xlu0 %v2830, 64
  %v2833 = vpop.permute.xlu0 %2832
  %v2835 = vmul.f32 %v2829, %v2833
  %2837 = vrot.lane.b32.xlu0 %v2835, 64
  %v2838 = vpop.permute.xlu0 %2837
  %v2840 = vadd.f32 %v1520, %v2838
  %v2841 = vtanh.pop %v2840
  %v2842 = vsub.f32 1.0, %v2829
  %2844 = vrot.lane.b32.xlu0 %v2841, 96
  %v2845 = vpop.permute.xlu0 %2844
  %v2847 = vmul.f32 %v2842, %v2845
  %v2848 = vmul.f32 %v2829, %v2677
  %v2849 = vadd.f32 %v2847, %v2848
  %2851 = vrot.lane.b32.xlu0 %v2849, 96
  %v2852 = vpop.permute.xlu0 %2851
  %v2853 = vsel %vm44, %v2852, 0
  %2855 = vmatprep.subr.mxu0 0.0
  %2856 = vmatpush1.msra.mxu0 %v1707
  %2857 = vmatprep.subr.mxu0 0.0
  %2858 = vmatpush1.msra.mxu0 %v1708
  %2859 = vmatprep.subr.mxu0 0.0
  %2860 = vmatpush1.msra.mxu0 %v1709
  %2861 = vmatprep.subr.mxu0 0.0
  %2862 = vmatpush1.msra.mxu0 %v1710
  %2863 = vmatprep.subr.mxu0 0.0
  %2864 = vmatpush1.msra.mxu0 0.0
  %2865 = vmatprep.subr.mxu0 0.0
  %2866 = vmatpush1.msra.mxu0 0.0
  %2867 = vmatprep.subr.mxu0 0.0
  %2868 = vmatpush1.msra.mxu0 0.0
  %2869 = vmatprep.subr.mxu0 0.0
  %2870 = vmatpush1.msra.mxu0 0.0
  %2871 = vmatprep.subr.mxu0 0.0
  %2872 = vmatpush1.msra.mxu0 0.0
  %2873 = vmatprep.subr.mxu0 0.0
  %2874 = vmatpush1.msra.mxu0 0.0
  %2875 = vmatprep.subr.mxu0 0.0
  %2876 = vmatpush1.msra.mxu0 0.0
  %2877 = vmatprep.subr.mxu0 0.0
  %2878 = vmatpush1.msra.mxu0 0.0
  %2879 = vmatprep.subr.mxu0 0.0
  %2880 = vmatpush1.msra.mxu0 0.0
  %2881 = vmatprep.subr.mxu0 0.0
  %2882 = vmatpush1.msra.mxu0 0.0
  %2883 = vmatprep.subr.mxu0 0.0
  %2884 = vmatpush1.msra.mxu0 0.0
  %2885 = vmatprep.subr.mxu0 0.0
  %2886 = vmatpush1.msra.mxu0 0.0
  %2887 = vmatprep.subr.mxu0 0.0
  %2888 = vmatpush1.msra.mxu0 0.0
  %2889 = vmatprep.subr.mxu0 0.0
  %2890 = vmatpush1.msra.mxu0 0.0
  %2891 = vmatprep.subr.mxu0 0.0
  %2892 = vmatpush1.msra.mxu0 0.0
  %2893 = vmatprep.subr.mxu0 0.0
  %2894 = vmatpush1.msra.mxu0 0.0
  %2895 = vmatprep.subr.mxu0 0.0
  %2896 = vmatpush1.msra.mxu0 0.0
  %2897 = vmatprep.subr.mxu0 0.0
  %2898 = vmatpush1.msra.mxu0 0.0
  %2899 = vmatprep.subr.mxu0 0.0
  %2900 = vmatpush1.msra.mxu0 0.0
  %2901 = vmatprep.subr.mxu0 0.0
  %2902 = vmatpush1.msra.mxu0 0.0
  %2903 = vmatprep.subr.mxu0 0.0
  %2904 = vmatpush1.msra.mxu0 0.0
  %2905 = vmatprep.subr.mxu0 0.0
  %2906 = vmatpush1.msra.mxu0 0.0
  %2907 = vmatprep.subr.mxu0 0.0
  %2908 = vmatpush1.msra.mxu0 0.0
  %2909 = vmatprep.subr.mxu0 0.0
  %2910 = vmatpush1.msra.mxu0 0.0
  %2911 = vmatprep.subr.mxu0 0.0
  %2912 = vmatpush1.msra.mxu0 0.0
  %2913 = vmatprep.subr.mxu0 0.0
  %2914 = vmatpush1.msra.mxu0 0.0
  %2915 = vmatprep.subr.mxu0 0.0
  %2916 = vmatpush1.msra.mxu0 0.0
  %2917 = vmatprep.subr.mxu0 0.0
  %2918 = vmatpush1.msra.mxu0 0.0
  %2919 = vmatprep.mubr.f32.mxu0 0.0
  %2920 = vmatmul.mubr.f32.gmra.mrb[0].mxu0 %v2853
  %v2921 = vpop.f32.mrb[0].mxu0
  %v2922 = vadd.f32 %v1716, %v2921
  %v2923 = vpop.f32.mrb[0].mxu0
  %2924 = vdwg.mxu0
  %2925 = vmatprep.subr.mxu0 0.0
  %2926 = vmatpush1.msra.mxu0 %v1696
  %2927 = vmatprep.subr.mxu0 0.0
  %2928 = vmatpush1.msra.mxu0 %v1697
  %2929 = vmatprep.subr.mxu0 0.0
  %2930 = vmatpush1.msra.mxu0 %v1698
  %2931 = vmatprep.subr.mxu0 0.0
  %2932 = vmatpush1.msra.mxu0 %v1699
  %2933 = vmatprep.subr.mxu0 0.0
  %2934 = vmatpush1.msra.mxu0 0.0
  %2935 = vmatprep.subr.mxu0 0.0
  %2936 = vmatpush1.msra.mxu0 0.0
  %2937 = vmatprep.subr.mxu0 0.0
  %2938 = vmatpush1.msra.mxu0 0.0
  %2939 = vmatprep.subr.mxu0 0.0
  %2940 = vmatpush1.msra.mxu0 0.0
  %2941 = vmatprep.subr.mxu0 0.0
  %2942 = vmatpush1.msra.mxu0 0.0
  %2943 = vmatprep.subr.mxu0 0.0
  %2944 = vmatpush1.msra.mxu0 0.0
  %2945 = vmatprep.subr.mxu0 0.0
  %2946 = vmatpush1.msra.mxu0 0.0
  %2947 = vmatprep.subr.mxu0 0.0
  %2948 = vmatpush1.msra.mxu0 0.0
  %2949 = vmatprep.subr.mxu0 0.0
  %2950 = vmatpush1.msra.mxu0 0.0
  %2951 = vmatprep.subr.mxu0 0.0
  %2952 = vmatpush1.msra.mxu0 0.0
  %2953 = vmatprep.subr.mxu0 0.0
  %2954 = vmatpush1.msra.mxu0 0.0
  %2955 = vmatprep.subr.mxu0 0.0
  %2956 = vmatpush1.msra.mxu0 0.0
  %2957 = vmatprep.subr.mxu0 0.0
  %2958 = vmatpush1.msra.mxu0 0.0
  %2959 = vmatprep.subr.mxu0 0.0
  %2960 = vmatpush1.msra.mxu0 0.0
  %2961 = vmatprep.subr.mxu0 0.0
  %2962 = vmatpush1.msra.mxu0 0.0
  %2963 = vmatprep.subr.mxu0 0.0
  %2964 = vmatpush1.msra.mxu0 0.0
  %2965 = vmatprep.subr.mxu0 0.0
  %2966 = vmatpush1.msra.mxu0 0.0
  %2967 = vmatprep.subr.mxu0 0.0
  %2968 = vmatpush1.msra.mxu0 0.0
  %2969 = vmatprep.subr.mxu0 0.0
  %2970 = vmatpush1.msra.mxu0 0.0
  %2971 = vmatprep.subr.mxu0 0.0
  %2972 = vmatpush1.msra.mxu0 0.0
  %2973 = vmatprep.subr.mxu0 0.0
  %2974 = vmatpush1.msra.mxu0 0.0
  %2975 = vmatprep.subr.mxu0 0.0
  %2976 = vmatpush1.msra.mxu0 0.0
  %2977 = vmatprep.subr.mxu0 0.0
  %2978 = vmatpush1.msra.mxu0 0.0
  %2979 = vmatprep.subr.mxu0 0.0
  %2980 = vmatpush1.msra.mxu0 0.0
  %2981 = vmatprep.subr.mxu0 0.0
  %2982 = vmatpush1.msra.mxu0 0.0
  %2983 = vmatprep.subr.mxu0 0.0
  %2984 = vmatpush1.msra.mxu0 0.0
  %2985 = vmatprep.subr.mxu0 0.0
  %2986 = vmatpush1.msra.mxu0 0.0
  %2987 = vmatprep.subr.mxu0 0.0
  %2988 = vmatpush1.msra.mxu0 0.0
  %2989 = vmatprep.mubr.f32.mxu0 0.0
  %2990 = vmatmul.mubr.f32.gmra.mrb[0].mxu0 %v2853
  %v2991 = vpop.f32.mrb[0].mxu0
  %v2992 = vadd.f32 0.0, %v2991
  %v2993 = vpop.f32.mrb[0].mxu0
  %2994 = vdwg.mxu0
  %v2995 = vadd.f32 %v1692, %v2992
  %v2996 = vxor.u32 %v2995, 2147483648
  %v2997 = vmul.f32 %v2996, 1.442695
  %v2998 = vpow.pop %v2997
  %v2999 = vadd.f32 %v2998, 1.0
  %v3000 = vrcp.pop %v2999
  %v3001 = vmul.f32 1.0, %v3000
  %v3002 = vadd.f32 %v2992, %v1796
  %3004 = vrot.lane.b32.xlu0 %v3002, 64
  %v3005 = vpop.permute.xlu0 %3004
  %v3007 = vmul.f32 %v3001, %v3005
  %3009 = vrot.lane.b32.xlu0 %v3007, 64
  %v3010 = vpop.permute.xlu0 %3009
  %v3012 = vadd.f32 %v1692, %v3010
  %v3013 = vtanh.pop %v3012
  %v3014 = vsub.f32 1.0, %v3001
  %3016 = vrot.lane.b32.xlu0 %v3013, 96
  %v3017 = vpop.permute.xlu0 %3016
  %v3019 = vmul.f32 %v3014, %v3017
  %v3020 = vmul.f32 %v3001, %v2849
  %v3021 = vadd.f32 %v3019, %v3020
  %3023 = vrot.lane.b32.xlu0 %v3021, 96
  %v3024 = vpop.permute.xlu0 %3023
  %v3025 = vsel %vm44, %v3024, 0
  %3027 = vmatprep.subr.mxu0 0.0
  %3028 = vmatpush1.msra.mxu0 %v1707
  %3029 = vmatprep.subr.mxu0 0.0
  %3030 = vmatpush1.msra.mxu0 %v1708
  %3031 = vmatprep.subr.mxu0 0.0
  %3032 = vmatpush1.msra.mxu0 %v1709
  %3033 = vmatprep.subr.mxu0 0.0
  %3034 = vmatpush1.msra.mxu0 %v1710
  %3035 = vmatprep.subr.mxu0 0.0
  %3036 = vmatpush1.msra.mxu0 0.0
  %3037 = vmatprep.subr.mxu0 0.0
  %3038 = vmatpush1.msra.mxu0 0.0
  %3039 = vmatprep.subr.mxu0 0.0
  %3040 = vmatpush1.msra.mxu0 0.0
  %3041 = vmatprep.subr.mxu0 0.0
  %3042 = vmatpush1.msra.mxu0 0.0
  %3043 = vmatprep.subr.mxu0 0.0
  %3044 = vmatpush1.msra.mxu0 0.0
  %3045 = vmatprep.subr.mxu0 0.0
  %3046 = vmatpush1.msra.mxu0 0.0
  %3047 = vmatprep.subr.mxu0 0.0
  %3048 = vmatpush1.msra.mxu0 0.0
  %3049 = vmatprep.subr.mxu0 0.0
  %3050 = vmatpush1.msra.mxu0 0.0
  %3051 = vmatprep.subr.mxu0 0.0
  %3052 = vmatpush1.msra.mxu0 0.0
  %3053 = vmatprep.subr.mxu0 0.0
  %3054 = vmatpush1.msra.mxu0 0.0
  %3055 = vmatprep.subr.mxu0 0.0
  %3056 = vmatpush1.msra.mxu0 0.0
  %3057 = vmatprep.subr.mxu0 0.0
  %3058 = vmatpush1.msra.mxu0 0.0
  %3059 = vmatprep.subr.mxu0 0.0
  %3060 = vmatpush1.msra.mxu0 0.0
  %3061 = vmatprep.subr.mxu0 0.0
  %3062 = vmatpush1.msra.mxu0 0.0
  %3063 = vmatprep.subr.mxu0 0.0
  %3064 = vmatpush1.msra.mxu0 0.0
  %3065 = vmatprep.subr.mxu0 0.0
  %3066 = vmatpush1.msra.mxu0 0.0
  %3067 = vmatprep.subr.mxu0 0.0
  %3068 = vmatpush1.msra.mxu0 0.0
  %3069 = vmatprep.subr.mxu0 0.0
  %3070 = vmatpush1.msra.mxu0 0.0
  %3071 = vmatprep.subr.mxu0 0.0
  %3072 = vmatpush1.msra.mxu0 0.0
  %3073 = vmatprep.subr.mxu0 0.0
  %3074 = vmatpush1.msra.mxu0 0.0
  %3075 = vmatprep.subr.mxu0 0.0
  %3076 = vmatpush1.msra.mxu0 0.0
  %3077 = vmatprep.subr.mxu0 0.0
  %3078 = vmatpush1.msra.mxu0 0.0
  %3079 = vmatprep.subr.mxu0 0.0
  %3080 = vmatpush1.msra.mxu0 0.0
  %3081 = vmatprep.subr.mxu0 0.0
  %3082 = vmatpush1.msra.mxu0 0.0
  %3083 = vmatprep.subr.mxu0 0.0
  %3084 = vmatpush1.msra.mxu0 0.0
  %3085 = vmatprep.subr.mxu0 0.0
  %3086 = vmatpush1.msra.mxu0 0.0
  %3087 = vmatprep.subr.mxu0 0.0
  %3088 = vmatpush1.msra.mxu0 0.0
  %3089 = vmatprep.subr.mxu0 0.0
  %3090 = vmatpush1.msra.mxu0 0.0
  %3091 = vmatprep.mubr.f32.mxu0 0.0
  %3092 = vmatmul.mubr.f32.gmra.mrb[0].mxu0 %v3025
  %v3093 = vpop.f32.mrb[0].mxu0
  %v3094 = vadd.f32 %v1716, %v3093
  %v3095 = vpop.f32.mrb[0].mxu0
  %3096 = vdwg.mxu0
  %3098 = vrot.lane.b32.xlu0 %v2062, 16
  %v3099 = vpop.permute.xlu0 %3098
  %3102 = vrot.lane.b32.xlu0 %v2234, 32
  %v3103 = vpop.permute.xlu0 %3102
  %3106 = vrot.lane.b32.xlu0 %v2406, 48
  %v3107 = vpop.permute.xlu0 %3106
  %3110 = vrot.lane.b32.xlu0 %v2578, 64
  %v3111 = vpop.permute.xlu0 %3110
  %3114 = vrot.lane.b32.xlu0 %v2750, 80
  %v3115 = vpop.permute.xlu0 %3114
  %3118 = vrot.lane.b32.xlu0 %v2922, 96
  %v3119 = vpop.permute.xlu0 %3118
  %3122 = vrot.lane.b32.xlu0 %v3094, 112
  %v3123 = vpop.permute.xlu0 %3122
  %vm3125 = vcmask 130048
  %v3126 = vsel %vm3125, %v1890, %v3099
  %v3127 = vsel %vm44, %v3126, %v3103
  %vm3128 = vcmask 392192
  %v3129 = vsel %vm3128, %v3127, %v3107
  %vm3130 = vcmask 523264
  %v3131 = vsel %vm3130, %v3129, %v3111
  %vm3132 = vcmask 654336
  %v3133 = vsel %vm3132, %v3131, %v3115
  %vm3134 = vcmask 785408
  %v3135 = vsel %vm3134, %v3133, %v3119
  %vm3136 = vcmask 916480
  %v3137 = vsel %vm3136, %v3135, %v3123
  %3138 = vst [vmem:[%s9] sm:$0x3] %v3137
  // Predicated region
  $region38: #{decoder_forward.1} parent=0 // pred_check
    _
  $region39: #{decoder_forward.1} parent=0 // pred_check_branch
    %3140 = sbr.rel (0) target = $region41
  $region40: #{decoder_forward.1} parent=0 // pred_region
    _
  $region41: #{decoder_forward.1} parent=0 // pred_fallthru
    _
  // Predicated region
  $region42: #{decoder_forward.1} parent=0 // pred_check
    _
  $region43: #{decoder_forward.1} parent=0 // pred_check_branch
    %3142 = sbr.rel (0) target = $region45
  $region44: #{decoder_forward.1} parent=0 // pred_region
    _
  $region45: #{decoder_forward.1} parent=0 // pred_fallthru
    _

</llo_original>
